<compile_context>
chip_gen: v7x
topology: tpu7x:2x2x1
jax: 0.10.0
libtpu: 0.0.40
codegen_flags: <defaults>
</compile_context>

<pallas_src>
import functools
import math

import jax
import jax.numpy as jnp
from jax.experimental import pallas as pl
from jax.experimental.pallas import tpu as pltpu


# ----------------------------------------------------------------------------
# Fused Season_Encoder kernel (batch_block elements per grid step)
# ----------------------------------------------------------------------------
def _season_encoder_kernel(x_ref, xrT_ref, wqv_ref, bqv_ref, wk_ref, bk_ref,
                           wo_ref, bo_ref, w1_ref, w2_ref, out_ref,
                           *, L, D, bb, top_k):
    f32 = jnp.float32
    cd = x_ref.dtype                        # matmul operand dtype (f32 or bf16)

    def mm(a, b):                           # MXU matmul, always f32 accumulation
        return jnp.dot(a.astype(cd), b.astype(cd), preferred_element_type=f32)

    x = x_ref[...]                                              # (bb*L, D)

    # ---- fused Q/V projection: one MXU matmul over the packed batch ----
    qv = mm(x, wqv_ref[...]) + bqv_ref[...]                     # (bb*L, 2D) f32

    aggs = []
    for b in range(bb):                                         # static, small
        q_b = qv[b * L:(b + 1) * L, :D]                         # (L, D)
        v_b = qv[b * L:(b + 1) * L, D:]                         # (L, D)

        # K projection directly in (D, L) layout from the circularly time-reversed
        # input:  k_rev^T[:, u] = Wk @ x[(-u) mod L] + bk   -> no transposes needed.
        k_rev_T = mm(wk_ref[...], xrT_ref[b]) + bk_ref[...]     # (D, L) f32

        # ---- autocorrelation scores ----
        # S_rev[t, u] = <q[t], k[(-u) mod L]>
        S_rev = mm(q_b, k_rev_T)                                # (L, L) f32
        # row t rotated by t:  R[t, tau] = S_rev[t, (tau-t) mod L] = <q[t], k[(t-tau) mod L]>
        R = pltpu.roll(S_rev, 0, axis=1, stride=1, stride_axis=0)
        # mean over time and channels == mean of irfft(rfft(q) * conj(rfft(k)))  (exact)
        mv = jnp.sum(R, axis=0, keepdims=True) * (1.0 / D)      # (1, L)

        # ---- top-k threshold (k-th largest lag score) on the (1, L) row ----
        mmax = jnp.max(mv, axis=1, keepdims=True)               # (1, 1)
        thr = mmax
        cur = mv
        for _ in range(top_k - 1):                              # static, tiny
            cur = jnp.where(cur >= thr, -jnp.inf, cur)
            thr = jnp.max(cur, axis=1, keepdims=True)
        # NOTE: '>= thr' also keeps lags exactly tied with the k-th largest score
        # (measure-zero for float data); softmax runs over the selected lags only.
        num = jnp.where(mv >= thr, jnp.exp(mv - mmax), 0.0)     # (1, L)
        den = jnp.sum(num, axis=1, keepdims=True)               # (1, 1)
        w_row = num * pl.reciprocal(den)                        # (1, L)

        # ---- time-delay aggregation as a circulant matmul ----
        # C[t, s] = w_row[(s - t) mod L]  (one sublane broadcast + one strided roll)
        C = pltpu.roll(jnp.broadcast_to(w_row, (L, L)), 0, axis=1,
                       stride=1, stride_axis=0)
        # agg[t, :] = sum_i w_i * v[(t + delay_i) mod L, :]  ==  C @ v
        aggs.append(mm(C, v_b))                                 # (L, D) f32

    agg = aggs[0] if bb == 1 else jnp.concatenate(aggs, axis=0)  # (bb*L, D)

    # ---- output projection + residual, then pointwise Conv1d FFN + residual ----
    attn = mm(agg, wo_ref[...]) + bo_ref[...]                   # (bb*L, D)
    season = x.astype(f32) + attn                               # dropout = identity (eval)
    h = jnp.maximum(mm(season, w1_ref[...]), 0.0)               # (bb*L, 4D)
    y = mm(h, w2_ref[...])                                      # (bb*L, D)
    out_ref[...] = (season + y).astype(out_ref.dtype)


def season_encoder_forward(x, params, *, n_heads, factor=1.0, batch_block=1,
                           compute_dtype=jnp.float32):
    """x: (B, L, D) float32 -> (B, L, D) float32."""
    B, L, D = x.shape
    assert D % n_heads == 0
    assert B % batch_block == 0, "batch_block must divide B"
    bb = batch_block
    top_k = max(1, int(factor * math.log(L)))
    d_ff = params["w1"].shape[0]
    cd = compute_dtype

    # ---- host-side layout plumbing (cheap, done once) ----
    x2 = x.reshape(B * L, D).astype(cd)                          # lane-dense (B*L, D)
    # circular time reversal: x_rev[:, s] = x[:, (-s) mod L]
    x_rev = jnp.roll(jnp.flip(x, axis=1), 1, axis=1)
    x_rev_T = jnp.swapaxes(x_rev, 1, 2).astype(cd)               # (B, D, L)

    w_qv = jnp.concatenate([params["wq"].T, params["wv"].T], axis=1).astype(cd)  # (D, 2D)
    b_qv = jnp.concatenate([params["bq"], params["bv"]]).reshape(1, 2 * D).astype(jnp.float32)
    w_k = params["wk"].astype(cd)                                # (D, D)  (out, in)
    b_k = params["bk"].reshape(D, 1).astype(jnp.float32)
    w_o = params["wo"].T.astype(cd)                              # (D, D)
    b_o = params["bo"].reshape(1, D).astype(jnp.float32)
    w_1 = params["w1"].T.astype(cd)                              # (D, 4D)
    w_2 = params["w2"].T.astype(cd)                              # (4D, D)

    kernel = functools.partial(_season_encoder_kernel, L=L, D=D, bb=bb, top_k=top_k)

    def const_spec(shape):
        return pl.BlockSpec(shape, lambda i: (0,) * len(shape))

    # VMEM budget: resident weights + pipelined x / x_rev^T / out blocks + per-step
    # live activations (qv, h, agg/attn/season/y and three (L, L) f32 planes).
    cd_bytes = jnp.dtype(cd).itemsize
    weights = (D * 2 * D + 2 * D * D + 2 * D * d_ff) * cd_bytes + (4 * D) * 4
    io_blocks = 2 * (bb * L * D) * (cd_bytes + 4) + 2 * (bb * D * L) * cd_bytes
    live_acts = (bb * L * (2 * D + d_ff + 3 * D)) * 4 + 3 * L * L * 4
    est = 2 * weights + io_blocks + live_acts
    vmem_limit = int(min(max(2 * est, 32 * (1 << 20)), 96 * (1 << 20)))

    out2 = pl.pallas_call(
        kernel,
        out_shape=jax.ShapeDtypeStruct((B * L, D), jnp.float32),
        grid=(B // bb,),
        in_specs=[
            pl.BlockSpec((bb * L, D), lambda i: (i, 0)),         # x (packed rows)
            pl.BlockSpec((bb, D, L), lambda i: (i, 0, 0)),       # x_rev^T
            const_spec((D, 2 * D)), const_spec((1, 2 * D)),      # W_qv, b_qv
            const_spec((D, D)), const_spec((D, 1)),              # W_k, b_k
            const_spec((D, D)), const_spec((1, D)),              # W_o^T, b_o
            const_spec((D, d_ff)), const_spec((d_ff, D)),        # conv1^T, conv2^T
        ],
        out_specs=pl.BlockSpec((bb * L, D), lambda i: (i, 0)),
        compiler_params=pltpu.CompilerParams(
            dimension_semantics=("parallel",),
            vmem_limit_bytes=vmem_limit),
    )(x2, x_rev_T, w_qv, b_qv, w_k, b_k, w_o, b_o, w_1, w_2)
    return out2.reshape(B, L, D)


# ----------------------------------------------------------------------------
# Deterministic parameter init (PyTorch-like uniform bounds)
# ----------------------------------------------------------------------------
def init_params(key, emb_dim):
    D = emb_dim
    ks = iter(jax.random.split(key, 10))

    def u(shape, bound):
        return jax.random.uniform(next(ks), shape, jnp.float32, -bound, bound)

    lb = 1.0 / math.sqrt(D)
    return dict(
        wq=u((D, D), lb), bq=u((D,), lb),
        wk=u((D, D), lb), bk=u((D,), lb),
        wv=u((D, D), lb), bv=u((D,), lb),
        wo=u((D, D), lb), bo=u((D,), lb),
        w1=u((4 * D, D), 1.0 / math.sqrt(D)),        # Conv1d(D, 4D, 1, bias=False)
        w2=u((D, 4 * D), 1.0 / math.sqrt(4 * D)),    # Conv1d(4D, D, 1, bias=False)
    )


# ----------------------------------------------------------------------------
# Pure-JAX reference (faithful FFT-based AutoCorrelation, eval mode)
# ----------------------------------------------------------------------------
def reference_forward(x, p, *, n_heads, factor=1.0):
    B, L, D = x.shape
    H = n_heads
    E = D // H
    q = x @ p["wq"].T + p["bq"]
    k = x @ p["wk"].T + p["bk"]
    v = x @ p["wv"].T + p["bv"]
    q4 = q.reshape(B, L, H, E).transpose(0, 2, 3, 1)              # (B, H, E, L)
    k4 = k.reshape(B, L, H, E).transpose(0, 2, 3, 1)
    v4 = v.reshape(B, L, H, E).transpose(0, 2, 3, 1)

    qf = jnp.fft.rfft(q4, axis=-1)
    kf = jnp.fft.rfft(k4, axis=-1)
    corr = jnp.fft.irfft(qf * jnp.conj(kf), n=L, axis=-1)          # (B, H, E, L)

    mean_value = corr.mean(axis=1).mean(axis=1)                    # (B, L)
    top_k = int(factor * math.log(L))
    weights, delay = jax.lax.top_k(mean_value, top_k)              # (B, top_k)
    tmp_corr = jax.nn.softmax(weights, axis=-1)
    tmp_values = jnp.concatenate([v4, v4], axis=-1)                # (B, H, E, 2L)
    init_index = jnp.arange(L)
    agg = jnp.zeros_like(v4)
    for i in range(top_k):
        idx = init_index[None, :] + delay[:, i][:, None]           # (B, L)
        idx_full = jnp.broadcast_to(idx[:, None, None, :], (B, H, E, L))
        pattern = jnp.take_along_axis(tmp_values, idx_full, axis=-1)
        agg = agg + pattern * tmp_corr[:, i][:, None, None, None]

    attn = agg.transpose(0, 3, 1, 2).reshape(B, L, D)
    season = x + (attn @ p["wo"].T + p["bo"])
    y = jax.nn.relu(season @ p["w1"].T) @ p["w2"].T
    return season + y


if __name__ == "__main__":
    # L = D = 128 keeps every tile lane/sublane aligned; top_k = int(log(128)) = 4.
    # B=4 with batch_block=2 -> grid=(2,), so both TensorCores of a v7x get one step.
    B, L, emb_dim, n_heads, factor = 4, 128, 128, 4, 1.0

    key = jax.random.PRNGKey(0)
    k_param, k_x = jax.random.split(key)
    params = init_params(k_param, emb_dim)
    x = jax.random.normal(k_x, (B, L, emb_dim), jnp.float32)

    # f32 matmul operands: numerically checked against the FFT-based reference.
    out = season_encoder_forward(x, params, n_heads=n_heads, factor=factor,
                                 batch_block=2, compute_dtype=jnp.float32)
    out = jax.block_until_ready(out)

    ref = reference_forward(x, params, n_heads=n_heads, factor=factor)
    assert out.shape == (B, L, emb_dim), out.shape
    err = float(jnp.max(jnp.abs(out - ref)))
    assert err < 2e-3, err

    # bf16 matmul-operand path (v6e/v7x fast path); scalar math stays f32 in-kernel.
    # Not numerically asserted (bf16 can legitimately flip near-tied top-k lags).
    out_bf16 = season_encoder_forward(x, params, n_heads=n_heads, factor=factor,
                                      batch_block=2, compute_dtype=jnp.bfloat16)
    out_bf16 = jax.block_until_ready(out_bf16)
    assert out_bf16.shape == (B, L, emb_dim)
    assert bool(jnp.all(jnp.isfinite(out_bf16)))

    print("KERNEL_OK")
</pallas_src>

<mosaic_0001>
module attributes {stable_mosaic.version = 11 : i64} {
  func.func @_season_encoder_kernel(%arg0: i32, %arg1: memref<256x128xf32, #tpu.memory_space<vmem>>, %arg2: memref<2x128x128xf32, #tpu.memory_space<vmem>>, %arg3: memref<128x256xf32, #tpu.memory_space<vmem>>, %arg4: memref<1x256xf32, #tpu.memory_space<vmem>>, %arg5: memref<128x128xf32, #tpu.memory_space<vmem>>, %arg6: memref<128x1xf32, #tpu.memory_space<vmem>>, %arg7: memref<128x128xf32, #tpu.memory_space<vmem>>, %arg8: memref<1x128xf32, #tpu.memory_space<vmem>>, %arg9: memref<128x512xf32, #tpu.memory_space<vmem>>, %arg10: memref<512x128xf32, #tpu.memory_space<vmem>>, %arg11: memref<256x128xf32, #tpu.memory_space<vmem>>) attributes {dimension_semantics = [#tpu.dimension_semantics<parallel>], iteration_bounds = array<i64: 2>, scalar_prefetch = 0 : i64, scratch_operands = 0 : i64, tpu.core_type = #tpu.core_type<tc>, window_params = [{transform_indices = @transform_0, window_bounds = array<i64: 256, 128>}, {transform_indices = @transform_1, window_bounds = array<i64: 2, 128, 128>}, {pipeline_mode = #tpu.pipeline_mode<synchronous>, transform_indices = @transform_2, window_bounds = array<i64: 128, 256>}, {pipeline_mode = #tpu.pipeline_mode<synchronous>, transform_indices = @transform_3, window_bounds = array<i64: 1, 256>}, {pipeline_mode = #tpu.pipeline_mode<synchronous>, transform_indices = @transform_4, window_bounds = array<i64: 128, 128>}, {pipeline_mode = #tpu.pipeline_mode<synchronous>, transform_indices = @transform_5, window_bounds = array<i64: 128, 1>}, {pipeline_mode = #tpu.pipeline_mode<synchronous>, transform_indices = @transform_6, window_bounds = array<i64: 128, 128>}, {pipeline_mode = #tpu.pipeline_mode<synchronous>, transform_indices = @transform_7, window_bounds = array<i64: 1, 128>}, {pipeline_mode = #tpu.pipeline_mode<synchronous>, transform_indices = @transform_8, window_bounds = array<i64: 128, 512>}, {pipeline_mode = #tpu.pipeline_mode<synchronous>, transform_indices = @transform_9, window_bounds = array<i64: 512, 128>}, {transform_indices = @transform_10, window_bounds = array<i64: 256, 128>}]} {
    %c0 = arith.constant 0 : index
    %c0_0 = arith.constant 0 : index
    %0 = vector.load %arg1[%c0, %c0_0] : memref<256x128xf32, #tpu.memory_space<vmem>>, vector<256x128xf32>
    %c0_1 = arith.constant 0 : index
    %c0_2 = arith.constant 0 : index
    %1 = vector.load %arg3[%c0_1, %c0_2] : memref<128x256xf32, #tpu.memory_space<vmem>>, vector<128x256xf32>
    %cst = arith.constant dense<0.000000e+00> : vector<256x256xf32>
    %2 = tpu.matmul %0, %1, %cst {dimension_numbers = #tpu.dot_dimension_numbers<[1], [0], [0], [1], [0, 0, 1, 1], [], []>} : vector<256x128xf32>, vector<128x256xf32>, vector<256x256xf32> -> vector<256x256xf32>
    %c0_3 = arith.constant 0 : index
    %c0_4 = arith.constant 0 : index
    %3 = vector.load %arg4[%c0_3, %c0_4] : memref<1x256xf32, #tpu.memory_space<vmem>>, vector<1x256xf32>
    %4 = vector.broadcast %3 : vector<1x256xf32> to vector<256x256xf32>
    %5 = arith.addf %2, %4 : vector<256x256xf32>
    %6 = vector.extract_strided_slice %5 {offsets = [0, 0], sizes = [128, 128], strides = [1, 1]} : vector<256x256xf32> to vector<128x128xf32>
    %7 = vector.extract_strided_slice %5 {offsets = [0, 128], sizes = [128, 128], strides = [1, 1]} : vector<256x256xf32> to vector<128x128xf32>
    %c0_5 = arith.constant 0 : index
    %c0_6 = arith.constant 0 : index
    %8 = vector.load %arg5[%c0_5, %c0_6] : memref<128x128xf32, #tpu.memory_space<vmem>>, vector<128x128xf32>
    %c0_7 = arith.constant 0 : index
    %c0_8 = arith.constant 0 : index
    %c0_9 = arith.constant 0 : index
    %9 = vector.load %arg2[%c0_7, %c0_8, %c0_9] : memref<2x128x128xf32, #tpu.memory_space<vmem>>, vector<1x128x128xf32>
    %10 = vector.shape_cast %9 : vector<1x128x128xf32> to vector<128x128xf32>
    %cst_10 = arith.constant dense<0.000000e+00> : vector<128x128xf32>
    %11 = tpu.matmul %8, %10, %cst_10 {dimension_numbers = #tpu.dot_dimension_numbers<[1], [0], [0], [1], [0, 0, 1, 1], [], []>} : vector<128x128xf32>, vector<128x128xf32>, vector<128x128xf32> -> vector<128x128xf32>
    %c0_11 = arith.constant 0 : index
    %c0_12 = arith.constant 0 : index
    %12 = vector.load %arg6[%c0_11, %c0_12] : memref<128x1xf32, #tpu.memory_space<vmem>>, vector<128x1xf32>
    %13 = vector.broadcast %12 : vector<128x1xf32> to vector<128x128xf32>
    %14 = arith.addf %11, %13 : vector<128x128xf32>
    %cst_13 = arith.constant dense<0.000000e+00> : vector<128x128xf32>
    %15 = tpu.matmul %6, %14, %cst_13 {dimension_numbers = #tpu.dot_dimension_numbers<[1], [0], [0], [1], [0, 0, 1, 1], [], []>} : vector<128x128xf32>, vector<128x128xf32>, vector<128x128xf32> -> vector<128x128xf32>
    %c0_i32 = arith.constant 0 : i32
    %16 = tpu.dynamic_rotate %15 by %c0_i32 dim 1 {stride = 1 : si32, stride_dimension = 0 : si32} : vector<128x128xf32>, i32 -> vector<128x128xf32>
    %cst_14 = arith.constant dense<0.000000e+00> : vector<128xf32>
    %17 = vector.multi_reduction <add>, %16, %cst_14 [0] : vector<128x128xf32> to vector<128xf32>
    %18 = vector.shape_cast %17 : vector<128xf32> to vector<1x128xf32>
    %cst_15 = arith.constant 7.812500e-03 : f32
    %19 = vector.broadcast %cst_15 : f32 to vector<1x128xf32>
    %20 = arith.mulf %18, %19 : vector<1x128xf32>
    %cst_16 = arith.constant dense<0xFF800000> : vector<1xf32>
    %21 = vector.multi_reduction <maximumf>, %20, %cst_16 [1] : vector<1x128xf32> to vector<1xf32>
    %22 = vector.shape_cast %21 : vector<1xf32> to vector<1x1xf32>
    %23 = vector.broadcast %22 : vector<1x1xf32> to vector<1x128xf32>
    %24 = arith.cmpf oge, %20, %23 : vector<1x128xf32>
    %cst_17 = arith.constant 0xFF800000 : f32
    %25 = vector.broadcast %cst_17 : f32 to vector<1x128xf32>
    %26 = arith.select %24, %25, %20 : vector<1x128xi1>, vector<1x128xf32>
    %cst_18 = arith.constant dense<0xFF800000> : vector<1xf32>
    %27 = vector.multi_reduction <maximumf>, %26, %cst_18 [1] : vector<1x128xf32> to vector<1xf32>
    %28 = vector.shape_cast %27 : vector<1xf32> to vector<1x1xf32>
    %29 = vector.broadcast %28 : vector<1x1xf32> to vector<1x128xf32>
    %30 = arith.cmpf oge, %26, %29 : vector<1x128xf32>
    %cst_19 = arith.constant 0xFF800000 : f32
    %31 = vector.broadcast %cst_19 : f32 to vector<1x128xf32>
    %32 = arith.select %30, %31, %26 : vector<1x128xi1>, vector<1x128xf32>
    %cst_20 = arith.constant dense<0xFF800000> : vector<1xf32>
    %33 = vector.multi_reduction <maximumf>, %32, %cst_20 [1] : vector<1x128xf32> to vector<1xf32>
    %34 = vector.shape_cast %33 : vector<1xf32> to vector<1x1xf32>
    %35 = vector.broadcast %34 : vector<1x1xf32> to vector<1x128xf32>
    %36 = arith.cmpf oge, %32, %35 : vector<1x128xf32>
    %cst_21 = arith.constant 0xFF800000 : f32
    %37 = vector.broadcast %cst_21 : f32 to vector<1x128xf32>
    %38 = arith.select %36, %37, %32 : vector<1x128xi1>, vector<1x128xf32>
    %cst_22 = arith.constant dense<0xFF800000> : vector<1xf32>
    %39 = vector.multi_reduction <maximumf>, %38, %cst_22 [1] : vector<1x128xf32> to vector<1xf32>
    %40 = vector.shape_cast %39 : vector<1xf32> to vector<1x1xf32>
    %41 = vector.broadcast %40 : vector<1x1xf32> to vector<1x128xf32>
    %42 = arith.cmpf oge, %20, %41 : vector<1x128xf32>
    %43 = vector.broadcast %22 : vector<1x1xf32> to vector<1x128xf32>
    %44 = arith.subf %20, %43 : vector<1x128xf32>
    %45 = math.exp %44 : vector<1x128xf32>
    %cst_23 = arith.constant 0.000000e+00 : f32
    %46 = vector.broadcast %cst_23 : f32 to vector<1x128xf32>
    %47 = arith.select %42, %45, %46 : vector<1x128xi1>, vector<1x128xf32>
    %cst_24 = arith.constant dense<0.000000e+00> : vector<1xf32>
    %48 = vector.multi_reduction <add>, %47, %cst_24 [1] : vector<1x128xf32> to vector<1xf32>
    %49 = vector.shape_cast %48 : vector<1xf32> to vector<1x1xf32>
    %50 = tpu.reciprocal %49 : vector<1x1xf32> -> vector<1x1xf32>
    %51 = vector.broadcast %50 : vector<1x1xf32> to vector<1x128xf32>
    %52 = arith.mulf %47, %51 : vector<1x128xf32>
    %53 = vector.shape_cast %52 : vector<1x128xf32> to vector<1x128xf32>
    %54 = vector.broadcast %53 : vector<1x128xf32> to vector<128x128xf32>
    %c0_i32_25 = arith.constant 0 : i32
    %55 = tpu.dynamic_rotate %54 by %c0_i32_25 dim 1 {stride = 1 : si32, stride_dimension = 0 : si32} : vector<128x128xf32>, i32 -> vector<128x128xf32>
    %cst_26 = arith.constant dense<0.000000e+00> : vector<128x128xf32>
    %56 = tpu.matmul %55, %7, %cst_26 {dimension_numbers = #tpu.dot_dimension_numbers<[1], [0], [0], [1], [0, 0, 1, 1], [], []>} : vector<128x128xf32>, vector<128x128xf32>, vector<128x128xf32> -> vector<128x128xf32>
    %57 = vector.extract_strided_slice %5 {offsets = [128, 0], sizes = [128, 128], strides = [1, 1]} : vector<256x256xf32> to vector<128x128xf32>
    %58 = vector.extract_strided_slice %5 {offsets = [128, 128], sizes = [128, 128], strides = [1, 1]} : vector<256x256xf32> to vector<128x128xf32>
    %c0_27 = arith.constant 0 : index
    %c0_28 = arith.constant 0 : index
    %59 = vector.load %arg5[%c0_27, %c0_28] : memref<128x128xf32, #tpu.memory_space<vmem>>, vector<128x128xf32>
    %c1 = arith.constant 1 : index
    %c0_29 = arith.constant 0 : index
    %c0_30 = arith.constant 0 : index
    %60 = vector.load %arg2[%c1, %c0_29, %c0_30] : memref<2x128x128xf32, #tpu.memory_space<vmem>>, vector<1x128x128xf32>
    %61 = vector.shape_cast %60 : vector<1x128x128xf32> to vector<128x128xf32>
    %cst_31 = arith.constant dense<0.000000e+00> : vector<128x128xf32>
    %62 = tpu.matmul %59, %61, %cst_31 {dimension_numbers = #tpu.dot_dimension_numbers<[1], [0], [0], [1], [0, 0, 1, 1], [], []>} : vector<128x128xf32>, vector<128x128xf32>, vector<128x128xf32> -> vector<128x128xf32>
    %c0_32 = arith.constant 0 : index
    %c0_33 = arith.constant 0 : index
    %63 = vector.load %arg6[%c0_32, %c0_33] : memref<128x1xf32, #tpu.memory_space<vmem>>, vector<128x1xf32>
    %64 = vector.broadcast %63 : vector<128x1xf32> to vector<128x128xf32>
    %65 = arith.addf %62, %64 : vector<128x128xf32>
    %cst_34 = arith.constant dense<0.000000e+00> : vector<128x128xf32>
    %66 = tpu.matmul %57, %65, %cst_34 {dimension_numbers = #tpu.dot_dimension_numbers<[1], [0], [0], [1], [0, 0, 1, 1], [], []>} : vector<128x128xf32>, vector<128x128xf32>, vector<128x128xf32> -> vector<128x128xf32>
    %c0_i32_35 = arith.constant 0 : i32
    %67 = tpu.dynamic_rotate %66 by %c0_i32_35 dim 1 {stride = 1 : si32, stride_dimension = 0 : si32} : vector<128x128xf32>, i32 -> vector<128x128xf32>
    %cst_36 = arith.constant dense<0.000000e+00> : vector<128xf32>
    %68 = vector.multi_reduction <add>, %67, %cst_36 [0] : vector<128x128xf32> to vector<128xf32>
    %69 = vector.shape_cast %68 : vector<128xf32> to vector<1x128xf32>
    %cst_37 = arith.constant 7.812500e-03 : f32
    %70 = vector.broadcast %cst_37 : f32 to vector<1x128xf32>
    %71 = arith.mulf %69, %70 : vector<1x128xf32>
    %cst_38 = arith.constant dense<0xFF800000> : vector<1xf32>
    %72 = vector.multi_reduction <maximumf>, %71, %cst_38 [1] : vector<1x128xf32> to vector<1xf32>
    %73 = vector.shape_cast %72 : vector<1xf32> to vector<1x1xf32>
    %74 = vector.broadcast %73 : vector<1x1xf32> to vector<1x128xf32>
    %75 = arith.cmpf oge, %71, %74 : vector<1x128xf32>
    %cst_39 = arith.constant 0xFF800000 : f32
    %76 = vector.broadcast %cst_39 : f32 to vector<1x128xf32>
    %77 = arith.select %75, %76, %71 : vector<1x128xi1>, vector<1x128xf32>
    %cst_40 = arith.constant dense<0xFF800000> : vector<1xf32>
    %78 = vector.multi_reduction <maximumf>, %77, %cst_40 [1] : vector<1x128xf32> to vector<1xf32>
    %79 = vector.shape_cast %78 : vector<1xf32> to vector<1x1xf32>
    %80 = vector.broadcast %79 : vector<1x1xf32> to vector<1x128xf32>
    %81 = arith.cmpf oge, %77, %80 : vector<1x128xf32>
    %cst_41 = arith.constant 0xFF800000 : f32
    %82 = vector.broadcast %cst_41 : f32 to vector<1x128xf32>
    %83 = arith.select %81, %82, %77 : vector<1x128xi1>, vector<1x128xf32>
    %cst_42 = arith.constant dense<0xFF800000> : vector<1xf32>
    %84 = vector.multi_reduction <maximumf>, %83, %cst_42 [1] : vector<1x128xf32> to vector<1xf32>
    %85 = vector.shape_cast %84 : vector<1xf32> to vector<1x1xf32>
    %86 = vector.broadcast %85 : vector<1x1xf32> to vector<1x128xf32>
    %87 = arith.cmpf oge, %83, %86 : vector<1x128xf32>
    %cst_43 = arith.constant 0xFF800000 : f32
    %88 = vector.broadcast %cst_43 : f32 to vector<1x128xf32>
    %89 = arith.select %87, %88, %83 : vector<1x128xi1>, vector<1x128xf32>
    %cst_44 = arith.constant dense<0xFF800000> : vector<1xf32>
    %90 = vector.multi_reduction <maximumf>, %89, %cst_44 [1] : vector<1x128xf32> to vector<1xf32>
    %91 = vector.shape_cast %90 : vector<1xf32> to vector<1x1xf32>
    %92 = vector.broadcast %91 : vector<1x1xf32> to vector<1x128xf32>
    %93 = arith.cmpf oge, %71, %92 : vector<1x128xf32>
    %94 = vector.broadcast %73 : vector<1x1xf32> to vector<1x128xf32>
    %95 = arith.subf %71, %94 : vector<1x128xf32>
    %96 = math.exp %95 : vector<1x128xf32>
    %cst_45 = arith.constant 0.000000e+00 : f32
    %97 = vector.broadcast %cst_45 : f32 to vector<1x128xf32>
    %98 = arith.select %93, %96, %97 : vector<1x128xi1>, vector<1x128xf32>
    %cst_46 = arith.constant dense<0.000000e+00> : vector<1xf32>
    %99 = vector.multi_reduction <add>, %98, %cst_46 [1] : vector<1x128xf32> to vector<1xf32>
    %100 = vector.shape_cast %99 : vector<1xf32> to vector<1x1xf32>
    %101 = tpu.reciprocal %100 : vector<1x1xf32> -> vector<1x1xf32>
    %102 = vector.broadcast %101 : vector<1x1xf32> to vector<1x128xf32>
    %103 = arith.mulf %98, %102 : vector<1x128xf32>
    %104 = vector.shape_cast %103 : vector<1x128xf32> to vector<1x128xf32>
    %105 = vector.broadcast %104 : vector<1x128xf32> to vector<128x128xf32>
    %c0_i32_47 = arith.constant 0 : i32
    %106 = tpu.dynamic_rotate %105 by %c0_i32_47 dim 1 {stride = 1 : si32, stride_dimension = 0 : si32} : vector<128x128xf32>, i32 -> vector<128x128xf32>
    %cst_48 = arith.constant dense<0.000000e+00> : vector<128x128xf32>
    %107 = tpu.matmul %106, %58, %cst_48 {dimension_numbers = #tpu.dot_dimension_numbers<[1], [0], [0], [1], [0, 0, 1, 1], [], []>} : vector<128x128xf32>, vector<128x128xf32>, vector<128x128xf32> -> vector<128x128xf32>
    %108 = tpu.concatenate %56, %107 in 0 : vector<128x128xf32>, vector<128x128xf32> -> vector<256x128xf32>
    %c0_49 = arith.constant 0 : index
    %c0_50 = arith.constant 0 : index
    %109 = vector.load %arg7[%c0_49, %c0_50] : memref<128x128xf32, #tpu.memory_space<vmem>>, vector<128x128xf32>
    %cst_51 = arith.constant dense<0.000000e+00> : vector<256x128xf32>
    %110 = tpu.matmul %108, %109, %cst_51 {dimension_numbers = #tpu.dot_dimension_numbers<[1], [0], [0], [1], [0, 0, 1, 1], [], []>} : vector<256x128xf32>, vector<128x128xf32>, vector<256x128xf32> -> vector<256x128xf32>
    %c0_52 = arith.constant 0 : index
    %c0_53 = arith.constant 0 : index
    %111 = vector.load %arg8[%c0_52, %c0_53] : memref<1x128xf32, #tpu.memory_space<vmem>>, vector<1x128xf32>
    %112 = vector.broadcast %111 : vector<1x128xf32> to vector<256x128xf32>
    %113 = arith.addf %110, %112 : vector<256x128xf32>
    %114 = arith.addf %0, %113 : vector<256x128xf32>
    %c0_54 = arith.constant 0 : index
    %c0_55 = arith.constant 0 : index
    %115 = vector.load %arg9[%c0_54, %c0_55] : memref<128x512xf32, #tpu.memory_space<vmem>>, vector<128x512xf32>
    %cst_56 = arith.constant dense<0.000000e+00> : vector<256x512xf32>
    %116 = tpu.matmul %114, %115, %cst_56 {dimension_numbers = #tpu.dot_dimension_numbers<[1], [0], [0], [1], [0, 0, 1, 1], [], []>} : vector<256x128xf32>, vector<128x512xf32>, vector<256x512xf32> -> vector<256x512xf32>
    %cst_57 = arith.constant 0.000000e+00 : f32
    %117 = vector.broadcast %cst_57 : f32 to vector<256x512xf32>
    %118 = arith.maximumf %116, %117 : vector<256x512xf32>
    %c0_58 = arith.constant 0 : index
    %c0_59 = arith.constant 0 : index
    %119 = vector.load %arg10[%c0_58, %c0_59] : memref<512x128xf32, #tpu.memory_space<vmem>>, vector<512x128xf32>
    %cst_60 = arith.constant dense<0.000000e+00> : vector<256x128xf32>
    %120 = tpu.matmul %118, %119, %cst_60 {dimension_numbers = #tpu.dot_dimension_numbers<[1], [0], [0], [1], [0, 0, 1, 1], [], []>} : vector<256x512xf32>, vector<512x128xf32>, vector<256x128xf32> -> vector<256x128xf32>
    %121 = arith.addf %114, %120 : vector<256x128xf32>
    %c0_61 = arith.constant 0 : index
    %c0_62 = arith.constant 0 : index
    %122 = vector.load %arg11[%c0_61, %c0_62] : memref<256x128xf32, #tpu.memory_space<vmem>>, vector<256x128xf32>
    tpu.vector_store %arg11[%c0_61, %c0_62], %121 {strides = array<i32>} : memref<256x128xf32, #tpu.memory_space<vmem>>, vector<256x128xf32>,
    return
  }
  func.func @transform_0(%arg0: i32) -> (i32, i32) {
    %c0_i32 = arith.constant 0 : i32
    %c0_i32_0 = arith.constant 0 : i32
    return %arg0, %c0_i32 : i32, i32
  }
  func.func @transform_1(%arg0: i32) -> (i32, i32, i32) {
    %c0_i32 = arith.constant 0 : i32
    %c0_i32_0 = arith.constant 0 : i32
    %c0_i32_1 = arith.constant 0 : i32
    return %arg0, %c0_i32, %c0_i32_0 : i32, i32, i32
  }
  func.func @transform_2(%arg0: i32) -> (i32, i32) {
    %c0_i32 = arith.constant 0 : i32
    %c0_i32_0 = arith.constant 0 : i32
    %c0_i32_1 = arith.constant 0 : i32
    return %c0_i32, %c0_i32_0 : i32, i32
  }
  func.func @transform_3(%arg0: i32) -> (i32, i32) {
    %c0_i32 = arith.constant 0 : i32
    %c0_i32_0 = arith.constant 0 : i32
    %c0_i32_1 = arith.constant 0 : i32
    return %c0_i32, %c0_i32_0 : i32, i32
  }
  func.func @transform_4(%arg0: i32) -> (i32, i32) {
    %c0_i32 = arith.constant 0 : i32
    %c0_i32_0 = arith.constant 0 : i32
    %c0_i32_1 = arith.constant 0 : i32
    return %c0_i32, %c0_i32_0 : i32, i32
  }
  func.func @transform_5(%arg0: i32) -> (i32, i32) {
    %c0_i32 = arith.constant 0 : i32
    %c0_i32_0 = arith.constant 0 : i32
    %c0_i32_1 = arith.constant 0 : i32
    return %c0_i32, %c0_i32_0 : i32, i32
  }
  func.func @transform_6(%arg0: i32) -> (i32, i32) {
    %c0_i32 = arith.constant 0 : i32
    %c0_i32_0 = arith.constant 0 : i32
    %c0_i32_1 = arith.constant 0 : i32
    return %c0_i32, %c0_i32_0 : i32, i32
  }
  func.func @transform_7(%arg0: i32) -> (i32, i32) {
    %c0_i32 = arith.constant 0 : i32
    %c0_i32_0 = arith.constant 0 : i32
    %c0_i32_1 = arith.constant 0 : i32
    return %c0_i32, %c0_i32_0 : i32, i32
  }
  func.func @transform_8(%arg0: i32) -> (i32, i32) {
    %c0_i32 = arith.constant 0 : i32
    %c0_i32_0 = arith.constant 0 : i32
    %c0_i32_1 = arith.constant 0 : i32
    return %c0_i32, %c0_i32_0 : i32, i32
  }
  func.func @transform_9(%arg0: i32) -> (i32, i32) {
    %c0_i32 = arith.constant 0 : i32
    %c0_i32_0 = arith.constant 0 : i32
    %c0_i32_1 = arith.constant 0 : i32
    return %c0_i32, %c0_i32_0 : i32, i32
  }
  func.func @transform_10(%arg0: i32) -> (i32, i32) {
    %c0_i32 = arith.constant 0 : i32
    %c0_i32_0 = arith.constant 0 : i32
    return %arg0, %c0_i32 : i32, i32
  }
}

</mosaic_0001>

<llo_original>
// kernel: tpu_custom_call.1
$region0: #{tpu_custom_call.1}
  #allocation0 [shape = 'u32[]', space=smem, size = 0x4, offset = 0x4, fixed_abs, tag = 'smem constant byte address 0x4 - core index']
  #allocation1 [shape = 'u32[144,128]{1,0:T(1,128)}', space=vmem, size = 0x12000, scoped, tag = 'internal scratch']
  %s0 = inlined_call_operand.hbm [shape: f32[512,128], index: 0, kind: input, shape index: {}]
  %s1 = inlined_call_operand.hbm [shape: f32[4,128,128], index: 1, kind: input, shape index: {}]
  %s2 = inlined_call_operand.hbm [shape: f32[128,256], index: 2, kind: input, shape index: {}]
  %s3 = inlined_call_operand.vmem [shape: f32[1,256], index: 3, kind: input, shape index: {}]
  %s4 = inlined_call_operand.vmem [shape: f32[128,128], index: 4, kind: input, shape index: {}]
  %s5 = inlined_call_operand.vmem [shape: f32[128,1], index: 5, kind: input, shape index: {}]
  %s6 = inlined_call_operand.hbm [shape: f32[128,128], index: 6, kind: input, shape index: {}]
  %s7 = inlined_call_operand.vmem [shape: f32[1,128], index: 7, kind: input, shape index: {}]
  %s8 = inlined_call_operand.hbm [shape: f32[128,512], index: 8, kind: input, shape index: {}]
  %s9 = inlined_call_operand.hbm [shape: f32[512,128], index: 9, kind: input, shape index: {}]
  %s10 = inlined_call_operand.hbm [shape: f32[512,128], index: 10, kind: output, shape index: {}]
  %s11 = sld [smem:[#allocation0]]
  $region97: #{tpu_custom_call.1} parent=0
    _
  %s13 = ssub.s32 1, %s11
  %s14 = scalar_select 0, %s13, %s11
  $region1: #{tpu_custom_call.1} parent=0
    #allocation2 [shape = 'u8[262144]{0}', space=vmem, size = 0x40000, scoped, tag = 'input window, operand 0']
    #allocation3 [shape = 's32[2]{0}', space=sflag, size = 0x8, scoped, tag = 'scoped memory for tpu_custom_call.1']
    #allocation4 [shape = 's32[2]{0}', space=sflag, size = 0x8, scoped, tag = 'scoped memory for tpu_custom_call.1']
    #allocation5 [shape = 'u8[262144]{0}', space=vmem, size = 0x40000, scoped, tag = 'input window, operand 1']
    #allocation6 [shape = 's32[2]{0}', space=sflag, size = 0x8, scoped, tag = 'scoped memory for tpu_custom_call.1']
    #allocation7 [shape = 'u8[131072]{0}', space=vmem, size = 0x20000, scoped, tag = 'input window, operand 2, single buffered']
    #allocation8 [shape = 'u8[65536]{0}', space=vmem, size = 0x10000, scoped, tag = 'input window, operand 6, single buffered']
    #allocation9 [shape = 's32[1]{0}', space=sflag, size = 0x4, scoped, tag = 'scoped memory for tpu_custom_call.1']
    #allocation10 [shape = 'u8[262144]{0}', space=vmem, size = 0x40000, scoped, tag = 'input window, operand 8, single buffered']
    #allocation11 [shape = 'u8[262144]{0}', space=vmem, size = 0x40000, scoped, tag = 'input window, operand 9, single buffered']
    #allocation12 [shape = 's32[1]{0}', space=sflag, size = 0x4, scoped, tag = 'scoped memory for tpu_custom_call.1']
    #allocation13 [shape = 'u8[262144]{0}', space=vmem, size = 0x40000, scoped, tag = 'output window, operand 0']
    %15 = vsyncpa [#allocation3], 0
    %s16 = scalar_lea.sflag [#allocation3], 1
    %17 = vsyncpa %s16, 0
    %18 = vsyncpa [#allocation6], 0
    %s19 = scalar_lea.sflag [#allocation6], 1
    %20 = vsyncpa %s19, 0
    %21 = vsyncpa [#allocation9], 0
    %22 = vsyncpa [#allocation12], 0
    %23 = vsyncpa [#allocation4], 0
    %s24 = scalar_lea.sflag [#allocation4], 1
    %25 = vsyncpa %s24, 0
    loop: start=0, step=1, limit=4
    $region2: #{tpu_custom_call.1} parent=1 // loop_pre_header
      _
    $region3: #{tpu_custom_call.1} parent=1 // loop_header
      %s27 = sphi 0, %s31
      %p28 = scmp.ge.s32.totalorder %s27, 4
      %s37 = sphi 0, %s39
      %s40 = sphi 0, %s37
      %s41 = sphi 0, %s40
      %s57 = sphi 0, %s41
      %s63 = sphi 0, %s65
      %s66 = sphi 0, %s63
      %s67 = sphi 0, %s66
      %s83 = sphi 0, %s67
      %s87 = sphi 0, %s87
      %s89 = sphi 0, %s87
      %s90 = sphi 0, %s89
      %s104 = sphi 0, %s90
      %s108 = sphi 0, %s108
      %s110 = sphi 0, %s108
      %s111 = sphi 0, %s110
      %s125 = sphi 0, %s111
      %s129 = sphi 0, %s129
      %s131 = sphi 0, %s129
      %s132 = sphi 0, %s131
      %s146 = sphi 0, %s132
      %s150 = sphi 0, %s150
      %s152 = sphi 0, %s150
      %s153 = sphi 0, %s152
      %s167 = sphi 0, %s153
      %s171 = sphi 0, %s171
      %s173 = sphi 0, %s171
      %s174 = sphi 0, %s173
      %s188 = sphi 0, %s174
      %s192 = sphi 0, %s192
      %s194 = sphi 0, %s192
      %s195 = sphi 0, %s194
      %s209 = sphi 0, %s195
      %s213 = sphi 0, %s213
      %s215 = sphi 0, %s213
      %s216 = sphi 0, %s215
      %s230 = sphi 0, %s216
      %s234 = sphi 0, %s234
      %s236 = sphi 0, %s234
      %s237 = sphi 0, %s236
      %s251 = sphi 0, %s237
      %s257 = sphi 0, %s259
      %s260 = sphi 0, %s257
      %s261 = sphi 0, %s260
      %s277 = sphi 0, %s261
    $region4: #{tpu_custom_call.1} parent=1 // loop_header_branch
      %30 = sbr.rel (%p28) target = $region8
    $region5: #{tpu_custom_call.1} parent=1 // loop_body
      %s32 = ssub.s32 %s27, 1
      %s33 = ssub.s32 %s27, 2
      %s34 = sadd.s32 %s27, 1
      %s35 = ssub.s32 %s27, %s34
      %p36 = scmp.eq.s32.totalorder %s35, 0
      %s38 = sadd.s32 %s37, 1
      %s39 = scalar_select %p36, %s37, %s38
      %p42 = pneg %p36
      %p43 = scmp.eq.s32.totalorder %s27, 1
      %p44 = por %p42, %p43
      %p45 = scmp.ne.s32.totalorder %s37, %s40
      %p46 = scmp.eq.s32.totalorder %s27, 0
      %p47 = por %p45, %p46
      %p48 = scmp.ne.s32.totalorder %s37, %s40
      %p49 = scmp.eq.s32.totalorder %s32, 1
      %p50 = por %p48, %p49
      %p51 = scmp.ne.s32.totalorder %s40, %s41
      %p52 = scmp.eq.s32.totalorder %s32, 0
      %p53 = por %p51, %p52
      %p54 = scmp.ne.s32.totalorder %s40, %s41
      %p55 = scmp.eq.s32.totalorder %s33, 1
      %p56 = por %p54, %p55
      %p58 = scmp.ne.s32.totalorder %s41, %s57
      %p59 = scmp.eq.s32.totalorder %s33, 0
      %p60 = por %p58, %p59
      %s61 = ssub.s32 %s27, %s34
      %p62 = scmp.eq.s32.totalorder %s61, 0
      %s64 = sadd.s32 %s63, 1
      %s65 = scalar_select %p62, %s63, %s64
      %p68 = pneg %p62
      %p69 = scmp.eq.s32.totalorder %s27, 1
      %p70 = por %p68, %p69
      %p71 = scmp.ne.s32.totalorder %s63, %s66
      %p72 = scmp.eq.s32.totalorder %s27, 0
      %p73 = por %p71, %p72
      %p74 = scmp.ne.s32.totalorder %s63, %s66
      %p75 = scmp.eq.s32.totalorder %s32, 1
      %p76 = por %p74, %p75
      %p77 = scmp.ne.s32.totalorder %s66, %s67
      %p78 = scmp.eq.s32.totalorder %s32, 0
      %p79 = por %p77, %p78
      %p80 = scmp.ne.s32.totalorder %s66, %s67
      %p81 = scmp.eq.s32.totalorder %s33, 1
      %p82 = por %p80, %p81
      %p84 = scmp.ne.s32.totalorder %s67, %s83
      %p85 = scmp.eq.s32.totalorder %s33, 0
      %p86 = por %p84, %p85
      %s88 = sadd.s32 %s87, 1
      %p91 = scmp.eq.s32.totalorder %s27, 1
      %p92 = scmp.ne.s32.totalorder %s87, %s89
      %p93 = scmp.eq.s32.totalorder %s27, 0
      %p94 = por %p92, %p93
      %p95 = scmp.ne.s32.totalorder %s87, %s89
      %p96 = scmp.eq.s32.totalorder %s32, 1
      %p97 = por %p95, %p96
      %p98 = scmp.ne.s32.totalorder %s89, %s90
      %p99 = scmp.eq.s32.totalorder %s32, 0
      %p100 = por %p98, %p99
      %p101 = scmp.ne.s32.totalorder %s89, %s90
      %p102 = scmp.eq.s32.totalorder %s33, 1
      %p103 = por %p101, %p102
      %p105 = scmp.ne.s32.totalorder %s90, %s104
      %p106 = scmp.eq.s32.totalorder %s33, 0
      %p107 = por %p105, %p106
      %s109 = sadd.s32 %s108, 1
      %p112 = scmp.eq.s32.totalorder %s27, 1
      %p113 = scmp.ne.s32.totalorder %s108, %s110
      %p114 = scmp.eq.s32.totalorder %s27, 0
      %p115 = por %p113, %p114
      %p116 = scmp.ne.s32.totalorder %s108, %s110
      %p117 = scmp.eq.s32.totalorder %s32, 1
      %p118 = por %p116, %p117
      %p119 = scmp.ne.s32.totalorder %s110, %s111
      %p120 = scmp.eq.s32.totalorder %s32, 0
      %p121 = por %p119, %p120
      %p122 = scmp.ne.s32.totalorder %s110, %s111
      %p123 = scmp.eq.s32.totalorder %s33, 1
      %p124 = por %p122, %p123
      %p126 = scmp.ne.s32.totalorder %s111, %s125
      %p127 = scmp.eq.s32.totalorder %s33, 0
      %p128 = por %p126, %p127
      %s130 = sadd.s32 %s129, 1
      %p133 = scmp.eq.s32.totalorder %s27, 1
      %p134 = scmp.ne.s32.totalorder %s129, %s131
      %p135 = scmp.eq.s32.totalorder %s27, 0
      %p136 = por %p134, %p135
      %p137 = scmp.ne.s32.totalorder %s129, %s131
      %p138 = scmp.eq.s32.totalorder %s32, 1
      %p139 = por %p137, %p138
      %p140 = scmp.ne.s32.totalorder %s131, %s132
      %p141 = scmp.eq.s32.totalorder %s32, 0
      %p142 = por %p140, %p141
      %p143 = scmp.ne.s32.totalorder %s131, %s132
      %p144 = scmp.eq.s32.totalorder %s33, 1
      %p145 = por %p143, %p144
      %p147 = scmp.ne.s32.totalorder %s132, %s146
      %p148 = scmp.eq.s32.totalorder %s33, 0
      %p149 = por %p147, %p148
      %s151 = sadd.s32 %s150, 1
      %p154 = scmp.eq.s32.totalorder %s27, 1
      %p155 = scmp.ne.s32.totalorder %s150, %s152
      %p156 = scmp.eq.s32.totalorder %s27, 0
      %p157 = por %p155, %p156
      %p158 = scmp.ne.s32.totalorder %s150, %s152
      %p159 = scmp.eq.s32.totalorder %s32, 1
      %p160 = por %p158, %p159
      %p161 = scmp.ne.s32.totalorder %s152, %s153
      %p162 = scmp.eq.s32.totalorder %s32, 0
      %p163 = por %p161, %p162
      %p164 = scmp.ne.s32.totalorder %s152, %s153
      %p165 = scmp.eq.s32.totalorder %s33, 1
      %p166 = por %p164, %p165
      %p168 = scmp.ne.s32.totalorder %s153, %s167
      %p169 = scmp.eq.s32.totalorder %s33, 0
      %p170 = por %p168, %p169
      %s172 = sadd.s32 %s171, 1
      %p175 = scmp.eq.s32.totalorder %s27, 1
      %p176 = scmp.ne.s32.totalorder %s171, %s173
      %p177 = scmp.eq.s32.totalorder %s27, 0
      %p178 = por %p176, %p177
      %p179 = scmp.ne.s32.totalorder %s171, %s173
      %p180 = scmp.eq.s32.totalorder %s32, 1
      %p181 = por %p179, %p180
      %p182 = scmp.ne.s32.totalorder %s173, %s174
      %p183 = scmp.eq.s32.totalorder %s32, 0
      %p184 = por %p182, %p183
      %p185 = scmp.ne.s32.totalorder %s173, %s174
      %p186 = scmp.eq.s32.totalorder %s33, 1
      %p187 = por %p185, %p186
      %p189 = scmp.ne.s32.totalorder %s174, %s188
      %p190 = scmp.eq.s32.totalorder %s33, 0
      %p191 = por %p189, %p190
      %s193 = sadd.s32 %s192, 1
      %p196 = scmp.eq.s32.totalorder %s27, 1
      %p197 = scmp.ne.s32.totalorder %s192, %s194
      %p198 = scmp.eq.s32.totalorder %s27, 0
      %p199 = por %p197, %p198
      %p200 = scmp.ne.s32.totalorder %s192, %s194
      %p201 = scmp.eq.s32.totalorder %s32, 1
      %p202 = por %p200, %p201
      %p203 = scmp.ne.s32.totalorder %s194, %s195
      %p204 = scmp.eq.s32.totalorder %s32, 0
      %p205 = por %p203, %p204
      %p206 = scmp.ne.s32.totalorder %s194, %s195
      %p207 = scmp.eq.s32.totalorder %s33, 1
      %p208 = por %p206, %p207
      %p210 = scmp.ne.s32.totalorder %s195, %s209
      %p211 = scmp.eq.s32.totalorder %s33, 0
      %p212 = por %p210, %p211
      %s214 = sadd.s32 %s213, 1
      %p217 = scmp.eq.s32.totalorder %s27, 1
      %p218 = scmp.ne.s32.totalorder %s213, %s215
      %p219 = scmp.eq.s32.totalorder %s27, 0
      %p220 = por %p218, %p219
      %p221 = scmp.ne.s32.totalorder %s213, %s215
      %p222 = scmp.eq.s32.totalorder %s32, 1
      %p223 = por %p221, %p222
      %p224 = scmp.ne.s32.totalorder %s215, %s216
      %p225 = scmp.eq.s32.totalorder %s32, 0
      %p226 = por %p224, %p225
      %p227 = scmp.ne.s32.totalorder %s215, %s216
      %p228 = scmp.eq.s32.totalorder %s33, 1
      %p229 = por %p227, %p228
      %p231 = scmp.ne.s32.totalorder %s216, %s230
      %p232 = scmp.eq.s32.totalorder %s33, 0
      %p233 = por %p231, %p232
      %s235 = sadd.s32 %s234, 1
      %p238 = scmp.eq.s32.totalorder %s27, 1
      %p239 = scmp.ne.s32.totalorder %s234, %s236
      %p240 = scmp.eq.s32.totalorder %s27, 0
      %p241 = por %p239, %p240
      %p242 = scmp.ne.s32.totalorder %s234, %s236
      %p243 = scmp.eq.s32.totalorder %s32, 1
      %p244 = por %p242, %p243
      %p245 = scmp.ne.s32.totalorder %s236, %s237
      %p246 = scmp.eq.s32.totalorder %s32, 0
      %p247 = por %p245, %p246
      %p248 = scmp.ne.s32.totalorder %s236, %s237
      %p249 = scmp.eq.s32.totalorder %s33, 1
      %p250 = por %p248, %p249
      %p252 = scmp.ne.s32.totalorder %s237, %s251
      %p253 = scmp.eq.s32.totalorder %s33, 0
      %p254 = por %p252, %p253
      %s255 = ssub.s32 %s27, %s34
      %p256 = scmp.eq.s32.totalorder %s255, 0
      %s258 = sadd.s32 %s257, 1
      %s259 = scalar_select %p256, %s257, %s258
      %p262 = pneg %p256
      %p263 = scmp.eq.s32.totalorder %s27, 1
      %p264 = por %p262, %p263
      %p265 = scmp.ne.s32.totalorder %s257, %s260
      %p266 = scmp.eq.s32.totalorder %s27, 0
      %p267 = por %p265, %p266
      %p268 = scmp.ne.s32.totalorder %s257, %s260
      %p269 = scmp.eq.s32.totalorder %s32, 1
      %p270 = por %p268, %p269
      %p271 = scmp.ne.s32.totalorder %s260, %s261
      %p272 = scmp.eq.s32.totalorder %s32, 0
      %p273 = por %p271, %p272
      %p274 = scmp.ne.s32.totalorder %s260, %s261
      %p275 = scmp.eq.s32.totalorder %s33, 1
      %p276 = por %p274, %p275
      %p278 = scmp.ne.s32.totalorder %s261, %s277
      %p279 = scmp.eq.s32.totalorder %s33, 0
      %p280 = por %p278, %p279
      %p281 = scmp.le.s32.totalorder 1, %s27
      %p282 = scmp.lt.s32.totalorder %s27, 3
      %p283 = pnand %p281, %p282
      %p284 = pneg %p283
      // Predicated region
      $region9: #{tpu_custom_call.1} parent=5 // pred_check
        _
      $region10: #{tpu_custom_call.1} parent=5 // pred_check_branch
        %286 = sbr.rel (%p283) target = $region12
      $region11: #{tpu_custom_call.1} parent=5 // pred_region
        %s287 = ssub.s32 %s27, 1
        // Predicated region
        $region13: #{tpu_custom_call.1} parent=11 // pred_check
          %p288 = pneg %p100
        $region14: #{tpu_custom_call.1} parent=11 // pred_check_branch
          %290 = sbr.rel (%p288) target = $region16
        $region15: #{tpu_custom_call.1} parent=11 // pred_region
          %s292 = ssub.s32 4096, 4096
          %293 = vsyncadd [#allocation6], %s292
          %s294 = sshll.u32 [#allocation7], 4
          %s295 = int_to_ptr.vmem [resolvable:$true] %s294
          %300 = dma.hbm_to_vmem [thread:$0]  %s2, 4096, %s295, [#allocation6], 256, 256, 16
        $region16: #{tpu_custom_call.1} parent=11 // pred_fallthru
          _
        // Predicated region
        $region17: #{tpu_custom_call.1} parent=11 // pred_check
          %p301 = pneg %p121
        $region18: #{tpu_custom_call.1} parent=11 // pred_check_branch
          %303 = sbr.rel (%p301) target = $region20
        $region19: #{tpu_custom_call.1} parent=11 // pred_region
          _
        $region20: #{tpu_custom_call.1} parent=11 // pred_fallthru
          _
        // Predicated region
        $region21: #{tpu_custom_call.1} parent=11 // pred_check
          %p304 = pneg %p142
        $region22: #{tpu_custom_call.1} parent=11 // pred_check_branch
          %306 = sbr.rel (%p304) target = $region24
        $region23: #{tpu_custom_call.1} parent=11 // pred_region
          _
        $region24: #{tpu_custom_call.1} parent=11 // pred_fallthru
          _
        // Predicated region
        $region25: #{tpu_custom_call.1} parent=11 // pred_check
          %p307 = pneg %p163
        $region26: #{tpu_custom_call.1} parent=11 // pred_check_branch
          %309 = sbr.rel (%p307) target = $region28
        $region27: #{tpu_custom_call.1} parent=11 // pred_region
          _
        $region28: #{tpu_custom_call.1} parent=11 // pred_fallthru
          _
        // Predicated region
        $region29: #{tpu_custom_call.1} parent=11 // pred_check
          %p310 = pneg %p184
        $region30: #{tpu_custom_call.1} parent=11 // pred_check_branch
          %312 = sbr.rel (%p310) target = $region32
        $region31: #{tpu_custom_call.1} parent=11 // pred_region
          %s314 = ssub.s32 2048, 2048
          %315 = vsyncadd [#allocation9], %s314
          %s316 = sshll.u32 [#allocation8], 4
          %s317 = int_to_ptr.vmem [resolvable:$true] %s316
          %322 = dma.hbm_to_vmem [thread:$0]  %s6, 2048, %s317, [#allocation9], 128, 128, 8
        $region32: #{tpu_custom_call.1} parent=11 // pred_fallthru
          _
        // Predicated region
        $region33: #{tpu_custom_call.1} parent=11 // pred_check
          %p323 = pneg %p205
        $region34: #{tpu_custom_call.1} parent=11 // pred_check_branch
          %325 = sbr.rel (%p323) target = $region36
        $region35: #{tpu_custom_call.1} parent=11 // pred_region
          _
        $region36: #{tpu_custom_call.1} parent=11 // pred_fallthru
          _
        // Predicated region
        $region37: #{tpu_custom_call.1} parent=11 // pred_check
          %p326 = pneg %p226
        $region38: #{tpu_custom_call.1} parent=11 // pred_check_branch
          %328 = sbr.rel (%p326) target = $region40
        $region39: #{tpu_custom_call.1} parent=11 // pred_region
          %s330 = ssub.s32 8192, 8192
          %331 = vsyncadd [#allocation9], %s330
          %s332 = sshll.u32 [#allocation10], 4
          %s333 = int_to_ptr.vmem [resolvable:$true] %s332
          %338 = dma.hbm_to_vmem [thread:$0]  %s8, 8192, %s333, [#allocation9], 512, 512, 32
        $region40: #{tpu_custom_call.1} parent=11 // pred_fallthru
          _
        // Predicated region
        $region41: #{tpu_custom_call.1} parent=11 // pred_check
          %p339 = pneg %p247
        $region42: #{tpu_custom_call.1} parent=11 // pred_check_branch
          %341 = sbr.rel (%p339) target = $region44
        $region43: #{tpu_custom_call.1} parent=11 // pred_region
          %s343 = ssub.s32 8192, 8192
          %344 = vsyncadd [#allocation12], %s343
          %s345 = sshll.u32 [#allocation11], 4
          %s346 = int_to_ptr.vmem [resolvable:$true] %s345
          %351 = dma.hbm_to_vmem [thread:$0]  %s9, 8192, %s346, [#allocation12], 128, 128, 8
        $region44: #{tpu_custom_call.1} parent=11 // pred_fallthru
          _
      $region12: #{tpu_custom_call.1} parent=5 // pred_fallthru
        _
      %p352 = scmp.lt.s32.totalorder %s27, 2
      // Predicated region
      $region45: #{tpu_custom_call.1} parent=5 // pred_check
        %p353 = pneg %p352
      $region46: #{tpu_custom_call.1} parent=5 // pred_check_branch
        %355 = sbr.rel (%p353) target = $region48
      $region47: #{tpu_custom_call.1} parent=5 // pred_region
        // Predicated region
        $region49: #{tpu_custom_call.1} parent=47 // pred_check
          %p356 = pneg %p47
        $region50: #{tpu_custom_call.1} parent=47 // pred_check_branch
          %358 = sbr.rel (%p356) target = $region52
        $region51: #{tpu_custom_call.1} parent=47 // pred_region
          %s359 = sand.u32 %s37, 1
          %s360 = scalar_lea.sflag [#allocation3], %s359
          %s361 = sand.u32 %s37, 1
          %s362 = smul.addr %s361, 256
          %s363 = scalar_lea.vmem [#allocation2], %s362
          %s364 = smul.u32 32, %s27
          %s366 = ssub.s32 4096, 4096
          %367 = vsyncadd %s360, %s366
          %s368 = smul.addr %s364, 128
          %s369 = scalar_lea.hbm %s0, %s368
          %s370 = sshll.u32 %s363, 4
          %s371 = int_to_ptr.vmem [resolvable:$true] %s370
          %376 = dma.hbm_to_vmem [thread:$0]  %s369, 4096, %s371, %s360, 128, 128, 8
        $region52: #{tpu_custom_call.1} parent=47 // pred_fallthru
          _
        // Predicated region
        $region53: #{tpu_custom_call.1} parent=47 // pred_check
          %p377 = pneg %p73
        $region54: #{tpu_custom_call.1} parent=47 // pred_check_branch
          %379 = sbr.rel (%p377) target = $region56
        $region55: #{tpu_custom_call.1} parent=47 // pred_region
          %s380 = sand.u32 %s27, 1
          %s381 = scalar_lea.sflag [#allocation6], %s380
          %s382 = sand.u32 %s63, 1
          %s383 = smul.addr %s382, 256
          %s384 = scalar_lea.vmem [#allocation5], %s383
          %s385 = smul.u32 2, %s27
          %s387 = ssub.s32 4096, 4096
          %388 = vsyncadd %s381, %s387
          %s389 = smul.addr %s385, 16
          %s390 = smul.addr %s389, 128
          %s391 = scalar_lea.hbm %s1, %s390
          %s392 = sshll.u32 %s384, 4
          %s393 = int_to_ptr.vmem [resolvable:$true] %s392
          %398 = dma.hbm_to_vmem [thread:$0]  %s391, 4096, %s393, %s381, 128, 128, 8
        $region56: #{tpu_custom_call.1} parent=47 // pred_fallthru
          _
      $region48: #{tpu_custom_call.1} parent=5 // pred_fallthru
        _
      %p399 = scmp.le.s32.totalorder 1, %s27
      %p400 = scmp.lt.s32.totalorder %s27, 3
      %p401 = pnand %p399, %p400
      %p402 = pneg %p401
      // Predicated region
      $region57: #{tpu_custom_call.1} parent=5 // pred_check
        _
      $region58: #{tpu_custom_call.1} parent=5 // pred_check_branch
        %404 = sbr.rel (%p401) target = $region60
      $region59: #{tpu_custom_call.1} parent=5 // pred_region
        %s405 = ssub.s32 %s27, 1
        %s406 = sand.u32 %s40, 1
        %s407 = scalar_lea.sflag [#allocation3], %s406
        %s408 = sand.u32 %s40, 1
        %s409 = smul.addr %s408, 256
        %s410 = scalar_lea.vmem [#allocation2], %s409
        // Predicated region
        $region61: #{tpu_custom_call.1} parent=59 // pred_check
          %p411 = pneg %p53
        $region62: #{tpu_custom_call.1} parent=59 // pred_check_branch
          %413 = sbr.rel (%p411) target = $region64
        $region63: #{tpu_custom_call.1} parent=59 // pred_region
          %414 = dma.done %s407, 4096
        $region64: #{tpu_custom_call.1} parent=59 // pred_fallthru
          _
        %s415 = sand.u32 %s32, 1
        %s416 = scalar_lea.sflag [#allocation6], %s415
        %s417 = sand.u32 %s66, 1
        %s418 = smul.addr %s417, 256
        %s419 = scalar_lea.vmem [#allocation5], %s418
        // Predicated region
        $region65: #{tpu_custom_call.1} parent=59 // pred_check
          %p420 = pneg %p79
        $region66: #{tpu_custom_call.1} parent=59 // pred_check_branch
          %422 = sbr.rel (%p420) target = $region68
        $region67: #{tpu_custom_call.1} parent=59 // pred_region
          %423 = dma.done %s416, 4096
        $region68: #{tpu_custom_call.1} parent=59 // pred_fallthru
          _
        // Predicated region
        $region69: #{tpu_custom_call.1} parent=59 // pred_check
          %p424 = pneg %p100
        $region70: #{tpu_custom_call.1} parent=59 // pred_check_branch
          %426 = sbr.rel (%p424) target = $region72
        $region71: #{tpu_custom_call.1} parent=59 // pred_region
          %427 = dma.done [#allocation6], 4096
        $region72: #{tpu_custom_call.1} parent=59 // pred_fallthru
          _
        // Predicated region
        $region73: #{tpu_custom_call.1} parent=59 // pred_check
          %p428 = pneg %p184
        $region74: #{tpu_custom_call.1} parent=59 // pred_check_branch
          %430 = sbr.rel (%p428) target = $region76
        $region75: #{tpu_custom_call.1} parent=59 // pred_region
          %431 = dma.done [#allocation9], 2048
        $region76: #{tpu_custom_call.1} parent=59 // pred_fallthru
          _
        // Predicated region
        $region77: #{tpu_custom_call.1} parent=59 // pred_check
          %p432 = pneg %p226
        $region78: #{tpu_custom_call.1} parent=59 // pred_check_branch
          %434 = sbr.rel (%p432) target = $region80
        $region79: #{tpu_custom_call.1} parent=59 // pred_region
          %435 = dma.done [#allocation9], 8192
        $region80: #{tpu_custom_call.1} parent=59 // pred_fallthru
          _
        // Predicated region
        $region81: #{tpu_custom_call.1} parent=59 // pred_check
          %p436 = pneg %p247
        $region82: #{tpu_custom_call.1} parent=59 // pred_check_branch
          %438 = sbr.rel (%p436) target = $region84
        $region83: #{tpu_custom_call.1} parent=59 // pred_region
          %439 = dma.done [#allocation12], 8192
        $region84: #{tpu_custom_call.1} parent=59 // pred_fallthru
          _
        %s440 = sand.u32 %s40, 1
        %s441 = scalar_lea.sflag [#allocation3], %s440
        %s442 = sand.u32 %s40, 1
        %s443 = smul.addr %s442, 256
        %s444 = scalar_lea.vmem [#allocation2], %s443
        %p445 = pneg %p53
        %p446 = pneg %p50
        %s447 = sand.u32 %s32, 1
        %s448 = scalar_lea.sflag [#allocation6], %s447
        %s449 = sand.u32 %s66, 1
        %s450 = smul.addr %s449, 256
        %s451 = scalar_lea.vmem [#allocation5], %s450
        %p452 = pneg %p79
        %p453 = pneg %p76
        %p454 = pneg %p100
        %p455 = pneg %p97
        %p456 = pneg %p121
        %p457 = pneg %p118
        %p458 = pneg %p142
        %p459 = pneg %p139
        %p460 = pneg %p163
        %p461 = pneg %p160
        %p462 = pneg %p184
        %p463 = pneg %p181
        %p464 = pneg %p205
        %p465 = pneg %p202
        %p466 = pneg %p226
        %p467 = pneg %p223
        %p468 = pneg %p247
        %p469 = pneg %p244
        %p470 = pneg %p273
        %p471 = pneg %p270
        %s472 = sand.u32 %s260, 1
        %s473 = scalar_lea.sflag [#allocation4], %s472
        %s474 = sand.u32 %s260, 1
        %s475 = smul.addr %s474, 256
        %s476 = scalar_lea.vmem [#allocation13], %s475
        %s477 = smul.u32 32, %s32
        %s478 = smul.u32 2, %s32
        %s479 = smul.u32 32, %s32
        %v480 = vld [vmem:[%s410] sm:$0xff]
        %v481 = vld [vmem:[%s410 + $0x8] sm:$0xff]
        %v482 = vld [vmem:[%s410 + $0x10] sm:$0xff]
        %v483 = vld [vmem:[%s410 + $0x18] sm:$0xff]
        %v484 = vld [vmem:[%s410 + $0x20] sm:$0xff]
        %v485 = vld [vmem:[%s410 + $0x28] sm:$0xff]
        %v486 = vld [vmem:[%s410 + $0x30] sm:$0xff]
        %v487 = vld [vmem:[%s410 + $0x38] sm:$0xff]
        %v488 = vld [vmem:[%s410 + $0x40] sm:$0xff]
        %v489 = vld [vmem:[%s410 + $0x48] sm:$0xff]
        %v490 = vld [vmem:[%s410 + $0x50] sm:$0xff]
        %v491 = vld [vmem:[%s410 + $0x58] sm:$0xff]
        %v492 = vld [vmem:[%s410 + $0x60] sm:$0xff]
        %v493 = vld [vmem:[%s410 + $0x68] sm:$0xff]
        %v494 = vld [vmem:[%s410 + $0x70] sm:$0xff]
        %v495 = vld [vmem:[%s410 + $0x78] sm:$0xff]
        %v496 = vld [vmem:[%s410 + $0x80] sm:$0xff]
        %v497 = vld [vmem:[%s410 + $0x88] sm:$0xff]
        %v498 = vld [vmem:[%s410 + $0x90] sm:$0xff]
        %v499 = vld [vmem:[%s410 + $0x98] sm:$0xff]
        %v500 = vld [vmem:[%s410 + $0xa0] sm:$0xff]
        %v501 = vld [vmem:[%s410 + $0xa8] sm:$0xff]
        %v502 = vld [vmem:[%s410 + $0xb0] sm:$0xff]
        %v503 = vld [vmem:[%s410 + $0xb8] sm:$0xff]
        %v504 = vld [vmem:[%s410 + $0xc0] sm:$0xff]
        %v505 = vld [vmem:[%s410 + $0xc8] sm:$0xff]
        %v506 = vld [vmem:[%s410 + $0xd0] sm:$0xff]
        %v507 = vld [vmem:[%s410 + $0xd8] sm:$0xff]
        %v508 = vld [vmem:[%s410 + $0xe0] sm:$0xff]
        %v509 = vld [vmem:[%s410 + $0xe8] sm:$0xff]
        %v510 = vld [vmem:[%s410 + $0xf0] sm:$0xff]
        %v511 = vld [vmem:[%s410 + $0xf8] sm:$0xff]
        %v512 = vld [vmem:[#allocation7] sm:$0xff]
        %v513 = vld [vmem:[#allocation7 + $0x8] sm:$0xff]
        %v514 = vld [vmem:[#allocation7 + $0x10] sm:$0xff]
        %v515 = vld [vmem:[#allocation7 + $0x18] sm:$0xff]
        %v516 = vld [vmem:[#allocation7 + $0x20] sm:$0xff]
        %v517 = vld [vmem:[#allocation7 + $0x28] sm:$0xff]
        %v518 = vld [vmem:[#allocation7 + $0x30] sm:$0xff]
        %v519 = vld [vmem:[#allocation7 + $0x38] sm:$0xff]
        %v520 = vld [vmem:[#allocation7 + $0x40] sm:$0xff]
        %v521 = vld [vmem:[#allocation7 + $0x48] sm:$0xff]
        %v522 = vld [vmem:[#allocation7 + $0x50] sm:$0xff]
        %v523 = vld [vmem:[#allocation7 + $0x58] sm:$0xff]
        %v524 = vld [vmem:[#allocation7 + $0x60] sm:$0xff]
        %v525 = vld [vmem:[#allocation7 + $0x68] sm:$0xff]
        %v526 = vld [vmem:[#allocation7 + $0x70] sm:$0xff]
        %v527 = vld [vmem:[#allocation7 + $0x78] sm:$0xff]
        %v528 = vld [vmem:[#allocation7 + $0x80] sm:$0xff]
        %v529 = vld [vmem:[#allocation7 + $0x88] sm:$0xff]
        %v530 = vld [vmem:[#allocation7 + $0x90] sm:$0xff]
        %v531 = vld [vmem:[#allocation7 + $0x98] sm:$0xff]
        %v532 = vld [vmem:[#allocation7 + $0xa0] sm:$0xff]
        %v533 = vld [vmem:[#allocation7 + $0xa8] sm:$0xff]
        %v534 = vld [vmem:[#allocation7 + $0xb0] sm:$0xff]
        %v535 = vld [vmem:[#allocation7 + $0xb8] sm:$0xff]
        %v536 = vld [vmem:[#allocation7 + $0xc0] sm:$0xff]
        %v537 = vld [vmem:[#allocation7 + $0xc8] sm:$0xff]
        %v538 = vld [vmem:[#allocation7 + $0xd0] sm:$0xff]
        %v539 = vld [vmem:[#allocation7 + $0xd8] sm:$0xff]
        %v540 = vld [vmem:[#allocation7 + $0xe0] sm:$0xff]
        %v541 = vld [vmem:[#allocation7 + $0xe8] sm:$0xff]
        %v542 = vld [vmem:[#allocation7 + $0xf0] sm:$0xff]
        %v543 = vld [vmem:[#allocation7 + $0xf8] sm:$0xff]
        %v544 = vld [vmem:[%s3] sm:$0x3]
        %v546 = vlaneseq
        %v547 = vshrl.u32 %v546, 7
        %v548 = vsub.s32 0, %v547
        %v549 = vrot.slane %v544, %v548
        %v550 = vlaneseq
        %v551 = vshrl.u32 %v550, 7
        %v552 = vsub.s32 1, %v551
        %v553 = vrot.slane %v544, %v552
        %556 = vmatprep.subr.mxu0 %v513
        %557 = vmatpush1.msra.mxu0 %v512
        %558 = vmatprep.subr.mxu0 %v515
        %559 = vmatpush1.msra.mxu0 %v514
        %560 = vmatprep.subr.mxu0 %v517
        %561 = vmatpush1.msra.mxu0 %v516
        %562 = vmatprep.subr.mxu0 %v519
        %563 = vmatpush1.msra.mxu0 %v518
        %564 = vmatprep.subr.mxu0 %v521
        %565 = vmatpush1.msra.mxu0 %v520
        %566 = vmatprep.subr.mxu0 %v523
        %567 = vmatpush1.msra.mxu0 %v522
        %568 = vmatprep.subr.mxu0 %v525
        %569 = vmatpush1.msra.mxu0 %v524
        %570 = vmatprep.subr.mxu0 %v527
        %571 = vmatpush1.msra.mxu0 %v526
        %572 = vmatprep.subr.mxu0 %v529
        %573 = vmatpush1.msra.mxu0 %v528
        %574 = vmatprep.subr.mxu0 %v531
        %575 = vmatpush1.msra.mxu0 %v530
        %576 = vmatprep.subr.mxu0 %v533
        %577 = vmatpush1.msra.mxu0 %v532
        %578 = vmatprep.subr.mxu0 %v535
        %579 = vmatpush1.msra.mxu0 %v534
        %580 = vmatprep.subr.mxu0 %v537
        %581 = vmatpush1.msra.mxu0 %v536
        %582 = vmatprep.subr.mxu0 %v539
        %583 = vmatpush1.msra.mxu0 %v538
        %584 = vmatprep.subr.mxu0 %v541
        %585 = vmatpush1.msra.mxu0 %v540
        %586 = vmatprep.subr.mxu0 %v543
        %587 = vmatpush1.msra.mxu0 %v542
        %588 = vmatprep.subr.mxu0 0.0
        %589 = vmatpush1.msra.mxu0 0.0
        %590 = vmatprep.subr.mxu0 0.0
        %591 = vmatpush1.msra.mxu0 0.0
        %592 = vmatprep.subr.mxu0 0.0
        %593 = vmatpush1.msra.mxu0 0.0
        %594 = vmatprep.subr.mxu0 0.0
        %595 = vmatpush1.msra.mxu0 0.0
        %596 = vmatprep.subr.mxu0 0.0
        %597 = vmatpush1.msra.mxu0 0.0
        %598 = vmatprep.subr.mxu0 0.0
        %599 = vmatpush1.msra.mxu0 0.0
        %600 = vmatprep.subr.mxu0 0.0
        %601 = vmatpush1.msra.mxu0 0.0
        %602 = vmatprep.subr.mxu0 0.0
        %603 = vmatpush1.msra.mxu0 0.0
        %604 = vmatprep.subr.mxu0 0.0
        %605 = vmatpush1.msra.mxu0 0.0
        %606 = vmatprep.subr.mxu0 0.0
        %607 = vmatpush1.msra.mxu0 0.0
        %608 = vmatprep.subr.mxu0 0.0
        %609 = vmatpush1.msra.mxu0 0.0
        %610 = vmatprep.subr.mxu0 0.0
        %611 = vmatpush1.msra.mxu0 0.0
        %612 = vmatprep.subr.mxu0 0.0
        %613 = vmatpush1.msra.mxu0 0.0
        %614 = vmatprep.subr.mxu0 0.0
        %615 = vmatpush1.msra.mxu0 0.0
        %616 = vmatprep.subr.mxu0 0.0
        %617 = vmatpush1.msra.mxu0 0.0
        %618 = vmatprep.subr.mxu0 0.0
        %619 = vmatpush1.msra.mxu0 0.0
        %620 = vmatprep.mubr.f32.mxu0 0.0
        %621 = vmatmul.mubr.f32.gmra.mrb[0].mxu0 %v480
        %v622 = vpop.f32.mrb[0].mxu0
        %v623 = vadd.f32 %v549, %v622
        %v624 = vpop.f32.mrb[0].mxu0
        %v625 = vadd.f32 %v553, %v624
        %626 = vmatprep.mubr.f32.mxu0 0.0
        %627 = vmatmul.mubr.f32.gmra.mrb[0].mxu0 %v481
        %v628 = vpop.f32.mrb[0].mxu0
        %v629 = vadd.f32 %v549, %v628
        %v630 = vpop.f32.mrb[0].mxu0
        %v631 = vadd.f32 %v553, %v630
        %632 = vmatprep.mubr.f32.mxu0 0.0
        %633 = vmatmul.mubr.f32.gmra.mrb[0].mxu0 %v482
        %v634 = vpop.f32.mrb[0].mxu0
        %v635 = vadd.f32 %v549, %v634
        %v636 = vpop.f32.mrb[0].mxu0
        %v637 = vadd.f32 %v553, %v636
        %638 = vmatprep.mubr.f32.mxu0 0.0
        %639 = vmatmul.mubr.f32.gmra.mrb[0].mxu0 %v483
        %v640 = vpop.f32.mrb[0].mxu0
        %v641 = vadd.f32 %v549, %v640
        %v642 = vpop.f32.mrb[0].mxu0
        %v643 = vadd.f32 %v553, %v642
        %644 = vmatprep.mubr.f32.mxu0 0.0
        %645 = vmatmul.mubr.f32.gmra.mrb[0].mxu0 %v484
        %v646 = vpop.f32.mrb[0].mxu0
        %v647 = vadd.f32 %v549, %v646
        %v648 = vpop.f32.mrb[0].mxu0
        %v649 = vadd.f32 %v553, %v648
        %650 = vmatprep.mubr.f32.mxu0 0.0
        %651 = vmatmul.mubr.f32.gmra.mrb[0].mxu0 %v485
        %v652 = vpop.f32.mrb[0].mxu0
        %v653 = vadd.f32 %v549, %v652
        %v654 = vpop.f32.mrb[0].mxu0
        %v655 = vadd.f32 %v553, %v654
        %656 = vmatprep.mubr.f32.mxu0 0.0
        %657 = vmatmul.mubr.f32.gmra.mrb[0].mxu0 %v486
        %v658 = vpop.f32.mrb[0].mxu0
        %v659 = vadd.f32 %v549, %v658
        %v660 = vpop.f32.mrb[0].mxu0
        %v661 = vadd.f32 %v553, %v660
        %662 = vmatprep.mubr.f32.mxu0 0.0
        %663 = vmatmul.mubr.f32.gmra.mrb[0].mxu0 %v487
        %v664 = vpop.f32.mrb[0].mxu0
        %v665 = vadd.f32 %v549, %v664
        %v666 = vpop.f32.mrb[0].mxu0
        %v667 = vadd.f32 %v553, %v666
        %668 = vmatprep.mubr.f32.mxu0 0.0
        %669 = vmatmul.mubr.f32.gmra.mrb[0].mxu0 %v488
        %v670 = vpop.f32.mrb[0].mxu0
        %v671 = vadd.f32 %v549, %v670
        %v672 = vpop.f32.mrb[0].mxu0
        %v673 = vadd.f32 %v553, %v672
        %674 = vmatprep.mubr.f32.mxu0 0.0
        %675 = vmatmul.mubr.f32.gmra.mrb[0].mxu0 %v489
        %v676 = vpop.f32.mrb[0].mxu0
        %v677 = vadd.f32 %v549, %v676
        %v678 = vpop.f32.mrb[0].mxu0
        %v679 = vadd.f32 %v553, %v678
        %680 = vmatprep.mubr.f32.mxu0 0.0
        %681 = vmatmul.mubr.f32.gmra.mrb[0].mxu0 %v490
        %v682 = vpop.f32.mrb[0].mxu0
        %v683 = vadd.f32 %v549, %v682
        %v684 = vpop.f32.mrb[0].mxu0
        %v685 = vadd.f32 %v553, %v684
        %686 = vmatprep.mubr.f32.mxu0 0.0
        %687 = vmatmul.mubr.f32.gmra.mrb[0].mxu0 %v491
        %v688 = vpop.f32.mrb[0].mxu0
        %v689 = vadd.f32 %v549, %v688
        %v690 = vpop.f32.mrb[0].mxu0
        %v691 = vadd.f32 %v553, %v690
        %692 = vmatprep.mubr.f32.mxu0 0.0
        %693 = vmatmul.mubr.f32.gmra.mrb[0].mxu0 %v492
        %v694 = vpop.f32.mrb[0].mxu0
        %v695 = vadd.f32 %v549, %v694
        %v696 = vpop.f32.mrb[0].mxu0
        %v697 = vadd.f32 %v553, %v696
        %698 = vmatprep.mubr.f32.mxu0 0.0
        %699 = vmatmul.mubr.f32.gmra.mrb[0].mxu0 %v493
        %v700 = vpop.f32.mrb[0].mxu0
        %v701 = vadd.f32 %v549, %v700
        %v702 = vpop.f32.mrb[0].mxu0
        %v703 = vadd.f32 %v553, %v702
        %704 = vmatprep.mubr.f32.mxu0 0.0
        %705 = vmatmul.mubr.f32.gmra.mrb[0].mxu0 %v494
        %v706 = vpop.f32.mrb[0].mxu0
        %v707 = vadd.f32 %v549, %v706
        %v708 = vpop.f32.mrb[0].mxu0
        %v709 = vadd.f32 %v553, %v708
        %710 = vmatprep.mubr.f32.mxu0 0.0
        %711 = vmatmul.mubr.f32.gmra.mrb[0].mxu0 %v495
        %v712 = vpop.f32.mrb[0].mxu0
        %v713 = vadd.f32 %v549, %v712
        %v714 = vpop.f32.mrb[0].mxu0
        %v715 = vadd.f32 %v553, %v714
        %716 = vmatprep.mubr.f32.mxu0 0.0
        %717 = vmatmul.mubr.f32.gmra.mrb[0].mxu0 %v496
        %v718 = vpop.f32.mrb[0].mxu0
        %v719 = vadd.f32 %v549, %v718
        %v720 = vpop.f32.mrb[0].mxu0
        %v721 = vadd.f32 %v553, %v720
        %722 = vmatprep.mubr.f32.mxu0 0.0
        %723 = vmatmul.mubr.f32.gmra.mrb[0].mxu0 %v497
        %v724 = vpop.f32.mrb[0].mxu0
        %v725 = vadd.f32 %v549, %v724
        %v726 = vpop.f32.mrb[0].mxu0
        %v727 = vadd.f32 %v553, %v726
        %728 = vmatprep.mubr.f32.mxu0 0.0
        %729 = vmatmul.mubr.f32.gmra.mrb[0].mxu0 %v498
        %v730 = vpop.f32.mrb[0].mxu0
        %v731 = vadd.f32 %v549, %v730
        %v732 = vpop.f32.mrb[0].mxu0
        %v733 = vadd.f32 %v553, %v732
        %734 = vmatprep.mubr.f32.mxu0 0.0
        %735 = vmatmul.mubr.f32.gmra.mrb[0].mxu0 %v499
        %v736 = vpop.f32.mrb[0].mxu0
        %v737 = vadd.f32 %v549, %v736
        %v738 = vpop.f32.mrb[0].mxu0
        %v739 = vadd.f32 %v553, %v738
        %740 = vmatprep.mubr.f32.mxu0 0.0
        %741 = vmatmul.mubr.f32.gmra.mrb[0].mxu0 %v500
        %v742 = vpop.f32.mrb[0].mxu0
        %v743 = vadd.f32 %v549, %v742
        %v744 = vpop.f32.mrb[0].mxu0
        %v745 = vadd.f32 %v553, %v744
        %746 = vmatprep.mubr.f32.mxu0 0.0
        %747 = vmatmul.mubr.f32.gmra.mrb[0].mxu0 %v501
        %v748 = vpop.f32.mrb[0].mxu0
        %v749 = vadd.f32 %v549, %v748
        %v750 = vpop.f32.mrb[0].mxu0
        %v751 = vadd.f32 %v553, %v750
        %752 = vmatprep.mubr.f32.mxu0 0.0
        %753 = vmatmul.mubr.f32.gmra.mrb[0].mxu0 %v502
        %v754 = vpop.f32.mrb[0].mxu0
        %v755 = vadd.f32 %v549, %v754
        %v756 = vpop.f32.mrb[0].mxu0
        %v757 = vadd.f32 %v553, %v756
        %758 = vmatprep.mubr.f32.mxu0 0.0
        %759 = vmatmul.mubr.f32.gmra.mrb[0].mxu0 %v503
        %v760 = vpop.f32.mrb[0].mxu0
        %v761 = vadd.f32 %v549, %v760
        %v762 = vpop.f32.mrb[0].mxu0
        %v763 = vadd.f32 %v553, %v762
        %764 = vmatprep.mubr.f32.mxu0 0.0
        %765 = vmatmul.mubr.f32.gmra.mrb[0].mxu0 %v504
        %v766 = vpop.f32.mrb[0].mxu0
        %v767 = vadd.f32 %v549, %v766
        %v768 = vpop.f32.mrb[0].mxu0
        %v769 = vadd.f32 %v553, %v768
        %770 = vmatprep.mubr.f32.mxu0 0.0
        %771 = vmatmul.mubr.f32.gmra.mrb[0].mxu0 %v505
        %v772 = vpop.f32.mrb[0].mxu0
        %v773 = vadd.f32 %v549, %v772
        %v774 = vpop.f32.mrb[0].mxu0
        %v775 = vadd.f32 %v553, %v774
        %776 = vmatprep.mubr.f32.mxu0 0.0
        %777 = vmatmul.mubr.f32.gmra.mrb[0].mxu0 %v506
        %v778 = vpop.f32.mrb[0].mxu0
        %v779 = vadd.f32 %v549, %v778
        %v780 = vpop.f32.mrb[0].mxu0
        %v781 = vadd.f32 %v553, %v780
        %782 = vmatprep.mubr.f32.mxu0 0.0
        %783 = vmatmul.mubr.f32.gmra.mrb[0].mxu0 %v507
        %v784 = vpop.f32.mrb[0].mxu0
        %v785 = vadd.f32 %v549, %v784
        %v786 = vpop.f32.mrb[0].mxu0
        %v787 = vadd.f32 %v553, %v786
        %788 = vmatprep.mubr.f32.mxu0 0.0
        %789 = vmatmul.mubr.f32.gmra.mrb[0].mxu0 %v508
        %v790 = vpop.f32.mrb[0].mxu0
        %v791 = vadd.f32 %v549, %v790
        %v792 = vpop.f32.mrb[0].mxu0
        %v793 = vadd.f32 %v553, %v792
        %794 = vmatprep.mubr.f32.mxu0 0.0
        %795 = vmatmul.mubr.f32.gmra.mrb[0].mxu0 %v509
        %v796 = vpop.f32.mrb[0].mxu0
        %v797 = vadd.f32 %v549, %v796
        %v798 = vpop.f32.mrb[0].mxu0
        %v799 = vadd.f32 %v553, %v798
        %800 = vmatprep.mubr.f32.mxu0 0.0
        %801 = vmatmul.mubr.f32.gmra.mrb[0].mxu0 %v510
        %v802 = vpop.f32.mrb[0].mxu0
        %v803 = vadd.f32 %v549, %v802
        %v804 = vpop.f32.mrb[0].mxu0
        %v805 = vadd.f32 %v553, %v804
        %806 = vmatprep.mubr.f32.mxu0 0.0
        %807 = vmatmul.mubr.f32.gmra.mrb[0].mxu0 %v511
        %v808 = vpop.f32.mrb[0].mxu0
        %v809 = vadd.f32 %v549, %v808
        %v810 = vpop.f32.mrb[0].mxu0
        %v811 = vadd.f32 %v553, %v810
        %812 = vdwg.mxu0
        %v813 = vld [vmem:[%s4] sm:$0xff]
        %v814 = vld [vmem:[%s4 + $0x8] sm:$0xff]
        %v815 = vld [vmem:[%s4 + $0x10] sm:$0xff]
        %v816 = vld [vmem:[%s4 + $0x18] sm:$0xff]
        %v817 = vld [vmem:[%s4 + $0x20] sm:$0xff]
        %v818 = vld [vmem:[%s4 + $0x28] sm:$0xff]
        %v819 = vld [vmem:[%s4 + $0x30] sm:$0xff]
        %v820 = vld [vmem:[%s4 + $0x38] sm:$0xff]
        %v821 = vld [vmem:[%s4 + $0x40] sm:$0xff]
        %v822 = vld [vmem:[%s4 + $0x48] sm:$0xff]
        %v823 = vld [vmem:[%s4 + $0x50] sm:$0xff]
        %v824 = vld [vmem:[%s4 + $0x58] sm:$0xff]
        %v825 = vld [vmem:[%s4 + $0x60] sm:$0xff]
        %v826 = vld [vmem:[%s4 + $0x68] sm:$0xff]
        %v827 = vld [vmem:[%s4 + $0x70] sm:$0xff]
        %v828 = vld [vmem:[%s4 + $0x78] sm:$0xff]
        %v829 = vld [vmem:[%s419] sm:$0xff]
        %v830 = vld [vmem:[%s419 + $0x8] sm:$0xff]
        %v831 = vld [vmem:[%s419 + $0x10] sm:$0xff]
        %v832 = vld [vmem:[%s419 + $0x18] sm:$0xff]
        %v833 = vld [vmem:[%s419 + $0x20] sm:$0xff]
        %v834 = vld [vmem:[%s419 + $0x28] sm:$0xff]
        %v835 = vld [vmem:[%s419 + $0x30] sm:$0xff]
        %v836 = vld [vmem:[%s419 + $0x38] sm:$0xff]
        %v837 = vld [vmem:[%s419 + $0x40] sm:$0xff]
        %v838 = vld [vmem:[%s419 + $0x48] sm:$0xff]
        %v839 = vld [vmem:[%s419 + $0x50] sm:$0xff]
        %v840 = vld [vmem:[%s419 + $0x58] sm:$0xff]
        %v841 = vld [vmem:[%s419 + $0x60] sm:$0xff]
        %v842 = vld [vmem:[%s419 + $0x68] sm:$0xff]
        %v843 = vld [vmem:[%s419 + $0x70] sm:$0xff]
        %v844 = vld [vmem:[%s419 + $0x78] sm:$0xff]
        %v845 = vld [vmem:[%s5] sm:$0xff]
        %v846 = vld [vmem:[%s5 + $0x8] sm:$0xff]
        %v847 = vld [vmem:[%s5 + $0x10] sm:$0xff]
        %v848 = vld [vmem:[%s5 + $0x18] sm:$0xff]
        %v849 = vld [vmem:[%s5 + $0x20] sm:$0xff]
        %v850 = vld [vmem:[%s5 + $0x28] sm:$0xff]
        %v851 = vld [vmem:[%s5 + $0x30] sm:$0xff]
        %v852 = vld [vmem:[%s5 + $0x38] sm:$0xff]
        %v853 = vld [vmem:[%s5 + $0x40] sm:$0xff]
        %v854 = vld [vmem:[%s5 + $0x48] sm:$0xff]
        %v855 = vld [vmem:[%s5 + $0x50] sm:$0xff]
        %v856 = vld [vmem:[%s5 + $0x58] sm:$0xff]
        %v857 = vld [vmem:[%s5 + $0x60] sm:$0xff]
        %v858 = vld [vmem:[%s5 + $0x68] sm:$0xff]
        %v859 = vld [vmem:[%s5 + $0x70] sm:$0xff]
        %v860 = vld [vmem:[%s5 + $0x78] sm:$0xff]
        %862 = vset.pattern.permute.xlu0 0
        %863 = vperm.xlu0 %862, %v845
        %v864 = vpop.permute.xlu0 %863
        %867 = vset.pattern.permute.xlu0 0
        %868 = vperm.xlu0 %867, %v846
        %v869 = vpop.permute.xlu0 %868
        %872 = vset.pattern.permute.xlu0 0
        %873 = vperm.xlu0 %872, %v847
        %v874 = vpop.permute.xlu0 %873
        %877 = vset.pattern.permute.xlu0 0
        %878 = vperm.xlu0 %877, %v848
        %v879 = vpop.permute.xlu0 %878
        %882 = vset.pattern.permute.xlu0 0
        %883 = vperm.xlu0 %882, %v849
        %v884 = vpop.permute.xlu0 %883
        %887 = vset.pattern.permute.xlu0 0
        %888 = vperm.xlu0 %887, %v850
        %v889 = vpop.permute.xlu0 %888
        %892 = vset.pattern.permute.xlu0 0
        %893 = vperm.xlu0 %892, %v851
        %v894 = vpop.permute.xlu0 %893
        %897 = vset.pattern.permute.xlu0 0
        %898 = vperm.xlu0 %897, %v852
        %v899 = vpop.permute.xlu0 %898
        %902 = vset.pattern.permute.xlu0 0
        %903 = vperm.xlu0 %902, %v853
        %v904 = vpop.permute.xlu0 %903
        %907 = vset.pattern.permute.xlu0 0
        %908 = vperm.xlu0 %907, %v854
        %v909 = vpop.permute.xlu0 %908
        %912 = vset.pattern.permute.xlu0 0
        %913 = vperm.xlu0 %912, %v855
        %v914 = vpop.permute.xlu0 %913
        %917 = vset.pattern.permute.xlu0 0
        %918 = vperm.xlu0 %917, %v856
        %v919 = vpop.permute.xlu0 %918
        %922 = vset.pattern.permute.xlu0 0
        %923 = vperm.xlu0 %922, %v857
        %v924 = vpop.permute.xlu0 %923
        %927 = vset.pattern.permute.xlu0 0
        %928 = vperm.xlu0 %927, %v858
        %v929 = vpop.permute.xlu0 %928
        %932 = vset.pattern.permute.xlu0 0
        %933 = vperm.xlu0 %932, %v859
        %v934 = vpop.permute.xlu0 %933
        %937 = vset.pattern.permute.xlu0 0
        %938 = vperm.xlu0 %937, %v860
        %v939 = vpop.permute.xlu0 %938
        %941 = vmatprep.subr.mxu0 0.0
        %942 = vmatpush1.msra.mxu0 %v829
        %943 = vmatprep.subr.mxu0 0.0
        %944 = vmatpush1.msra.mxu0 %v830
        %945 = vmatprep.subr.mxu0 0.0
        %946 = vmatpush1.msra.mxu0 %v831
        %947 = vmatprep.subr.mxu0 0.0
        %948 = vmatpush1.msra.mxu0 %v832
        %949 = vmatprep.subr.mxu0 0.0
        %950 = vmatpush1.msra.mxu0 %v833
        %951 = vmatprep.subr.mxu0 0.0
        %952 = vmatpush1.msra.mxu0 %v834
        %953 = vmatprep.subr.mxu0 0.0
        %954 = vmatpush1.msra.mxu0 %v835
        %955 = vmatprep.subr.mxu0 0.0
        %956 = vmatpush1.msra.mxu0 %v836
        %957 = vmatprep.subr.mxu0 0.0
        %958 = vmatpush1.msra.mxu0 %v837
        %959 = vmatprep.subr.mxu0 0.0
        %960 = vmatpush1.msra.mxu0 %v838
        %961 = vmatprep.subr.mxu0 0.0
        %962 = vmatpush1.msra.mxu0 %v839
        %963 = vmatprep.subr.mxu0 0.0
        %964 = vmatpush1.msra.mxu0 %v840
        %965 = vmatprep.subr.mxu0 0.0
        %966 = vmatpush1.msra.mxu0 %v841
        %967 = vmatprep.subr.mxu0 0.0
        %968 = vmatpush1.msra.mxu0 %v842
        %969 = vmatprep.subr.mxu0 0.0
        %970 = vmatpush1.msra.mxu0 %v843
        %971 = vmatprep.subr.mxu0 0.0
        %972 = vmatpush1.msra.mxu0 %v844
        %973 = vmatprep.subr.mxu0 0.0
        %974 = vmatpush1.msra.mxu0 0.0
        %975 = vmatprep.subr.mxu0 0.0
        %976 = vmatpush1.msra.mxu0 0.0
        %977 = vmatprep.subr.mxu0 0.0
        %978 = vmatpush1.msra.mxu0 0.0
        %979 = vmatprep.subr.mxu0 0.0
        %980 = vmatpush1.msra.mxu0 0.0
        %981 = vmatprep.subr.mxu0 0.0
        %982 = vmatpush1.msra.mxu0 0.0
        %983 = vmatprep.subr.mxu0 0.0
        %984 = vmatpush1.msra.mxu0 0.0
        %985 = vmatprep.subr.mxu0 0.0
        %986 = vmatpush1.msra.mxu0 0.0
        %987 = vmatprep.subr.mxu0 0.0
        %988 = vmatpush1.msra.mxu0 0.0
        %989 = vmatprep.subr.mxu0 0.0
        %990 = vmatpush1.msra.mxu0 0.0
        %991 = vmatprep.subr.mxu0 0.0
        %992 = vmatpush1.msra.mxu0 0.0
        %993 = vmatprep.subr.mxu0 0.0
        %994 = vmatpush1.msra.mxu0 0.0
        %995 = vmatprep.subr.mxu0 0.0
        %996 = vmatpush1.msra.mxu0 0.0
        %997 = vmatprep.subr.mxu0 0.0
        %998 = vmatpush1.msra.mxu0 0.0
        %999 = vmatprep.subr.mxu0 0.0
        %1000 = vmatpush1.msra.mxu0 0.0
        %1001 = vmatprep.subr.mxu0 0.0
        %1002 = vmatpush1.msra.mxu0 0.0
        %1003 = vmatprep.subr.mxu0 0.0
        %1004 = vmatpush1.msra.mxu0 0.0
        %1005 = vmatprep.mubr.f32.mxu0 0.0
        %1006 = vmatmul.mubr.f32.gmra.mrb[0].mxu0 %v813
        %v1007 = vpop.f32.mrb[0].mxu0
        %v1008 = vadd.f32 %v864, %v1007
        %v1009 = vpop.f32.mrb[0].mxu0
        %1010 = vmatprep.mubr.f32.mxu0 0.0
        %1011 = vmatmul.mubr.f32.gmra.mrb[0].mxu0 %v814
        %v1012 = vpop.f32.mrb[0].mxu0
        %v1013 = vadd.f32 %v869, %v1012
        %v1014 = vpop.f32.mrb[0].mxu0
        %1015 = vmatprep.mubr.f32.mxu0 0.0
        %1016 = vmatmul.mubr.f32.gmra.mrb[0].mxu0 %v815
        %v1017 = vpop.f32.mrb[0].mxu0
        %v1018 = vadd.f32 %v874, %v1017
        %v1019 = vpop.f32.mrb[0].mxu0
        %1020 = vmatprep.mubr.f32.mxu0 0.0
        %1021 = vmatmul.mubr.f32.gmra.mrb[0].mxu0 %v816
        %v1022 = vpop.f32.mrb[0].mxu0
        %v1023 = vadd.f32 %v879, %v1022
        %v1024 = vpop.f32.mrb[0].mxu0
        %1025 = vmatprep.mubr.f32.mxu0 0.0
        %1026 = vmatmul.mubr.f32.gmra.mrb[0].mxu0 %v817
        %v1027 = vpop.f32.mrb[0].mxu0
        %v1028 = vadd.f32 %v884, %v1027
        %v1029 = vpop.f32.mrb[0].mxu0
        %1030 = vmatprep.mubr.f32.mxu0 0.0
        %1031 = vmatmul.mubr.f32.gmra.mrb[0].mxu0 %v818
        %v1032 = vpop.f32.mrb[0].mxu0
        %v1033 = vadd.f32 %v889, %v1032
        %v1034 = vpop.f32.mrb[0].mxu0
        %1035 = vmatprep.mubr.f32.mxu0 0.0
        %1036 = vmatmul.mubr.f32.gmra.mrb[0].mxu0 %v819
        %v1037 = vpop.f32.mrb[0].mxu0
        %v1038 = vadd.f32 %v894, %v1037
        %v1039 = vpop.f32.mrb[0].mxu0
        %1040 = vmatprep.mubr.f32.mxu0 0.0
        %1041 = vmatmul.mubr.f32.gmra.mrb[0].mxu0 %v820
        %v1042 = vpop.f32.mrb[0].mxu0
        %v1043 = vadd.f32 %v899, %v1042
        %v1044 = vpop.f32.mrb[0].mxu0
        %1045 = vmatprep.mubr.f32.mxu0 0.0
        %1046 = vmatmul.mubr.f32.gmra.mrb[0].mxu0 %v821
        %v1047 = vpop.f32.mrb[0].mxu0
        %v1048 = vadd.f32 %v904, %v1047
        %v1049 = vpop.f32.mrb[0].mxu0
        %1050 = vmatprep.mubr.f32.mxu0 0.0
        %1051 = vmatmul.mubr.f32.gmra.mrb[0].mxu0 %v822
        %v1052 = vpop.f32.mrb[0].mxu0
        %v1053 = vadd.f32 %v909, %v1052
        %v1054 = vpop.f32.mrb[0].mxu0
        %1055 = vmatprep.mubr.f32.mxu0 0.0
        %1056 = vmatmul.mubr.f32.gmra.mrb[0].mxu0 %v823
        %v1057 = vpop.f32.mrb[0].mxu0
        %v1058 = vadd.f32 %v914, %v1057
        %v1059 = vpop.f32.mrb[0].mxu0
        %1060 = vmatprep.mubr.f32.mxu0 0.0
        %1061 = vmatmul.mubr.f32.gmra.mrb[0].mxu0 %v824
        %v1062 = vpop.f32.mrb[0].mxu0
        %v1063 = vadd.f32 %v919, %v1062
        %v1064 = vpop.f32.mrb[0].mxu0
        %1065 = vmatprep.mubr.f32.mxu0 0.0
        %1066 = vmatmul.mubr.f32.gmra.mrb[0].mxu0 %v825
        %v1067 = vpop.f32.mrb[0].mxu0
        %v1068 = vadd.f32 %v924, %v1067
        %v1069 = vpop.f32.mrb[0].mxu0
        %1070 = vmatprep.mubr.f32.mxu0 0.0
        %1071 = vmatmul.mubr.f32.gmra.mrb[0].mxu0 %v826
        %v1072 = vpop.f32.mrb[0].mxu0
        %v1073 = vadd.f32 %v929, %v1072
        %v1074 = vpop.f32.mrb[0].mxu0
        %1075 = vmatprep.mubr.f32.mxu0 0.0
        %1076 = vmatmul.mubr.f32.gmra.mrb[0].mxu0 %v827
        %v1077 = vpop.f32.mrb[0].mxu0
        %v1078 = vadd.f32 %v934, %v1077
        %v1079 = vpop.f32.mrb[0].mxu0
        %1080 = vmatprep.mubr.f32.mxu0 0.0
        %1081 = vmatmul.mubr.f32.gmra.mrb[0].mxu0 %v828
        %v1082 = vpop.f32.mrb[0].mxu0
        %v1083 = vadd.f32 %v939, %v1082
        %v1084 = vpop.f32.mrb[0].mxu0
        %1085 = vdwg.mxu0
        %1086 = vmatprep.subr.mxu0 0.0
        %1087 = vmatpush1.msra.mxu0 %v1008
        %1088 = vmatprep.subr.mxu0 0.0
        %1089 = vmatpush1.msra.mxu0 %v1013
        %1090 = vmatprep.subr.mxu0 0.0
        %1091 = vmatpush1.msra.mxu0 %v1018
        %1092 = vmatprep.subr.mxu0 0.0
        %1093 = vmatpush1.msra.mxu0 %v1023
        %1094 = vmatprep.subr.mxu0 0.0
        %1095 = vmatpush1.msra.mxu0 %v1028
        %1096 = vmatprep.subr.mxu0 0.0
        %1097 = vmatpush1.msra.mxu0 %v1033
        %1098 = vmatprep.subr.mxu0 0.0
        %1099 = vmatpush1.msra.mxu0 %v1038
        %1100 = vmatprep.subr.mxu0 0.0
        %1101 = vmatpush1.msra.mxu0 %v1043
        %1102 = vmatprep.subr.mxu0 0.0
        %1103 = vmatpush1.msra.mxu0 %v1048
        %1104 = vmatprep.subr.mxu0 0.0
        %1105 = vmatpush1.msra.mxu0 %v1053
        %1106 = vmatprep.subr.mxu0 0.0
        %1107 = vmatpush1.msra.mxu0 %v1058
        %1108 = vmatprep.subr.mxu0 0.0
        %1109 = vmatpush1.msra.mxu0 %v1063
        %1110 = vmatprep.subr.mxu0 0.0
        %1111 = vmatpush1.msra.mxu0 %v1068
        %1112 = vmatprep.subr.mxu0 0.0
        %1113 = vmatpush1.msra.mxu0 %v1073
        %1114 = vmatprep.subr.mxu0 0.0
        %1115 = vmatpush1.msra.mxu0 %v1078
        %1116 = vmatprep.subr.mxu0 0.0
        %1117 = vmatpush1.msra.mxu0 %v1083
        %1118 = vmatprep.subr.mxu0 0.0
        %1119 = vmatpush1.msra.mxu0 0.0
        %1120 = vmatprep.subr.mxu0 0.0
        %1121 = vmatpush1.msra.mxu0 0.0
        %1122 = vmatprep.subr.mxu0 0.0
        %1123 = vmatpush1.msra.mxu0 0.0
        %1124 = vmatprep.subr.mxu0 0.0
        %1125 = vmatpush1.msra.mxu0 0.0
        %1126 = vmatprep.subr.mxu0 0.0
        %1127 = vmatpush1.msra.mxu0 0.0
        %1128 = vmatprep.subr.mxu0 0.0
        %1129 = vmatpush1.msra.mxu0 0.0
        %1130 = vmatprep.subr.mxu0 0.0
        %1131 = vmatpush1.msra.mxu0 0.0
        %1132 = vmatprep.subr.mxu0 0.0
        %1133 = vmatpush1.msra.mxu0 0.0
        %1134 = vmatprep.subr.mxu0 0.0
        %1135 = vmatpush1.msra.mxu0 0.0
        %1136 = vmatprep.subr.mxu0 0.0
        %1137 = vmatpush1.msra.mxu0 0.0
        %1138 = vmatprep.subr.mxu0 0.0
        %1139 = vmatpush1.msra.mxu0 0.0
        %1140 = vmatprep.subr.mxu0 0.0
        %1141 = vmatpush1.msra.mxu0 0.0
        %1142 = vmatprep.subr.mxu0 0.0
        %1143 = vmatpush1.msra.mxu0 0.0
        %1144 = vmatprep.subr.mxu0 0.0
        %1145 = vmatpush1.msra.mxu0 0.0
        %1146 = vmatprep.subr.mxu0 0.0
        %1147 = vmatpush1.msra.mxu0 0.0
        %1148 = vmatprep.subr.mxu0 0.0
        %1149 = vmatpush1.msra.mxu0 0.0
        %1150 = vmatprep.mubr.f32.mxu0 0.0
        %1151 = vmatmul.mubr.f32.gmra.mrb[0].mxu0 %v623
        %v1152 = vpop.f32.mrb[0].mxu0
        %v1153 = vadd.f32 0.0, %v1152
        %v1154 = vpop.f32.mrb[0].mxu0
        %1155 = vmatprep.mubr.f32.mxu0 0.0
        %1156 = vmatmul.mubr.f32.gmra.mrb[0].mxu0 %v629
        %v1157 = vpop.f32.mrb[0].mxu0
        %v1158 = vadd.f32 0.0, %v1157
        %v1159 = vpop.f32.mrb[0].mxu0
        %1160 = vmatprep.mubr.f32.mxu0 0.0
        %1161 = vmatmul.mubr.f32.gmra.mrb[0].mxu0 %v635
        %v1162 = vpop.f32.mrb[0].mxu0
        %v1163 = vadd.f32 0.0, %v1162
        %v1164 = vpop.f32.mrb[0].mxu0
        %1165 = vmatprep.mubr.f32.mxu0 0.0
        %1166 = vmatmul.mubr.f32.gmra.mrb[0].mxu0 %v641
        %v1167 = vpop.f32.mrb[0].mxu0
        %v1168 = vadd.f32 0.0, %v1167
        %v1169 = vpop.f32.mrb[0].mxu0
        %1170 = vmatprep.mubr.f32.mxu0 0.0
        %1171 = vmatmul.mubr.f32.gmra.mrb[0].mxu0 %v647
        %v1172 = vpop.f32.mrb[0].mxu0
        %v1173 = vadd.f32 0.0, %v1172
        %v1174 = vpop.f32.mrb[0].mxu0
        %1175 = vmatprep.mubr.f32.mxu0 0.0
        %1176 = vmatmul.mubr.f32.gmra.mrb[0].mxu0 %v653
        %v1177 = vpop.f32.mrb[0].mxu0
        %v1178 = vadd.f32 0.0, %v1177
        %v1179 = vpop.f32.mrb[0].mxu0
        %1180 = vmatprep.mubr.f32.mxu0 0.0
        %1181 = vmatmul.mubr.f32.gmra.mrb[0].mxu0 %v659
        %v1182 = vpop.f32.mrb[0].mxu0
        %v1183 = vadd.f32 0.0, %v1182
        %v1184 = vpop.f32.mrb[0].mxu0
        %1185 = vmatprep.mubr.f32.mxu0 0.0
        %1186 = vmatmul.mubr.f32.gmra.mrb[0].mxu0 %v665
        %v1187 = vpop.f32.mrb[0].mxu0
        %v1188 = vadd.f32 0.0, %v1187
        %v1189 = vpop.f32.mrb[0].mxu0
        %1190 = vmatprep.mubr.f32.mxu0 0.0
        %1191 = vmatmul.mubr.f32.gmra.mrb[0].mxu0 %v671
        %v1192 = vpop.f32.mrb[0].mxu0
        %v1193 = vadd.f32 0.0, %v1192
        %v1194 = vpop.f32.mrb[0].mxu0
        %1195 = vmatprep.mubr.f32.mxu0 0.0
        %1196 = vmatmul.mubr.f32.gmra.mrb[0].mxu0 %v677
        %v1197 = vpop.f32.mrb[0].mxu0
        %v1198 = vadd.f32 0.0, %v1197
        %v1199 = vpop.f32.mrb[0].mxu0
        %1200 = vmatprep.mubr.f32.mxu0 0.0
        %1201 = vmatmul.mubr.f32.gmra.mrb[0].mxu0 %v683
        %v1202 = vpop.f32.mrb[0].mxu0
        %v1203 = vadd.f32 0.0, %v1202
        %v1204 = vpop.f32.mrb[0].mxu0
        %1205 = vmatprep.mubr.f32.mxu0 0.0
        %1206 = vmatmul.mubr.f32.gmra.mrb[0].mxu0 %v689
        %v1207 = vpop.f32.mrb[0].mxu0
        %v1208 = vadd.f32 0.0, %v1207
        %v1209 = vpop.f32.mrb[0].mxu0
        %1210 = vmatprep.mubr.f32.mxu0 0.0
        %1211 = vmatmul.mubr.f32.gmra.mrb[0].mxu0 %v695
        %v1212 = vpop.f32.mrb[0].mxu0
        %v1213 = vadd.f32 0.0, %v1212
        %v1214 = vpop.f32.mrb[0].mxu0
        %1215 = vmatprep.mubr.f32.mxu0 0.0
        %1216 = vmatmul.mubr.f32.gmra.mrb[0].mxu0 %v701
        %v1217 = vpop.f32.mrb[0].mxu0
        %v1218 = vadd.f32 0.0, %v1217
        %v1219 = vpop.f32.mrb[0].mxu0
        %1220 = vmatprep.mubr.f32.mxu0 0.0
        %1221 = vmatmul.mubr.f32.gmra.mrb[0].mxu0 %v707
        %v1222 = vpop.f32.mrb[0].mxu0
        %v1223 = vadd.f32 0.0, %v1222
        %v1224 = vpop.f32.mrb[0].mxu0
        %1225 = vmatprep.mubr.f32.mxu0 0.0
        %1226 = vmatmul.mubr.f32.gmra.mrb[0].mxu0 %v713
        %v1227 = vpop.f32.mrb[0].mxu0
        %v1228 = vadd.f32 0.0, %v1227
        %v1229 = vpop.f32.mrb[0].mxu0
        %1230 = vdwg.mxu0
        %1232 = vrot.lane.b32.xlu0 %v1153, 256
        %v1233 = vpop.permute.xlu0 %1232
        %s1235 = sor.u32 256, 8
        %1236 = vrot.lane.b32.xlu0 %v1158, %s1235
        %v1237 = vpop.permute.xlu0 %1236
        %s1239 = sor.u32 256, 16
        %1240 = vrot.lane.b32.xlu0 %v1163, %s1239
        %v1241 = vpop.permute.xlu0 %1240
        %s1243 = sor.u32 256, 24
        %1244 = vrot.lane.b32.xlu0 %v1168, %s1243
        %v1245 = vpop.permute.xlu0 %1244
        %s1247 = sor.u32 256, 32
        %1248 = vrot.lane.b32.xlu0 %v1173, %s1247
        %v1249 = vpop.permute.xlu0 %1248
        %s1251 = sor.u32 256, 40
        %1252 = vrot.lane.b32.xlu0 %v1178, %s1251
        %v1253 = vpop.permute.xlu0 %1252
        %s1255 = sor.u32 256, 48
        %1256 = vrot.lane.b32.xlu0 %v1183, %s1255
        %v1257 = vpop.permute.xlu0 %1256
        %s1259 = sor.u32 256, 56
        %1260 = vrot.lane.b32.xlu0 %v1188, %s1259
        %v1261 = vpop.permute.xlu0 %1260
        %s1263 = sor.u32 256, 64
        %1264 = vrot.lane.b32.xlu0 %v1193, %s1263
        %v1265 = vpop.permute.xlu0 %1264
        %s1267 = sor.u32 256, 72
        %1268 = vrot.lane.b32.xlu0 %v1198, %s1267
        %v1269 = vpop.permute.xlu0 %1268
        %s1271 = sor.u32 256, 80
        %1272 = vrot.lane.b32.xlu0 %v1203, %s1271
        %v1273 = vpop.permute.xlu0 %1272
        %s1275 = sor.u32 256, 88
        %1276 = vrot.lane.b32.xlu0 %v1208, %s1275
        %v1277 = vpop.permute.xlu0 %1276
        %s1279 = sor.u32 256, 96
        %1280 = vrot.lane.b32.xlu0 %v1213, %s1279
        %v1281 = vpop.permute.xlu0 %1280
        %s1283 = sor.u32 256, 104
        %1284 = vrot.lane.b32.xlu0 %v1218, %s1283
        %v1285 = vpop.permute.xlu0 %1284
        %s1287 = sor.u32 256, 112
        %1288 = vrot.lane.b32.xlu0 %v1223, %s1287
        %v1289 = vpop.permute.xlu0 %1288
        %s1291 = sor.u32 256, 120
        %1292 = vrot.lane.b32.xlu0 %v1228, %s1291
        %v1293 = vpop.permute.xlu0 %1292
        %v1294 = vadd.f32 %v1233, %v1237
        %v1295 = vadd.f32 %v1294, %v1241
        %v1296 = vadd.f32 %v1295, %v1245
        %v1297 = vadd.f32 %v1296, %v1249
        %v1298 = vadd.f32 %v1297, %v1253
        %v1299 = vadd.f32 %v1298, %v1257
        %v1300 = vadd.f32 %v1299, %v1261
        %v1301 = vadd.f32 %v1300, %v1265
        %v1302 = vadd.f32 %v1301, %v1269
        %v1303 = vadd.f32 %v1302, %v1273
        %v1304 = vadd.f32 %v1303, %v1277
        %v1305 = vadd.f32 %v1304, %v1281
        %v1306 = vadd.f32 %v1305, %v1285
        %v1307 = vadd.f32 %v1306, %v1289
        %v1308 = vadd.f32 %v1307, %v1293
        %v1309 = vrot.slane %v1308, 4
        %v1310 = vadd.f32 %v1308, %v1309
        %v1311 = vrot.slane %v1310, 2
        %v1312 = vadd.f32 %v1310, %v1311
        %v1313 = vrot.slane %v1312, 1
        %v1314 = vadd.f32 %v1312, %v1313
        %v1315 = vmul.f32 %v1314, 0.0078125
        %1316 = vmax.xlane.f32.xlu0 %v1315
        %v1317 = vpop.xlane.xlu0 %1316
        %vm1318 = vcmp.ge.f32.partialorder %v1315, %v1317
        %v1319 = vsel %vm1318, -inf, %v1315
        %1320 = vmax.xlane.f32.xlu0 %v1319
        %v1321 = vpop.xlane.xlu0 %1320
        %vm1322 = vcmp.ge.f32.partialorder %v1319, %v1321
        %v1323 = vsel %vm1322, -inf, %v1319
        %1324 = vmax.xlane.f32.xlu0 %v1323
        %v1325 = vpop.xlane.xlu0 %1324
        %vm1326 = vcmp.ge.f32.partialorder %v1323, %v1325
        %v1327 = vsel %vm1326, -inf, %v1323
        %1328 = vmax.xlane.f32.xlu0 %v1327
        %v1329 = vpop.xlane.xlu0 %1328
        %vm1330 = vcmp.ge.f32.partialorder %v1315, %v1329
        %v1331 = vsub.f32 %v1315, %v1317
        %v1332 = vmul.f32 %v1331, 1.442695
        %v1333 = vpow.pop %v1332
        %v1334 = vsel %vm1330, %v1333, 0.0
        %1335 = vadd.xlane.f32.xlu0 %v1334
        %v1336 = vpop.xlane.xlu0 %1335
        %v1337 = vrcp.pop %v1336
        %v1338 = vmul.f32 %v1334, %v1337
        %1340 = vrot.lane.b32.xlu0 %v1338, 256
        %v1341 = vpop.permute.xlu0 %1340
        %s1343 = sor.u32 256, 8
        %1344 = vrot.lane.b32.xlu0 %v1338, %s1343
        %v1345 = vpop.permute.xlu0 %1344
        %s1347 = sor.u32 256, 16
        %1348 = vrot.lane.b32.xlu0 %v1338, %s1347
        %v1349 = vpop.permute.xlu0 %1348
        %s1351 = sor.u32 256, 24
        %1352 = vrot.lane.b32.xlu0 %v1338, %s1351
        %v1353 = vpop.permute.xlu0 %1352
        %s1355 = sor.u32 256, 32
        %1356 = vrot.lane.b32.xlu0 %v1338, %s1355
        %v1357 = vpop.permute.xlu0 %1356
        %s1359 = sor.u32 256, 40
        %1360 = vrot.lane.b32.xlu0 %v1338, %s1359
        %v1361 = vpop.permute.xlu0 %1360
        %s1363 = sor.u32 256, 48
        %1364 = vrot.lane.b32.xlu0 %v1338, %s1363
        %v1365 = vpop.permute.xlu0 %1364
        %s1367 = sor.u32 256, 56
        %1368 = vrot.lane.b32.xlu0 %v1338, %s1367
        %v1369 = vpop.permute.xlu0 %1368
        %s1371 = sor.u32 256, 64
        %1372 = vrot.lane.b32.xlu0 %v1338, %s1371
        %v1373 = vpop.permute.xlu0 %1372
        %s1375 = sor.u32 256, 72
        %1376 = vrot.lane.b32.xlu0 %v1338, %s1375
        %v1377 = vpop.permute.xlu0 %1376
        %s1379 = sor.u32 256, 80
        %1380 = vrot.lane.b32.xlu0 %v1338, %s1379
        %v1381 = vpop.permute.xlu0 %1380
        %s1383 = sor.u32 256, 88
        %1384 = vrot.lane.b32.xlu0 %v1338, %s1383
        %v1385 = vpop.permute.xlu0 %1384
        %s1387 = sor.u32 256, 96
        %1388 = vrot.lane.b32.xlu0 %v1338, %s1387
        %v1389 = vpop.permute.xlu0 %1388
        %s1391 = sor.u32 256, 104
        %1392 = vrot.lane.b32.xlu0 %v1338, %s1391
        %v1393 = vpop.permute.xlu0 %1392
        %s1395 = sor.u32 256, 112
        %1396 = vrot.lane.b32.xlu0 %v1338, %s1395
        %v1397 = vpop.permute.xlu0 %1396
        %s1399 = sor.u32 256, 120
        %1400 = vrot.lane.b32.xlu0 %v1338, %s1399
        %v1401 = vpop.permute.xlu0 %1400
        %1402 = vmatprep.subr.mxu0 0.0
        %1403 = vmatpush1.msra.mxu0 %v625
        %1404 = vmatprep.subr.mxu0 0.0
        %1405 = vmatpush1.msra.mxu0 %v631
        %1406 = vmatprep.subr.mxu0 0.0
        %1407 = vmatpush1.msra.mxu0 %v637
        %1408 = vmatprep.subr.mxu0 0.0
        %1409 = vmatpush1.msra.mxu0 %v643
        %1410 = vmatprep.subr.mxu0 0.0
        %1411 = vmatpush1.msra.mxu0 %v649
        %1412 = vmatprep.subr.mxu0 0.0
        %1413 = vmatpush1.msra.mxu0 %v655
        %1414 = vmatprep.subr.mxu0 0.0
        %1415 = vmatpush1.msra.mxu0 %v661
        %1416 = vmatprep.subr.mxu0 0.0
        %1417 = vmatpush1.msra.mxu0 %v667
        %1418 = vmatprep.subr.mxu0 0.0
        %1419 = vmatpush1.msra.mxu0 %v673
        %1420 = vmatprep.subr.mxu0 0.0
        %1421 = vmatpush1.msra.mxu0 %v679
        %1422 = vmatprep.subr.mxu0 0.0
        %1423 = vmatpush1.msra.mxu0 %v685
        %1424 = vmatprep.subr.mxu0 0.0
        %1425 = vmatpush1.msra.mxu0 %v691
        %1426 = vmatprep.subr.mxu0 0.0
        %1427 = vmatpush1.msra.mxu0 %v697
        %1428 = vmatprep.subr.mxu0 0.0
        %1429 = vmatpush1.msra.mxu0 %v703
        %1430 = vmatprep.subr.mxu0 0.0
        %1431 = vmatpush1.msra.mxu0 %v709
        %1432 = vmatprep.subr.mxu0 0.0
        %1433 = vmatpush1.msra.mxu0 %v715
        %1434 = vmatprep.subr.mxu0 0.0
        %1435 = vmatpush1.msra.mxu0 0.0
        %1436 = vmatprep.subr.mxu0 0.0
        %1437 = vmatpush1.msra.mxu0 0.0
        %1438 = vmatprep.subr.mxu0 0.0
        %1439 = vmatpush1.msra.mxu0 0.0
        %1440 = vmatprep.subr.mxu0 0.0
        %1441 = vmatpush1.msra.mxu0 0.0
        %1442 = vmatprep.subr.mxu0 0.0
        %1443 = vmatpush1.msra.mxu0 0.0
        %1444 = vmatprep.subr.mxu0 0.0
        %1445 = vmatpush1.msra.mxu0 0.0
        %1446 = vmatprep.subr.mxu0 0.0
        %1447 = vmatpush1.msra.mxu0 0.0
        %1448 = vmatprep.subr.mxu0 0.0
        %1449 = vmatpush1.msra.mxu0 0.0
        %1450 = vmatprep.subr.mxu0 0.0
        %1451 = vmatpush1.msra.mxu0 0.0
        %1452 = vmatprep.subr.mxu0 0.0
        %1453 = vmatpush1.msra.mxu0 0.0
        %1454 = vmatprep.subr.mxu0 0.0
        %1455 = vmatpush1.msra.mxu0 0.0
        %1456 = vmatprep.subr.mxu0 0.0
        %1457 = vmatpush1.msra.mxu0 0.0
        %1458 = vmatprep.subr.mxu0 0.0
        %1459 = vmatpush1.msra.mxu0 0.0
        %1460 = vmatprep.subr.mxu0 0.0
        %1461 = vmatpush1.msra.mxu0 0.0
        %1462 = vmatprep.subr.mxu0 0.0
        %1463 = vmatpush1.msra.mxu0 0.0
        %1464 = vmatprep.subr.mxu0 0.0
        %1465 = vmatpush1.msra.mxu0 0.0
        %1466 = vmatprep.mubr.f32.mxu0 0.0
        %1467 = vmatmul.mubr.f32.gmra.mrb[0].mxu0 %v1341
        %v1468 = vpop.f32.mrb[0].mxu0
        %v1469 = vadd.f32 0.0, %v1468
        %v1470 = vpop.f32.mrb[0].mxu0
        %1471 = vmatprep.mubr.f32.mxu0 0.0
        %1472 = vmatmul.mubr.f32.gmra.mrb[0].mxu0 %v1345
        %v1473 = vpop.f32.mrb[0].mxu0
        %v1474 = vadd.f32 0.0, %v1473
        %v1475 = vpop.f32.mrb[0].mxu0
        %1476 = vmatprep.mubr.f32.mxu0 0.0
        %1477 = vmatmul.mubr.f32.gmra.mrb[0].mxu0 %v1349
        %v1478 = vpop.f32.mrb[0].mxu0
        %v1479 = vadd.f32 0.0, %v1478
        %v1480 = vpop.f32.mrb[0].mxu0
        %1481 = vmatprep.mubr.f32.mxu0 0.0
        %1482 = vmatmul.mubr.f32.gmra.mrb[0].mxu0 %v1353
        %v1483 = vpop.f32.mrb[0].mxu0
        %v1484 = vadd.f32 0.0, %v1483
        %v1485 = vpop.f32.mrb[0].mxu0
        %1486 = vmatprep.mubr.f32.mxu0 0.0
        %1487 = vmatmul.mubr.f32.gmra.mrb[0].mxu0 %v1357
        %v1488 = vpop.f32.mrb[0].mxu0
        %v1489 = vadd.f32 0.0, %v1488
        %v1490 = vpop.f32.mrb[0].mxu0
        %1491 = vmatprep.mubr.f32.mxu0 0.0
        %1492 = vmatmul.mubr.f32.gmra.mrb[0].mxu0 %v1361
        %v1493 = vpop.f32.mrb[0].mxu0
        %v1494 = vadd.f32 0.0, %v1493
        %v1495 = vpop.f32.mrb[0].mxu0
        %1496 = vmatprep.mubr.f32.mxu0 0.0
        %1497 = vmatmul.mubr.f32.gmra.mrb[0].mxu0 %v1365
        %v1498 = vpop.f32.mrb[0].mxu0
        %v1499 = vadd.f32 0.0, %v1498
        %v1500 = vpop.f32.mrb[0].mxu0
        %1501 = vmatprep.mubr.f32.mxu0 0.0
        %1502 = vmatmul.mubr.f32.gmra.mrb[0].mxu0 %v1369
        %v1503 = vpop.f32.mrb[0].mxu0
        %v1504 = vadd.f32 0.0, %v1503
        %v1505 = vpop.f32.mrb[0].mxu0
        %1506 = vmatprep.mubr.f32.mxu0 0.0
        %1507 = vmatmul.mubr.f32.gmra.mrb[0].mxu0 %v1373
        %v1508 = vpop.f32.mrb[0].mxu0
        %v1509 = vadd.f32 0.0, %v1508
        %v1510 = vpop.f32.mrb[0].mxu0
        %1511 = vmatprep.mubr.f32.mxu0 0.0
        %1512 = vmatmul.mubr.f32.gmra.mrb[0].mxu0 %v1377
        %v1513 = vpop.f32.mrb[0].mxu0
        %v1514 = vadd.f32 0.0, %v1513
        %v1515 = vpop.f32.mrb[0].mxu0
        %1516 = vmatprep.mubr.f32.mxu0 0.0
        %1517 = vmatmul.mubr.f32.gmra.mrb[0].mxu0 %v1381
        %v1518 = vpop.f32.mrb[0].mxu0
        %v1519 = vadd.f32 0.0, %v1518
        %v1520 = vpop.f32.mrb[0].mxu0
        %1521 = vmatprep.mubr.f32.mxu0 0.0
        %1522 = vmatmul.mubr.f32.gmra.mrb[0].mxu0 %v1385
        %v1523 = vpop.f32.mrb[0].mxu0
        %v1524 = vadd.f32 0.0, %v1523
        %v1525 = vpop.f32.mrb[0].mxu0
        %1526 = vmatprep.mubr.f32.mxu0 0.0
        %1527 = vmatmul.mubr.f32.gmra.mrb[0].mxu0 %v1389
        %v1528 = vpop.f32.mrb[0].mxu0
        %v1529 = vadd.f32 0.0, %v1528
        %v1530 = vpop.f32.mrb[0].mxu0
        %1531 = vmatprep.mubr.f32.mxu0 0.0
        %1532 = vmatmul.mubr.f32.gmra.mrb[0].mxu0 %v1393
        %v1533 = vpop.f32.mrb[0].mxu0
        %v1534 = vadd.f32 0.0, %v1533
        %v1535 = vpop.f32.mrb[0].mxu0
        %1536 = vmatprep.mubr.f32.mxu0 0.0
        %1537 = vmatmul.mubr.f32.gmra.mrb[0].mxu0 %v1397
        %v1538 = vpop.f32.mrb[0].mxu0
        %v1539 = vadd.f32 0.0, %v1538
        %v1540 = vpop.f32.mrb[0].mxu0
        %1541 = vmatprep.mubr.f32.mxu0 0.0
        %1542 = vmatmul.mubr.f32.gmra.mrb[0].mxu0 %v1401
        %v1543 = vpop.f32.mrb[0].mxu0
        %v1544 = vadd.f32 0.0, %v1543
        %v1545 = vpop.f32.mrb[0].mxu0
        %1546 = vdwg.mxu0
        %s1547 = scalar_lea.vmem %s419, 128 [#allocation5]
        %v1548 = vld [vmem:[%s1547] sm:$0xff]
        %v1549 = vld [vmem:[%s1547 + $0x8] sm:$0xff]
        %v1550 = vld [vmem:[%s1547 + $0x10] sm:$0xff]
        %v1551 = vld [vmem:[%s1547 + $0x18] sm:$0xff]
        %v1552 = vld [vmem:[%s1547 + $0x20] sm:$0xff]
        %v1553 = vld [vmem:[%s1547 + $0x28] sm:$0xff]
        %v1554 = vld [vmem:[%s1547 + $0x30] sm:$0xff]
        %v1555 = vld [vmem:[%s1547 + $0x38] sm:$0xff]
        %v1556 = vld [vmem:[%s1547 + $0x40] sm:$0xff]
        %v1557 = vld [vmem:[%s1547 + $0x48] sm:$0xff]
        %v1558 = vld [vmem:[%s1547 + $0x50] sm:$0xff]
        %v1559 = vld [vmem:[%s1547 + $0x58] sm:$0xff]
        %v1560 = vld [vmem:[%s1547 + $0x60] sm:$0xff]
        %v1561 = vld [vmem:[%s1547 + $0x68] sm:$0xff]
        %v1562 = vld [vmem:[%s1547 + $0x70] sm:$0xff]
        %v1563 = vld [vmem:[%s1547 + $0x78] sm:$0xff]
        %1564 = vmatprep.subr.mxu0 0.0
        %1565 = vmatpush1.msra.mxu0 %v1548
        %1566 = vmatprep.subr.mxu0 0.0
        %1567 = vmatpush1.msra.mxu0 %v1549
        %1568 = vmatprep.subr.mxu0 0.0
        %1569 = vmatpush1.msra.mxu0 %v1550
        %1570 = vmatprep.subr.mxu0 0.0
        %1571 = vmatpush1.msra.mxu0 %v1551
        %1572 = vmatprep.subr.mxu0 0.0
        %1573 = vmatpush1.msra.mxu0 %v1552
        %1574 = vmatprep.subr.mxu0 0.0
        %1575 = vmatpush1.msra.mxu0 %v1553
        %1576 = vmatprep.subr.mxu0 0.0
        %1577 = vmatpush1.msra.mxu0 %v1554
        %1578 = vmatprep.subr.mxu0 0.0
        %1579 = vmatpush1.msra.mxu0 %v1555
        %1580 = vmatprep.subr.mxu0 0.0
        %1581 = vmatpush1.msra.mxu0 %v1556
        %1582 = vmatprep.subr.mxu0 0.0
        %1583 = vmatpush1.msra.mxu0 %v1557
        %1584 = vmatprep.subr.mxu0 0.0
        %1585 = vmatpush1.msra.mxu0 %v1558
        %1586 = vmatprep.subr.mxu0 0.0
        %1587 = vmatpush1.msra.mxu0 %v1559
        %1588 = vmatprep.subr.mxu0 0.0
        %1589 = vmatpush1.msra.mxu0 %v1560
        %1590 = vmatprep.subr.mxu0 0.0
        %1591 = vmatpush1.msra.mxu0 %v1561
        %1592 = vmatprep.subr.mxu0 0.0
        %1593 = vmatpush1.msra.mxu0 %v1562
        %1594 = vmatprep.subr.mxu0 0.0
        %1595 = vmatpush1.msra.mxu0 %v1563
        %1596 = vmatprep.subr.mxu0 0.0
        %1597 = vmatpush1.msra.mxu0 0.0
        %1598 = vmatprep.subr.mxu0 0.0
        %1599 = vmatpush1.msra.mxu0 0.0
        %1600 = vmatprep.subr.mxu0 0.0
        %1601 = vmatpush1.msra.mxu0 0.0
        %1602 = vmatprep.subr.mxu0 0.0
        %1603 = vmatpush1.msra.mxu0 0.0
        %1604 = vmatprep.subr.mxu0 0.0
        %1605 = vmatpush1.msra.mxu0 0.0
        %1606 = vmatprep.subr.mxu0 0.0
        %1607 = vmatpush1.msra.mxu0 0.0
        %1608 = vmatprep.subr.mxu0 0.0
        %1609 = vmatpush1.msra.mxu0 0.0
        %1610 = vmatprep.subr.mxu0 0.0
        %1611 = vmatpush1.msra.mxu0 0.0
        %1612 = vmatprep.subr.mxu0 0.0
        %1613 = vmatpush1.msra.mxu0 0.0
        %1614 = vmatprep.subr.mxu0 0.0
        %1615 = vmatpush1.msra.mxu0 0.0
        %1616 = vmatprep.subr.mxu0 0.0
        %1617 = vmatpush1.msra.mxu0 0.0
        %1618 = vmatprep.subr.mxu0 0.0
        %1619 = vmatpush1.msra.mxu0 0.0
        %1620 = vmatprep.subr.mxu0 0.0
        %1621 = vmatpush1.msra.mxu0 0.0
        %1622 = vmatprep.subr.mxu0 0.0
        %1623 = vmatpush1.msra.mxu0 0.0
        %1624 = vmatprep.subr.mxu0 0.0
        %1625 = vmatpush1.msra.mxu0 0.0
        %1626 = vmatprep.subr.mxu0 0.0
        %1627 = vmatpush1.msra.mxu0 0.0
        %1628 = vmatprep.mubr.f32.mxu0 0.0
        %1629 = vmatmul.mubr.f32.gmra.mrb[0].mxu0 %v813
        %v1630 = vpop.f32.mrb[0].mxu0
        %v1631 = vadd.f32 %v864, %v1630
        %v1632 = vpop.f32.mrb[0].mxu0
        %1633 = vmatprep.mubr.f32.mxu0 0.0
        %1634 = vmatmul.mubr.f32.gmra.mrb[0].mxu0 %v814
        %v1635 = vpop.f32.mrb[0].mxu0
        %v1636 = vadd.f32 %v869, %v1635
        %v1637 = vpop.f32.mrb[0].mxu0
        %1638 = vmatprep.mubr.f32.mxu0 0.0
        %1639 = vmatmul.mubr.f32.gmra.mrb[0].mxu0 %v815
        %v1640 = vpop.f32.mrb[0].mxu0
        %v1641 = vadd.f32 %v874, %v1640
        %v1642 = vpop.f32.mrb[0].mxu0
        %1643 = vmatprep.mubr.f32.mxu0 0.0
        %1644 = vmatmul.mubr.f32.gmra.mrb[0].mxu0 %v816
        %v1645 = vpop.f32.mrb[0].mxu0
        %v1646 = vadd.f32 %v879, %v1645
        %v1647 = vpop.f32.mrb[0].mxu0
        %1648 = vmatprep.mubr.f32.mxu0 0.0
        %1649 = vmatmul.mubr.f32.gmra.mrb[0].mxu0 %v817
        %v1650 = vpop.f32.mrb[0].mxu0
        %v1651 = vadd.f32 %v884, %v1650
        %v1652 = vpop.f32.mrb[0].mxu0
        %1653 = vmatprep.mubr.f32.mxu0 0.0
        %1654 = vmatmul.mubr.f32.gmra.mrb[0].mxu0 %v818
        %v1655 = vpop.f32.mrb[0].mxu0
        %v1656 = vadd.f32 %v889, %v1655
        %v1657 = vpop.f32.mrb[0].mxu0
        %1658 = vmatprep.mubr.f32.mxu0 0.0
        %1659 = vmatmul.mubr.f32.gmra.mrb[0].mxu0 %v819
        %v1660 = vpop.f32.mrb[0].mxu0
        %v1661 = vadd.f32 %v894, %v1660
        %v1662 = vpop.f32.mrb[0].mxu0
        %1663 = vmatprep.mubr.f32.mxu0 0.0
        %1664 = vmatmul.mubr.f32.gmra.mrb[0].mxu0 %v820
        %v1665 = vpop.f32.mrb[0].mxu0
        %v1666 = vadd.f32 %v899, %v1665
        %v1667 = vpop.f32.mrb[0].mxu0
        %1668 = vmatprep.mubr.f32.mxu0 0.0
        %1669 = vmatmul.mubr.f32.gmra.mrb[0].mxu0 %v821
        %v1670 = vpop.f32.mrb[0].mxu0
        %v1671 = vadd.f32 %v904, %v1670
        %v1672 = vpop.f32.mrb[0].mxu0
        %1673 = vmatprep.mubr.f32.mxu0 0.0
        %1674 = vmatmul.mubr.f32.gmra.mrb[0].mxu0 %v822
        %v1675 = vpop.f32.mrb[0].mxu0
        %v1676 = vadd.f32 %v909, %v1675
        %v1677 = vpop.f32.mrb[0].mxu0
        %1678 = vmatprep.mubr.f32.mxu0 0.0
        %1679 = vmatmul.mubr.f32.gmra.mrb[0].mxu0 %v823
        %v1680 = vpop.f32.mrb[0].mxu0
        %v1681 = vadd.f32 %v914, %v1680
        %v1682 = vpop.f32.mrb[0].mxu0
        %1683 = vmatprep.mubr.f32.mxu0 0.0
        %1684 = vmatmul.mubr.f32.gmra.mrb[0].mxu0 %v824
        %v1685 = vpop.f32.mrb[0].mxu0
        %v1686 = vadd.f32 %v919, %v1685
        %v1687 = vpop.f32.mrb[0].mxu0
        %1688 = vmatprep.mubr.f32.mxu0 0.0
        %1689 = vmatmul.mubr.f32.gmra.mrb[0].mxu0 %v825
        %v1690 = vpop.f32.mrb[0].mxu0
        %v1691 = vadd.f32 %v924, %v1690
        %v1692 = vpop.f32.mrb[0].mxu0
        %1693 = vmatprep.mubr.f32.mxu0 0.0
        %1694 = vmatmul.mubr.f32.gmra.mrb[0].mxu0 %v826
        %v1695 = vpop.f32.mrb[0].mxu0
        %v1696 = vadd.f32 %v929, %v1695
        %v1697 = vpop.f32.mrb[0].mxu0
        %1698 = vmatprep.mubr.f32.mxu0 0.0
        %1699 = vmatmul.mubr.f32.gmra.mrb[0].mxu0 %v827
        %v1700 = vpop.f32.mrb[0].mxu0
        %v1701 = vadd.f32 %v934, %v1700
        %v1702 = vpop.f32.mrb[0].mxu0
        %1703 = vmatprep.mubr.f32.mxu0 0.0
        %1704 = vmatmul.mubr.f32.gmra.mrb[0].mxu0 %v828
        %v1705 = vpop.f32.mrb[0].mxu0
        %v1706 = vadd.f32 %v939, %v1705
        %v1707 = vpop.f32.mrb[0].mxu0
        %1708 = vdwg.mxu0
        %1709 = vmatprep.subr.mxu0 0.0
        %1710 = vmatpush1.msra.mxu0 %v1631
        %1711 = vmatprep.subr.mxu0 0.0
        %1712 = vmatpush1.msra.mxu0 %v1636
        %1713 = vmatprep.subr.mxu0 0.0
        %1714 = vmatpush1.msra.mxu0 %v1641
        %1715 = vmatprep.subr.mxu0 0.0
        %1716 = vmatpush1.msra.mxu0 %v1646
        %1717 = vmatprep.subr.mxu0 0.0
        %1718 = vmatpush1.msra.mxu0 %v1651
        %1719 = vmatprep.subr.mxu0 0.0
        %1720 = vmatpush1.msra.mxu0 %v1656
        %1721 = vmatprep.subr.mxu0 0.0
        %1722 = vmatpush1.msra.mxu0 %v1661
        %1723 = vmatprep.subr.mxu0 0.0
        %1724 = vmatpush1.msra.mxu0 %v1666
        %1725 = vmatprep.subr.mxu0 0.0
        %1726 = vmatpush1.msra.mxu0 %v1671
        %1727 = vmatprep.subr.mxu0 0.0
        %1728 = vmatpush1.msra.mxu0 %v1676
        %1729 = vmatprep.subr.mxu0 0.0
        %1730 = vmatpush1.msra.mxu0 %v1681
        %1731 = vmatprep.subr.mxu0 0.0
        %1732 = vmatpush1.msra.mxu0 %v1686
        %1733 = vmatprep.subr.mxu0 0.0
        %1734 = vmatpush1.msra.mxu0 %v1691
        %1735 = vmatprep.subr.mxu0 0.0
        %1736 = vmatpush1.msra.mxu0 %v1696
        %1737 = vmatprep.subr.mxu0 0.0
        %1738 = vmatpush1.msra.mxu0 %v1701
        %1739 = vmatprep.subr.mxu0 0.0
        %1740 = vmatpush1.msra.mxu0 %v1706
        %1741 = vmatprep.subr.mxu0 0.0
        %1742 = vmatpush1.msra.mxu0 0.0
        %1743 = vmatprep.subr.mxu0 0.0
        %1744 = vmatpush1.msra.mxu0 0.0
        %1745 = vmatprep.subr.mxu0 0.0
        %1746 = vmatpush1.msra.mxu0 0.0
        %1747 = vmatprep.subr.mxu0 0.0
        %1748 = vmatpush1.msra.mxu0 0.0
        %1749 = vmatprep.subr.mxu0 0.0
        %1750 = vmatpush1.msra.mxu0 0.0
        %1751 = vmatprep.subr.mxu0 0.0
        %1752 = vmatpush1.msra.mxu0 0.0
        %1753 = vmatprep.subr.mxu0 0.0
        %1754 = vmatpush1.msra.mxu0 0.0
        %1755 = vmatprep.subr.mxu0 0.0
        %1756 = vmatpush1.msra.mxu0 0.0
        %1757 = vmatprep.subr.mxu0 0.0
        %1758 = vmatpush1.msra.mxu0 0.0
        %1759 = vmatprep.subr.mxu0 0.0
        %1760 = vmatpush1.msra.mxu0 0.0
        %1761 = vmatprep.subr.mxu0 0.0
        %1762 = vmatpush1.msra.mxu0 0.0
        %1763 = vmatprep.subr.mxu0 0.0
        %1764 = vmatpush1.msra.mxu0 0.0
        %1765 = vmatprep.subr.mxu0 0.0
        %1766 = vmatpush1.msra.mxu0 0.0
        %1767 = vmatprep.subr.mxu0 0.0
        %1768 = vmatpush1.msra.mxu0 0.0
        %1769 = vmatprep.subr.mxu0 0.0
        %1770 = vmatpush1.msra.mxu0 0.0
        %1771 = vmatprep.subr.mxu0 0.0
        %1772 = vmatpush1.msra.mxu0 0.0
        %1773 = vmatprep.mubr.f32.mxu0 0.0
        %1774 = vmatmul.mubr.f32.gmra.mrb[0].mxu0 %v719
        %v1775 = vpop.f32.mrb[0].mxu0
        %v1776 = vadd.f32 0.0, %v1775
        %v1777 = vpop.f32.mrb[0].mxu0
        %1778 = vmatprep.mubr.f32.mxu0 0.0
        %1779 = vmatmul.mubr.f32.gmra.mrb[0].mxu0 %v725
        %v1780 = vpop.f32.mrb[0].mxu0
        %v1781 = vadd.f32 0.0, %v1780
        %v1782 = vpop.f32.mrb[0].mxu0
        %1783 = vmatprep.mubr.f32.mxu0 0.0
        %1784 = vmatmul.mubr.f32.gmra.mrb[0].mxu0 %v731
        %v1785 = vpop.f32.mrb[0].mxu0
        %v1786 = vadd.f32 0.0, %v1785
        %v1787 = vpop.f32.mrb[0].mxu0
        %1788 = vmatprep.mubr.f32.mxu0 0.0
        %1789 = vmatmul.mubr.f32.gmra.mrb[0].mxu0 %v737
        %v1790 = vpop.f32.mrb[0].mxu0
        %v1791 = vadd.f32 0.0, %v1790
        %v1792 = vpop.f32.mrb[0].mxu0
        %1793 = vmatprep.mubr.f32.mxu0 0.0
        %1794 = vmatmul.mubr.f32.gmra.mrb[0].mxu0 %v743
        %v1795 = vpop.f32.mrb[0].mxu0
        %v1796 = vadd.f32 0.0, %v1795
        %v1797 = vpop.f32.mrb[0].mxu0
        %1798 = vmatprep.mubr.f32.mxu0 0.0
        %1799 = vmatmul.mubr.f32.gmra.mrb[0].mxu0 %v749
        %v1800 = vpop.f32.mrb[0].mxu0
        %v1801 = vadd.f32 0.0, %v1800
        %v1802 = vpop.f32.mrb[0].mxu0
        %1803 = vmatprep.mubr.f32.mxu0 0.0
        %1804 = vmatmul.mubr.f32.gmra.mrb[0].mxu0 %v755
        %v1805 = vpop.f32.mrb[0].mxu0
        %v1806 = vadd.f32 0.0, %v1805
        %v1807 = vpop.f32.mrb[0].mxu0
        %1808 = vmatprep.mubr.f32.mxu0 0.0
        %1809 = vmatmul.mubr.f32.gmra.mrb[0].mxu0 %v761
        %v1810 = vpop.f32.mrb[0].mxu0
        %v1811 = vadd.f32 0.0, %v1810
        %v1812 = vpop.f32.mrb[0].mxu0
        %1813 = vmatprep.mubr.f32.mxu0 0.0
        %1814 = vmatmul.mubr.f32.gmra.mrb[0].mxu0 %v767
        %v1815 = vpop.f32.mrb[0].mxu0
        %v1816 = vadd.f32 0.0, %v1815
        %v1817 = vpop.f32.mrb[0].mxu0
        %1818 = vmatprep.mubr.f32.mxu0 0.0
        %1819 = vmatmul.mubr.f32.gmra.mrb[0].mxu0 %v773
        %v1820 = vpop.f32.mrb[0].mxu0
        %v1821 = vadd.f32 0.0, %v1820
        %v1822 = vpop.f32.mrb[0].mxu0
        %1823 = vmatprep.mubr.f32.mxu0 0.0
        %1824 = vmatmul.mubr.f32.gmra.mrb[0].mxu0 %v779
        %v1825 = vpop.f32.mrb[0].mxu0
        %v1826 = vadd.f32 0.0, %v1825
        %v1827 = vpop.f32.mrb[0].mxu0
        %1828 = vmatprep.mubr.f32.mxu0 0.0
        %1829 = vmatmul.mubr.f32.gmra.mrb[0].mxu0 %v785
        %v1830 = vpop.f32.mrb[0].mxu0
        %v1831 = vadd.f32 0.0, %v1830
        %v1832 = vpop.f32.mrb[0].mxu0
        %1833 = vmatprep.mubr.f32.mxu0 0.0
        %1834 = vmatmul.mubr.f32.gmra.mrb[0].mxu0 %v791
        %v1835 = vpop.f32.mrb[0].mxu0
        %v1836 = vadd.f32 0.0, %v1835
        %v1837 = vpop.f32.mrb[0].mxu0
        %1838 = vmatprep.mubr.f32.mxu0 0.0
        %1839 = vmatmul.mubr.f32.gmra.mrb[0].mxu0 %v797
        %v1840 = vpop.f32.mrb[0].mxu0
        %v1841 = vadd.f32 0.0, %v1840
        %v1842 = vpop.f32.mrb[0].mxu0
        %1843 = vmatprep.mubr.f32.mxu0 0.0
        %1844 = vmatmul.mubr.f32.gmra.mrb[0].mxu0 %v803
        %v1845 = vpop.f32.mrb[0].mxu0
        %v1846 = vadd.f32 0.0, %v1845
        %v1847 = vpop.f32.mrb[0].mxu0
        %1848 = vmatprep.mubr.f32.mxu0 0.0
        %1849 = vmatmul.mubr.f32.gmra.mrb[0].mxu0 %v809
        %v1850 = vpop.f32.mrb[0].mxu0
        %v1851 = vadd.f32 0.0, %v1850
        %v1852 = vpop.f32.mrb[0].mxu0
        %1853 = vdwg.mxu0
        %1855 = vrot.lane.b32.xlu0 %v1776, 256
        %v1856 = vpop.permute.xlu0 %1855
        %s1858 = sor.u32 256, 8
        %1859 = vrot.lane.b32.xlu0 %v1781, %s1858
        %v1860 = vpop.permute.xlu0 %1859
        %s1862 = sor.u32 256, 16
        %1863 = vrot.lane.b32.xlu0 %v1786, %s1862
        %v1864 = vpop.permute.xlu0 %1863
        %s1866 = sor.u32 256, 24
        %1867 = vrot.lane.b32.xlu0 %v1791, %s1866
        %v1868 = vpop.permute.xlu0 %1867
        %s1870 = sor.u32 256, 32
        %1871 = vrot.lane.b32.xlu0 %v1796, %s1870
        %v1872 = vpop.permute.xlu0 %1871
        %s1874 = sor.u32 256, 40
        %1875 = vrot.lane.b32.xlu0 %v1801, %s1874
        %v1876 = vpop.permute.xlu0 %1875
        %s1878 = sor.u32 256, 48
        %1879 = vrot.lane.b32.xlu0 %v1806, %s1878
        %v1880 = vpop.permute.xlu0 %1879
        %s1882 = sor.u32 256, 56
        %1883 = vrot.lane.b32.xlu0 %v1811, %s1882
        %v1884 = vpop.permute.xlu0 %1883
        %s1886 = sor.u32 256, 64
        %1887 = vrot.lane.b32.xlu0 %v1816, %s1886
        %v1888 = vpop.permute.xlu0 %1887
        %s1890 = sor.u32 256, 72
        %1891 = vrot.lane.b32.xlu0 %v1821, %s1890
        %v1892 = vpop.permute.xlu0 %1891
        %s1894 = sor.u32 256, 80
        %1895 = vrot.lane.b32.xlu0 %v1826, %s1894
        %v1896 = vpop.permute.xlu0 %1895
        %s1898 = sor.u32 256, 88
        %1899 = vrot.lane.b32.xlu0 %v1831, %s1898
        %v1900 = vpop.permute.xlu0 %1899
        %s1902 = sor.u32 256, 96
        %1903 = vrot.lane.b32.xlu0 %v1836, %s1902
        %v1904 = vpop.permute.xlu0 %1903
        %s1906 = sor.u32 256, 104
        %1907 = vrot.lane.b32.xlu0 %v1841, %s1906
        %v1908 = vpop.permute.xlu0 %1907
        %s1910 = sor.u32 256, 112
        %1911 = vrot.lane.b32.xlu0 %v1846, %s1910
        %v1912 = vpop.permute.xlu0 %1911
        %s1914 = sor.u32 256, 120
        %1915 = vrot.lane.b32.xlu0 %v1851, %s1914
        %v1916 = vpop.permute.xlu0 %1915
        %v1917 = vadd.f32 %v1856, %v1860
        %v1918 = vadd.f32 %v1917, %v1864
        %v1919 = vadd.f32 %v1918, %v1868
        %v1920 = vadd.f32 %v1919, %v1872
        %v1921 = vadd.f32 %v1920, %v1876
        %v1922 = vadd.f32 %v1921, %v1880
        %v1923 = vadd.f32 %v1922, %v1884
        %v1924 = vadd.f32 %v1923, %v1888
        %v1925 = vadd.f32 %v1924, %v1892
        %v1926 = vadd.f32 %v1925, %v1896
        %v1927 = vadd.f32 %v1926, %v1900
        %v1928 = vadd.f32 %v1927, %v1904
        %v1929 = vadd.f32 %v1928, %v1908
        %v1930 = vadd.f32 %v1929, %v1912
        %v1931 = vadd.f32 %v1930, %v1916
        %v1932 = vrot.slane %v1931, 4
        %v1933 = vadd.f32 %v1931, %v1932
        %v1934 = vrot.slane %v1933, 2
        %v1935 = vadd.f32 %v1933, %v1934
        %v1936 = vrot.slane %v1935, 1
        %v1937 = vadd.f32 %v1935, %v1936
        %v1938 = vmul.f32 %v1937, 0.0078125
        %1939 = vmax.xlane.f32.xlu0 %v1938
        %v1940 = vpop.xlane.xlu0 %1939
        %vm1941 = vcmp.ge.f32.partialorder %v1938, %v1940
        %v1942 = vsel %vm1941, -inf, %v1938
        %1943 = vmax.xlane.f32.xlu0 %v1942
        %v1944 = vpop.xlane.xlu0 %1943
        %vm1945 = vcmp.ge.f32.partialorder %v1942, %v1944
        %v1946 = vsel %vm1945, -inf, %v1942
        %1947 = vmax.xlane.f32.xlu0 %v1946
        %v1948 = vpop.xlane.xlu0 %1947
        %vm1949 = vcmp.ge.f32.partialorder %v1946, %v1948
        %v1950 = vsel %vm1949, -inf, %v1946
        %1951 = vmax.xlane.f32.xlu0 %v1950
        %v1952 = vpop.xlane.xlu0 %1951
        %vm1953 = vcmp.ge.f32.partialorder %v1938, %v1952
        %v1954 = vsub.f32 %v1938, %v1940
        %v1955 = vmul.f32 %v1954, 1.442695
        %v1956 = vpow.pop %v1955
        %v1957 = vsel %vm1953, %v1956, 0.0
        %1958 = vadd.xlane.f32.xlu0 %v1957
        %v1959 = vpop.xlane.xlu0 %1958
        %v1960 = vrcp.pop %v1959
        %v1961 = vmul.f32 %v1957, %v1960
        %1963 = vrot.lane.b32.xlu0 %v1961, 256
        %v1964 = vpop.permute.xlu0 %1963
        %s1966 = sor.u32 256, 8
        %1967 = vrot.lane.b32.xlu0 %v1961, %s1966
        %v1968 = vpop.permute.xlu0 %1967
        %s1970 = sor.u32 256, 16
        %1971 = vrot.lane.b32.xlu0 %v1961, %s1970
        %v1972 = vpop.permute.xlu0 %1971
        %s1974 = sor.u32 256, 24
        %1975 = vrot.lane.b32.xlu0 %v1961, %s1974
        %v1976 = vpop.permute.xlu0 %1975
        %s1978 = sor.u32 256, 32
        %1979 = vrot.lane.b32.xlu0 %v1961, %s1978
        %v1980 = vpop.permute.xlu0 %1979
        %s1982 = sor.u32 256, 40
        %1983 = vrot.lane.b32.xlu0 %v1961, %s1982
        %v1984 = vpop.permute.xlu0 %1983
        %s1986 = sor.u32 256, 48
        %1987 = vrot.lane.b32.xlu0 %v1961, %s1986
        %v1988 = vpop.permute.xlu0 %1987
        %s1990 = sor.u32 256, 56
        %1991 = vrot.lane.b32.xlu0 %v1961, %s1990
        %v1992 = vpop.permute.xlu0 %1991
        %s1994 = sor.u32 256, 64
        %1995 = vrot.lane.b32.xlu0 %v1961, %s1994
        %v1996 = vpop.permute.xlu0 %1995
        %s1998 = sor.u32 256, 72
        %1999 = vrot.lane.b32.xlu0 %v1961, %s1998
        %v2000 = vpop.permute.xlu0 %1999
        %s2002 = sor.u32 256, 80
        %2003 = vrot.lane.b32.xlu0 %v1961, %s2002
        %v2004 = vpop.permute.xlu0 %2003
        %s2006 = sor.u32 256, 88
        %2007 = vrot.lane.b32.xlu0 %v1961, %s2006
        %v2008 = vpop.permute.xlu0 %2007
        %s2010 = sor.u32 256, 96
        %2011 = vrot.lane.b32.xlu0 %v1961, %s2010
        %v2012 = vpop.permute.xlu0 %2011
        %s2014 = sor.u32 256, 104
        %2015 = vrot.lane.b32.xlu0 %v1961, %s2014
        %v2016 = vpop.permute.xlu0 %2015
        %s2018 = sor.u32 256, 112
        %2019 = vrot.lane.b32.xlu0 %v1961, %s2018
        %v2020 = vpop.permute.xlu0 %2019
        %s2022 = sor.u32 256, 120
        %2023 = vrot.lane.b32.xlu0 %v1961, %s2022
        %v2024 = vpop.permute.xlu0 %2023
        %2025 = vmatprep.subr.mxu0 0.0
        %2026 = vmatpush1.msra.mxu0 %v721
        %2027 = vmatprep.subr.mxu0 0.0
        %2028 = vmatpush1.msra.mxu0 %v727
        %2029 = vmatprep.subr.mxu0 0.0
        %2030 = vmatpush1.msra.mxu0 %v733
        %2031 = vmatprep.subr.mxu0 0.0
        %2032 = vmatpush1.msra.mxu0 %v739
        %2033 = vmatprep.subr.mxu0 0.0
        %2034 = vmatpush1.msra.mxu0 %v745
        %2035 = vmatprep.subr.mxu0 0.0
        %2036 = vmatpush1.msra.mxu0 %v751
        %2037 = vmatprep.subr.mxu0 0.0
        %2038 = vmatpush1.msra.mxu0 %v757
        %2039 = vmatprep.subr.mxu0 0.0
        %2040 = vmatpush1.msra.mxu0 %v763
        %2041 = vmatprep.subr.mxu0 0.0
        %2042 = vmatpush1.msra.mxu0 %v769
        %2043 = vmatprep.subr.mxu0 0.0
        %2044 = vmatpush1.msra.mxu0 %v775
        %2045 = vmatprep.subr.mxu0 0.0
        %2046 = vmatpush1.msra.mxu0 %v781
        %2047 = vmatprep.subr.mxu0 0.0
        %2048 = vmatpush1.msra.mxu0 %v787
        %2049 = vmatprep.subr.mxu0 0.0
        %2050 = vmatpush1.msra.mxu0 %v793
        %2051 = vmatprep.subr.mxu0 0.0
        %2052 = vmatpush1.msra.mxu0 %v799
        %2053 = vmatprep.subr.mxu0 0.0
        %2054 = vmatpush1.msra.mxu0 %v805
        %2055 = vmatprep.subr.mxu0 0.0
        %2056 = vmatpush1.msra.mxu0 %v811
        %2057 = vmatprep.subr.mxu0 0.0
        %2058 = vmatpush1.msra.mxu0 0.0
        %2059 = vmatprep.subr.mxu0 0.0
        %2060 = vmatpush1.msra.mxu0 0.0
        %2061 = vmatprep.subr.mxu0 0.0
        %2062 = vmatpush1.msra.mxu0 0.0
        %2063 = vmatprep.subr.mxu0 0.0
        %2064 = vmatpush1.msra.mxu0 0.0
        %2065 = vmatprep.subr.mxu0 0.0
        %2066 = vmatpush1.msra.mxu0 0.0
        %2067 = vmatprep.subr.mxu0 0.0
        %2068 = vmatpush1.msra.mxu0 0.0
        %2069 = vmatprep.subr.mxu0 0.0
        %2070 = vmatpush1.msra.mxu0 0.0
        %2071 = vmatprep.subr.mxu0 0.0
        %2072 = vmatpush1.msra.mxu0 0.0
        %2073 = vmatprep.subr.mxu0 0.0
        %2074 = vmatpush1.msra.mxu0 0.0
        %2075 = vmatprep.subr.mxu0 0.0
        %2076 = vmatpush1.msra.mxu0 0.0
        %2077 = vmatprep.subr.mxu0 0.0
        %2078 = vmatpush1.msra.mxu0 0.0
        %2079 = vmatprep.subr.mxu0 0.0
        %2080 = vmatpush1.msra.mxu0 0.0
        %2081 = vmatprep.subr.mxu0 0.0
        %2082 = vmatpush1.msra.mxu0 0.0
        %2083 = vmatprep.subr.mxu0 0.0
        %2084 = vmatpush1.msra.mxu0 0.0
        %2085 = vmatprep.subr.mxu0 0.0
        %2086 = vmatpush1.msra.mxu0 0.0
        %2087 = vmatprep.subr.mxu0 0.0
        %2088 = vmatpush1.msra.mxu0 0.0
        %2089 = vmatprep.mubr.f32.mxu0 0.0
        %2090 = vmatmul.mubr.f32.gmra.mrb[0].mxu0 %v1964
        %v2091 = vpop.f32.mrb[0].mxu0
        %v2092 = vadd.f32 0.0, %v2091
        %v2093 = vpop.f32.mrb[0].mxu0
        %2094 = vmatprep.mubr.f32.mxu0 0.0
        %2095 = vmatmul.mubr.f32.gmra.mrb[0].mxu0 %v1968
        %v2096 = vpop.f32.mrb[0].mxu0
        %v2097 = vadd.f32 0.0, %v2096
        %v2098 = vpop.f32.mrb[0].mxu0
        %2099 = vmatprep.mubr.f32.mxu0 0.0
        %2100 = vmatmul.mubr.f32.gmra.mrb[0].mxu0 %v1972
        %v2101 = vpop.f32.mrb[0].mxu0
        %v2102 = vadd.f32 0.0, %v2101
        %v2103 = vpop.f32.mrb[0].mxu0
        %2104 = vmatprep.mubr.f32.mxu0 0.0
        %2105 = vmatmul.mubr.f32.gmra.mrb[0].mxu0 %v1976
        %v2106 = vpop.f32.mrb[0].mxu0
        %v2107 = vadd.f32 0.0, %v2106
        %v2108 = vpop.f32.mrb[0].mxu0
        %2109 = vmatprep.mubr.f32.mxu0 0.0
        %2110 = vmatmul.mubr.f32.gmra.mrb[0].mxu0 %v1980
        %v2111 = vpop.f32.mrb[0].mxu0
        %v2112 = vadd.f32 0.0, %v2111
        %v2113 = vpop.f32.mrb[0].mxu0
        %2114 = vmatprep.mubr.f32.mxu0 0.0
        %2115 = vmatmul.mubr.f32.gmra.mrb[0].mxu0 %v1984
        %v2116 = vpop.f32.mrb[0].mxu0
        %v2117 = vadd.f32 0.0, %v2116
        %v2118 = vpop.f32.mrb[0].mxu0
        %2119 = vmatprep.mubr.f32.mxu0 0.0
        %2120 = vmatmul.mubr.f32.gmra.mrb[0].mxu0 %v1988
        %v2121 = vpop.f32.mrb[0].mxu0
        %v2122 = vadd.f32 0.0, %v2121
        %v2123 = vpop.f32.mrb[0].mxu0
        %2124 = vmatprep.mubr.f32.mxu0 0.0
        %2125 = vmatmul.mubr.f32.gmra.mrb[0].mxu0 %v1992
        %v2126 = vpop.f32.mrb[0].mxu0
        %v2127 = vadd.f32 0.0, %v2126
        %v2128 = vpop.f32.mrb[0].mxu0
        %2129 = vmatprep.mubr.f32.mxu0 0.0
        %2130 = vmatmul.mubr.f32.gmra.mrb[0].mxu0 %v1996
        %v2131 = vpop.f32.mrb[0].mxu0
        %v2132 = vadd.f32 0.0, %v2131
        %v2133 = vpop.f32.mrb[0].mxu0
        %2134 = vmatprep.mubr.f32.mxu0 0.0
        %2135 = vmatmul.mubr.f32.gmra.mrb[0].mxu0 %v2000
        %v2136 = vpop.f32.mrb[0].mxu0
        %v2137 = vadd.f32 0.0, %v2136
        %v2138 = vpop.f32.mrb[0].mxu0
        %2139 = vmatprep.mubr.f32.mxu0 0.0
        %2140 = vmatmul.mubr.f32.gmra.mrb[0].mxu0 %v2004
        %v2141 = vpop.f32.mrb[0].mxu0
        %v2142 = vadd.f32 0.0, %v2141
        %v2143 = vpop.f32.mrb[0].mxu0
        %2144 = vmatprep.mubr.f32.mxu0 0.0
        %2145 = vmatmul.mubr.f32.gmra.mrb[0].mxu0 %v2008
        %v2146 = vpop.f32.mrb[0].mxu0
        %v2147 = vadd.f32 0.0, %v2146
        %v2148 = vpop.f32.mrb[0].mxu0
        %2149 = vmatprep.mubr.f32.mxu0 0.0
        %2150 = vmatmul.mubr.f32.gmra.mrb[0].mxu0 %v2012
        %v2151 = vpop.f32.mrb[0].mxu0
        %v2152 = vadd.f32 0.0, %v2151
        %v2153 = vpop.f32.mrb[0].mxu0
        %2154 = vmatprep.mubr.f32.mxu0 0.0
        %2155 = vmatmul.mubr.f32.gmra.mrb[0].mxu0 %v2016
        %v2156 = vpop.f32.mrb[0].mxu0
        %v2157 = vadd.f32 0.0, %v2156
        %v2158 = vpop.f32.mrb[0].mxu0
        %2159 = vmatprep.mubr.f32.mxu0 0.0
        %2160 = vmatmul.mubr.f32.gmra.mrb[0].mxu0 %v2020
        %v2161 = vpop.f32.mrb[0].mxu0
        %v2162 = vadd.f32 0.0, %v2161
        %v2163 = vpop.f32.mrb[0].mxu0
        %2164 = vmatprep.mubr.f32.mxu0 0.0
        %2165 = vmatmul.mubr.f32.gmra.mrb[0].mxu0 %v2024
        %v2166 = vpop.f32.mrb[0].mxu0
        %v2167 = vadd.f32 0.0, %v2166
        %v2168 = vpop.f32.mrb[0].mxu0
        %2169 = vdwg.mxu0
        %v2170 = vld [vmem:[#allocation8] sm:$0xff]
        %v2171 = vld [vmem:[#allocation8 + $0x8] sm:$0xff]
        %v2172 = vld [vmem:[#allocation8 + $0x10] sm:$0xff]
        %v2173 = vld [vmem:[#allocation8 + $0x18] sm:$0xff]
        %v2174 = vld [vmem:[#allocation8 + $0x20] sm:$0xff]
        %v2175 = vld [vmem:[#allocation8 + $0x28] sm:$0xff]
        %v2176 = vld [vmem:[#allocation8 + $0x30] sm:$0xff]
        %v2177 = vld [vmem:[#allocation8 + $0x38] sm:$0xff]
        %v2178 = vld [vmem:[#allocation8 + $0x40] sm:$0xff]
        %v2179 = vld [vmem:[#allocation8 + $0x48] sm:$0xff]
        %v2180 = vld [vmem:[#allocation8 + $0x50] sm:$0xff]
        %v2181 = vld [vmem:[#allocation8 + $0x58] sm:$0xff]
        %v2182 = vld [vmem:[#allocation8 + $0x60] sm:$0xff]
        %v2183 = vld [vmem:[#allocation8 + $0x68] sm:$0xff]
        %v2184 = vld [vmem:[#allocation8 + $0x70] sm:$0xff]
        %v2185 = vld [vmem:[#allocation8 + $0x78] sm:$0xff]
        %v2186 = vld [vmem:[%s7] sm:$0x1]
        %v2188 = vlaneseq
        %v2189 = vshrl.u32 %v2188, 7
        %v2190 = vsub.s32 0, %v2189
        %v2191 = vrot.slane %v2186, %v2190
        %2193 = vmatprep.subr.mxu0 0.0
        %2194 = vmatpush1.msra.mxu0 %v2170
        %2195 = vmatprep.subr.mxu0 0.0
        %2196 = vmatpush1.msra.mxu0 %v2171
        %2197 = vmatprep.subr.mxu0 0.0
        %2198 = vmatpush1.msra.mxu0 %v2172
        %2199 = vmatprep.subr.mxu0 0.0
        %2200 = vmatpush1.msra.mxu0 %v2173
        %2201 = vmatprep.subr.mxu0 0.0
        %2202 = vmatpush1.msra.mxu0 %v2174
        %2203 = vmatprep.subr.mxu0 0.0
        %2204 = vmatpush1.msra.mxu0 %v2175
        %2205 = vmatprep.subr.mxu0 0.0
        %2206 = vmatpush1.msra.mxu0 %v2176
        %2207 = vmatprep.subr.mxu0 0.0
        %2208 = vmatpush1.msra.mxu0 %v2177
        %2209 = vmatprep.subr.mxu0 0.0
        %2210 = vmatpush1.msra.mxu0 %v2178
        %2211 = vmatprep.subr.mxu0 0.0
        %2212 = vmatpush1.msra.mxu0 %v2179
        %2213 = vmatprep.subr.mxu0 0.0
        %2214 = vmatpush1.msra.mxu0 %v2180
        %2215 = vmatprep.subr.mxu0 0.0
        %2216 = vmatpush1.msra.mxu0 %v2181
        %2217 = vmatprep.subr.mxu0 0.0
        %2218 = vmatpush1.msra.mxu0 %v2182
        %2219 = vmatprep.subr.mxu0 0.0
        %2220 = vmatpush1.msra.mxu0 %v2183
        %2221 = vmatprep.subr.mxu0 0.0
        %2222 = vmatpush1.msra.mxu0 %v2184
        %2223 = vmatprep.subr.mxu0 0.0
        %2224 = vmatpush1.msra.mxu0 %v2185
        %2225 = vmatprep.subr.mxu0 0.0
        %2226 = vmatpush1.msra.mxu0 0.0
        %2227 = vmatprep.subr.mxu0 0.0
        %2228 = vmatpush1.msra.mxu0 0.0
        %2229 = vmatprep.subr.mxu0 0.0
        %2230 = vmatpush1.msra.mxu0 0.0
        %2231 = vmatprep.subr.mxu0 0.0
        %2232 = vmatpush1.msra.mxu0 0.0
        %2233 = vmatprep.subr.mxu0 0.0
        %2234 = vmatpush1.msra.mxu0 0.0
        %2235 = vmatprep.subr.mxu0 0.0
        %2236 = vmatpush1.msra.mxu0 0.0
        %2237 = vmatprep.subr.mxu0 0.0
        %2238 = vmatpush1.msra.mxu0 0.0
        %2239 = vmatprep.subr.mxu0 0.0
        %2240 = vmatpush1.msra.mxu0 0.0
        %2241 = vmatprep.subr.mxu0 0.0
        %2242 = vmatpush1.msra.mxu0 0.0
        %2243 = vmatprep.subr.mxu0 0.0
        %2244 = vmatpush1.msra.mxu0 0.0
        %2245 = vmatprep.subr.mxu0 0.0
        %2246 = vmatpush1.msra.mxu0 0.0
        %2247 = vmatprep.subr.mxu0 0.0
        %2248 = vmatpush1.msra.mxu0 0.0
        %2249 = vmatprep.subr.mxu0 0.0
        %2250 = vmatpush1.msra.mxu0 0.0
        %2251 = vmatprep.subr.mxu0 0.0
        %2252 = vmatpush1.msra.mxu0 0.0
        %2253 = vmatprep.subr.mxu0 0.0
        %2254 = vmatpush1.msra.mxu0 0.0
        %2255 = vmatprep.subr.mxu0 0.0
        %2256 = vmatpush1.msra.mxu0 0.0
        %2257 = vmatprep.mubr.f32.mxu0 0.0
        %2258 = vmatmul.mubr.f32.gmra.mrb[0].mxu0 %v1469
        %v2259 = vpop.f32.mrb[0].mxu0
        %v2260 = vadd.f32 %v2191, %v2259
        %v2261 = vpop.f32.mrb[0].mxu0
        %2262 = vmatprep.mubr.f32.mxu0 0.0
        %2263 = vmatmul.mubr.f32.gmra.mrb[0].mxu0 %v1474
        %v2264 = vpop.f32.mrb[0].mxu0
        %v2265 = vadd.f32 %v2191, %v2264
        %v2266 = vpop.f32.mrb[0].mxu0
        %2267 = vmatprep.mubr.f32.mxu0 0.0
        %2268 = vmatmul.mubr.f32.gmra.mrb[0].mxu0 %v1479
        %v2269 = vpop.f32.mrb[0].mxu0
        %v2270 = vadd.f32 %v2191, %v2269
        %v2271 = vpop.f32.mrb[0].mxu0
        %2272 = vmatprep.mubr.f32.mxu0 0.0
        %2273 = vmatmul.mubr.f32.gmra.mrb[0].mxu0 %v1484
        %v2274 = vpop.f32.mrb[0].mxu0
        %v2275 = vadd.f32 %v2191, %v2274
        %v2276 = vpop.f32.mrb[0].mxu0
        %2277 = vmatprep.mubr.f32.mxu0 0.0
        %2278 = vmatmul.mubr.f32.gmra.mrb[0].mxu0 %v1489
        %v2279 = vpop.f32.mrb[0].mxu0
        %v2280 = vadd.f32 %v2191, %v2279
        %v2281 = vpop.f32.mrb[0].mxu0
        %2282 = vmatprep.mubr.f32.mxu0 0.0
        %2283 = vmatmul.mubr.f32.gmra.mrb[0].mxu0 %v1494
        %v2284 = vpop.f32.mrb[0].mxu0
        %v2285 = vadd.f32 %v2191, %v2284
        %v2286 = vpop.f32.mrb[0].mxu0
        %2287 = vmatprep.mubr.f32.mxu0 0.0
        %2288 = vmatmul.mubr.f32.gmra.mrb[0].mxu0 %v1499
        %v2289 = vpop.f32.mrb[0].mxu0
        %v2290 = vadd.f32 %v2191, %v2289
        %v2291 = vpop.f32.mrb[0].mxu0
        %2292 = vmatprep.mubr.f32.mxu0 0.0
        %2293 = vmatmul.mubr.f32.gmra.mrb[0].mxu0 %v1504
        %v2294 = vpop.f32.mrb[0].mxu0
        %v2295 = vadd.f32 %v2191, %v2294
        %v2296 = vpop.f32.mrb[0].mxu0
        %2297 = vmatprep.mubr.f32.mxu0 0.0
        %2298 = vmatmul.mubr.f32.gmra.mrb[0].mxu0 %v1509
        %v2299 = vpop.f32.mrb[0].mxu0
        %v2300 = vadd.f32 %v2191, %v2299
        %v2301 = vpop.f32.mrb[0].mxu0
        %2302 = vmatprep.mubr.f32.mxu0 0.0
        %2303 = vmatmul.mubr.f32.gmra.mrb[0].mxu0 %v1514
        %v2304 = vpop.f32.mrb[0].mxu0
        %v2305 = vadd.f32 %v2191, %v2304
        %v2306 = vpop.f32.mrb[0].mxu0
        %2307 = vmatprep.mubr.f32.mxu0 0.0
        %2308 = vmatmul.mubr.f32.gmra.mrb[0].mxu0 %v1519
        %v2309 = vpop.f32.mrb[0].mxu0
        %v2310 = vadd.f32 %v2191, %v2309
        %v2311 = vpop.f32.mrb[0].mxu0
        %2312 = vmatprep.mubr.f32.mxu0 0.0
        %2313 = vmatmul.mubr.f32.gmra.mrb[0].mxu0 %v1524
        %v2314 = vpop.f32.mrb[0].mxu0
        %v2315 = vadd.f32 %v2191, %v2314
        %v2316 = vpop.f32.mrb[0].mxu0
        %2317 = vmatprep.mubr.f32.mxu0 0.0
        %2318 = vmatmul.mubr.f32.gmra.mrb[0].mxu0 %v1529
        %v2319 = vpop.f32.mrb[0].mxu0
        %v2320 = vadd.f32 %v2191, %v2319
        %v2321 = vpop.f32.mrb[0].mxu0
        %2322 = vmatprep.mubr.f32.mxu0 0.0
        %2323 = vmatmul.mubr.f32.gmra.mrb[0].mxu0 %v1534
        %v2324 = vpop.f32.mrb[0].mxu0
        %v2325 = vadd.f32 %v2191, %v2324
        %v2326 = vpop.f32.mrb[0].mxu0
        %2327 = vmatprep.mubr.f32.mxu0 0.0
        %2328 = vmatmul.mubr.f32.gmra.mrb[0].mxu0 %v1539
        %v2329 = vpop.f32.mrb[0].mxu0
        %v2330 = vadd.f32 %v2191, %v2329
        %v2331 = vpop.f32.mrb[0].mxu0
        %2332 = vmatprep.mubr.f32.mxu0 0.0
        %2333 = vmatmul.mubr.f32.gmra.mrb[0].mxu0 %v1544
        %v2334 = vpop.f32.mrb[0].mxu0
        %v2335 = vadd.f32 %v2191, %v2334
        %v2336 = vpop.f32.mrb[0].mxu0
        %2337 = vmatprep.mubr.f32.mxu0 0.0
        %2338 = vmatmul.mubr.f32.gmra.mrb[0].mxu0 %v2092
        %v2339 = vpop.f32.mrb[0].mxu0
        %v2340 = vadd.f32 %v2191, %v2339
        %v2341 = vpop.f32.mrb[0].mxu0
        %2342 = vmatprep.mubr.f32.mxu0 0.0
        %2343 = vmatmul.mubr.f32.gmra.mrb[0].mxu0 %v2097
        %v2344 = vpop.f32.mrb[0].mxu0
        %v2345 = vadd.f32 %v2191, %v2344
        %v2346 = vpop.f32.mrb[0].mxu0
        %2347 = vmatprep.mubr.f32.mxu0 0.0
        %2348 = vmatmul.mubr.f32.gmra.mrb[0].mxu0 %v2102
        %v2349 = vpop.f32.mrb[0].mxu0
        %v2350 = vadd.f32 %v2191, %v2349
        %v2351 = vpop.f32.mrb[0].mxu0
        %2352 = vmatprep.mubr.f32.mxu0 0.0
        %2353 = vmatmul.mubr.f32.gmra.mrb[0].mxu0 %v2107
        %v2354 = vpop.f32.mrb[0].mxu0
        %v2355 = vadd.f32 %v2191, %v2354
        %v2356 = vpop.f32.mrb[0].mxu0
        %2357 = vmatprep.mubr.f32.mxu0 0.0
        %2358 = vmatmul.mubr.f32.gmra.mrb[0].mxu0 %v2112
        %v2359 = vpop.f32.mrb[0].mxu0
        %v2360 = vadd.f32 %v2191, %v2359
        %v2361 = vpop.f32.mrb[0].mxu0
        %2362 = vmatprep.mubr.f32.mxu0 0.0
        %2363 = vmatmul.mubr.f32.gmra.mrb[0].mxu0 %v2117
        %v2364 = vpop.f32.mrb[0].mxu0
        %v2365 = vadd.f32 %v2191, %v2364
        %v2366 = vpop.f32.mrb[0].mxu0
        %2367 = vmatprep.mubr.f32.mxu0 0.0
        %2368 = vmatmul.mubr.f32.gmra.mrb[0].mxu0 %v2122
        %v2369 = vpop.f32.mrb[0].mxu0
        %v2370 = vadd.f32 %v2191, %v2369
        %v2371 = vpop.f32.mrb[0].mxu0
        %2372 = vmatprep.mubr.f32.mxu0 0.0
        %2373 = vmatmul.mubr.f32.gmra.mrb[0].mxu0 %v2127
        %v2374 = vpop.f32.mrb[0].mxu0
        %v2375 = vadd.f32 %v2191, %v2374
        %v2376 = vpop.f32.mrb[0].mxu0
        %2377 = vmatprep.mubr.f32.mxu0 0.0
        %2378 = vmatmul.mubr.f32.gmra.mrb[0].mxu0 %v2132
        %v2379 = vpop.f32.mrb[0].mxu0
        %v2380 = vadd.f32 %v2191, %v2379
        %v2381 = vpop.f32.mrb[0].mxu0
        %2382 = vmatprep.mubr.f32.mxu0 0.0
        %2383 = vmatmul.mubr.f32.gmra.mrb[0].mxu0 %v2137
        %v2384 = vpop.f32.mrb[0].mxu0
        %v2385 = vadd.f32 %v2191, %v2384
        %v2386 = vpop.f32.mrb[0].mxu0
        %2387 = vmatprep.mubr.f32.mxu0 0.0
        %2388 = vmatmul.mubr.f32.gmra.mrb[0].mxu0 %v2142
        %v2389 = vpop.f32.mrb[0].mxu0
        %v2390 = vadd.f32 %v2191, %v2389
        %v2391 = vpop.f32.mrb[0].mxu0
        %2392 = vmatprep.mubr.f32.mxu0 0.0
        %2393 = vmatmul.mubr.f32.gmra.mrb[0].mxu0 %v2147
        %v2394 = vpop.f32.mrb[0].mxu0
        %v2395 = vadd.f32 %v2191, %v2394
        %v2396 = vpop.f32.mrb[0].mxu0
        %2397 = vmatprep.mubr.f32.mxu0 0.0
        %2398 = vmatmul.mubr.f32.gmra.mrb[0].mxu0 %v2152
        %v2399 = vpop.f32.mrb[0].mxu0
        %v2400 = vadd.f32 %v2191, %v2399
        %v2401 = vpop.f32.mrb[0].mxu0
        %2402 = vmatprep.mubr.f32.mxu0 0.0
        %2403 = vmatmul.mubr.f32.gmra.mrb[0].mxu0 %v2157
        %v2404 = vpop.f32.mrb[0].mxu0
        %v2405 = vadd.f32 %v2191, %v2404
        %v2406 = vpop.f32.mrb[0].mxu0
        %2407 = vmatprep.mubr.f32.mxu0 0.0
        %2408 = vmatmul.mubr.f32.gmra.mrb[0].mxu0 %v2162
        %v2409 = vpop.f32.mrb[0].mxu0
        %v2410 = vadd.f32 %v2191, %v2409
        %v2411 = vpop.f32.mrb[0].mxu0
        %2412 = vmatprep.mubr.f32.mxu0 0.0
        %2413 = vmatmul.mubr.f32.gmra.mrb[0].mxu0 %v2167
        %v2414 = vpop.f32.mrb[0].mxu0
        %v2415 = vadd.f32 %v2191, %v2414
        %v2416 = vpop.f32.mrb[0].mxu0
        %2417 = vdwg.mxu0
        %v2418 = vadd.f32 %v480, %v2260
        %v2419 = vadd.f32 %v481, %v2265
        %v2420 = vadd.f32 %v482, %v2270
        %v2421 = vadd.f32 %v483, %v2275
        %v2422 = vadd.f32 %v484, %v2280
        %v2423 = vadd.f32 %v485, %v2285
        %v2424 = vadd.f32 %v486, %v2290
        %v2425 = vadd.f32 %v487, %v2295
        %v2426 = vadd.f32 %v488, %v2300
        %v2427 = vadd.f32 %v489, %v2305
        %v2428 = vadd.f32 %v490, %v2310
        %v2429 = vadd.f32 %v491, %v2315
        %v2430 = vadd.f32 %v492, %v2320
        %v2431 = vadd.f32 %v493, %v2325
        %v2432 = vadd.f32 %v494, %v2330
        %v2433 = vadd.f32 %v495, %v2335
        %v2434 = vadd.f32 %v496, %v2340
        %v2435 = vadd.f32 %v497, %v2345
        %v2436 = vadd.f32 %v498, %v2350
        %v2437 = vadd.f32 %v499, %v2355
        %v2438 = vadd.f32 %v500, %v2360
        %v2439 = vadd.f32 %v501, %v2365
        %v2440 = vadd.f32 %v502, %v2370
        %v2441 = vadd.f32 %v503, %v2375
        %v2442 = vadd.f32 %v504, %v2380
        %v2443 = vadd.f32 %v505, %v2385
        %v2444 = vadd.f32 %v506, %v2390
        %v2445 = vadd.f32 %v507, %v2395
        %v2446 = vadd.f32 %v508, %v2400
        %v2447 = vadd.f32 %v509, %v2405
        %v2448 = vadd.f32 %v510, %v2410
        %v2449 = vadd.f32 %v511, %v2415
        %v2450 = vld [vmem:[#allocation10] sm:$0xff]
        %v2451 = vld [vmem:[#allocation10 + $0x8] sm:$0xff]
        %v2452 = vld [vmem:[#allocation10 + $0x10] sm:$0xff]
        %v2453 = vld [vmem:[#allocation10 + $0x18] sm:$0xff]
        %v2454 = vld [vmem:[#allocation10 + $0x20] sm:$0xff]
        %v2455 = vld [vmem:[#allocation10 + $0x28] sm:$0xff]
        %v2456 = vld [vmem:[#allocation10 + $0x30] sm:$0xff]
        %v2457 = vld [vmem:[#allocation10 + $0x38] sm:$0xff]
        %v2458 = vld [vmem:[#allocation10 + $0x40] sm:$0xff]
        %v2459 = vld [vmem:[#allocation10 + $0x48] sm:$0xff]
        %v2460 = vld [vmem:[#allocation10 + $0x50] sm:$0xff]
        %v2461 = vld [vmem:[#allocation10 + $0x58] sm:$0xff]
        %v2462 = vld [vmem:[#allocation10 + $0x60] sm:$0xff]
        %v2463 = vld [vmem:[#allocation10 + $0x68] sm:$0xff]
        %v2464 = vld [vmem:[#allocation10 + $0x70] sm:$0xff]
        %v2465 = vld [vmem:[#allocation10 + $0x78] sm:$0xff]
        %v2466 = vld [vmem:[#allocation10 + $0x80] sm:$0xff]
        %v2467 = vld [vmem:[#allocation10 + $0x88] sm:$0xff]
        %v2468 = vld [vmem:[#allocation10 + $0x90] sm:$0xff]
        %v2469 = vld [vmem:[#allocation10 + $0x98] sm:$0xff]
        %v2470 = vld [vmem:[#allocation10 + $0xa0] sm:$0xff]
        %v2471 = vld [vmem:[#allocation10 + $0xa8] sm:$0xff]
        %v2472 = vld [vmem:[#allocation10 + $0xb0] sm:$0xff]
        %v2473 = vld [vmem:[#allocation10 + $0xb8] sm:$0xff]
        %v2474 = vld [vmem:[#allocation10 + $0xc0] sm:$0xff]
        %v2475 = vld [vmem:[#allocation10 + $0xc8] sm:$0xff]
        %v2476 = vld [vmem:[#allocation10 + $0xd0] sm:$0xff]
        %v2477 = vld [vmem:[#allocation10 + $0xd8] sm:$0xff]
        %v2478 = vld [vmem:[#allocation10 + $0xe0] sm:$0xff]
        %v2479 = vld [vmem:[#allocation10 + $0xe8] sm:$0xff]
        %v2480 = vld [vmem:[#allocation10 + $0xf0] sm:$0xff]
        %v2481 = vld [vmem:[#allocation10 + $0xf8] sm:$0xff]
        %v2482 = vld [vmem:[#allocation10 + $0x100] sm:$0xff]
        %v2483 = vld [vmem:[#allocation10 + $0x108] sm:$0xff]
        %v2484 = vld [vmem:[#allocation10 + $0x110] sm:$0xff]
        %v2485 = vld [vmem:[#allocation10 + $0x118] sm:$0xff]
        %v2486 = vld [vmem:[#allocation10 + $0x120] sm:$0xff]
        %v2487 = vld [vmem:[#allocation10 + $0x128] sm:$0xff]
        %v2488 = vld [vmem:[#allocation10 + $0x130] sm:$0xff]
        %v2489 = vld [vmem:[#allocation10 + $0x138] sm:$0xff]
        %v2490 = vld [vmem:[#allocation10 + $0x140] sm:$0xff]
        %v2491 = vld [vmem:[#allocation10 + $0x148] sm:$0xff]
        %v2492 = vld [vmem:[#allocation10 + $0x150] sm:$0xff]
        %v2493 = vld [vmem:[#allocation10 + $0x158] sm:$0xff]
        %v2494 = vld [vmem:[#allocation10 + $0x160] sm:$0xff]
        %v2495 = vld [vmem:[#allocation10 + $0x168] sm:$0xff]
        %v2496 = vld [vmem:[#allocation10 + $0x170] sm:$0xff]
        %v2497 = vld [vmem:[#allocation10 + $0x178] sm:$0xff]
        %v2498 = vld [vmem:[#allocation10 + $0x180] sm:$0xff]
        %v2499 = vld [vmem:[#allocation10 + $0x188] sm:$0xff]
        %v2500 = vld [vmem:[#allocation10 + $0x190] sm:$0xff]
        %v2501 = vld [vmem:[#allocation10 + $0x198] sm:$0xff]
        %v2502 = vld [vmem:[#allocation10 + $0x1a0] sm:$0xff]
        %v2503 = vld [vmem:[#allocation10 + $0x1a8] sm:$0xff]
        %v2504 = vld [vmem:[#allocation10 + $0x1b0] sm:$0xff]
        %v2505 = vld [vmem:[#allocation10 + $0x1b8] sm:$0xff]
        %v2506 = vld [vmem:[#allocation10 + $0x1c0] sm:$0xff]
        %v2507 = vld [vmem:[#allocation10 + $0x1c8] sm:$0xff]
        %v2508 = vld [vmem:[#allocation10 + $0x1d0] sm:$0xff]
        %v2509 = vld [vmem:[#allocation10 + $0x1d8] sm:$0xff]
        %v2510 = vld [vmem:[#allocation10 + $0x1e0] sm:$0xff]
        %v2511 = vld [vmem:[#allocation10 + $0x1e8] sm:$0xff]
        %v2512 = vld [vmem:[#allocation10 + $0x1f0] sm:$0xff]
        %v2513 = vld [vmem:[#allocation10 + $0x1f8] sm:$0xff]
        %2514 = vmatprep.subr.mxu0 %v2451
        %2515 = vmatpush1.msra.mxu0 %v2450
        %2516 = vmatprep.subr.mxu0 %v2455
        %2517 = vmatpush1.msra.mxu0 %v2454
        %2518 = vmatprep.subr.mxu0 %v2459
        %2519 = vmatpush1.msra.mxu0 %v2458
        %2520 = vmatprep.subr.mxu0 %v2463
        %2521 = vmatpush1.msra.mxu0 %v2462
        %2522 = vmatprep.subr.mxu0 %v2467
        %2523 = vmatpush1.msra.mxu0 %v2466
        %2524 = vmatprep.subr.mxu0 %v2471
        %2525 = vmatpush1.msra.mxu0 %v2470
        %2526 = vmatprep.subr.mxu0 %v2475
        %2527 = vmatpush1.msra.mxu0 %v2474
        %2528 = vmatprep.subr.mxu0 %v2479
        %2529 = vmatpush1.msra.mxu0 %v2478
        %2530 = vmatprep.subr.mxu0 %v2483
        %2531 = vmatpush1.msra.mxu0 %v2482
        %2532 = vmatprep.subr.mxu0 %v2487
        %2533 = vmatpush1.msra.mxu0 %v2486
        %2534 = vmatprep.subr.mxu0 %v2491
        %2535 = vmatpush1.msra.mxu0 %v2490
        %2536 = vmatprep.subr.mxu0 %v2495
        %2537 = vmatpush1.msra.mxu0 %v2494
        %2538 = vmatprep.subr.mxu0 %v2499
        %2539 = vmatpush1.msra.mxu0 %v2498
        %2540 = vmatprep.subr.mxu0 %v2503
        %2541 = vmatpush1.msra.mxu0 %v2502
        %2542 = vmatprep.subr.mxu0 %v2507
        %2543 = vmatpush1.msra.mxu0 %v2506
        %2544 = vmatprep.subr.mxu0 %v2511
        %2545 = vmatpush1.msra.mxu0 %v2510
        %2546 = vmatprep.subr.mxu0 0.0
        %2547 = vmatpush1.msra.mxu0 0.0
        %2548 = vmatprep.subr.mxu0 0.0
        %2549 = vmatpush1.msra.mxu0 0.0
        %2550 = vmatprep.subr.mxu0 0.0
        %2551 = vmatpush1.msra.mxu0 0.0
        %2552 = vmatprep.subr.mxu0 0.0
        %2553 = vmatpush1.msra.mxu0 0.0
        %2554 = vmatprep.subr.mxu0 0.0
        %2555 = vmatpush1.msra.mxu0 0.0
        %2556 = vmatprep.subr.mxu0 0.0
        %2557 = vmatpush1.msra.mxu0 0.0
        %2558 = vmatprep.subr.mxu0 0.0
        %2559 = vmatpush1.msra.mxu0 0.0
        %2560 = vmatprep.subr.mxu0 0.0
        %2561 = vmatpush1.msra.mxu0 0.0
        %2562 = vmatprep.subr.mxu0 0.0
        %2563 = vmatpush1.msra.mxu0 0.0
        %2564 = vmatprep.subr.mxu0 0.0
        %2565 = vmatpush1.msra.mxu0 0.0
        %2566 = vmatprep.subr.mxu0 0.0
        %2567 = vmatpush1.msra.mxu0 0.0
        %2568 = vmatprep.subr.mxu0 0.0
        %2569 = vmatpush1.msra.mxu0 0.0
        %2570 = vmatprep.subr.mxu0 0.0
        %2571 = vmatpush1.msra.mxu0 0.0
        %2572 = vmatprep.subr.mxu0 0.0
        %2573 = vmatpush1.msra.mxu0 0.0
        %2574 = vmatprep.subr.mxu0 0.0
        %2575 = vmatpush1.msra.mxu0 0.0
        %2576 = vmatprep.subr.mxu0 0.0
        %2577 = vmatpush1.msra.mxu0 0.0
        %2578 = vmatprep.mubr.f32.mxu0 0.0
        %2579 = vmatmul.mubr.f32.gmra.mrb[0].mxu0 %v2418
        %v2580 = vpop.f32.mrb[0].mxu0
        %v2581 = vadd.f32 0.0, %v2580
        %v2582 = vpop.f32.mrb[0].mxu0
        %v2583 = vadd.f32 0.0, %v2582
        %2584 = vmatprep.mubr.f32.mxu0 0.0
        %2585 = vmatmul.mubr.f32.gmra.mrb[0].mxu0 %v2419
        %v2586 = vpop.f32.mrb[0].mxu0
        %v2587 = vadd.f32 0.0, %v2586
        %v2588 = vpop.f32.mrb[0].mxu0
        %v2589 = vadd.f32 0.0, %v2588
        %2590 = vmatprep.mubr.f32.mxu0 0.0
        %2591 = vmatmul.mubr.f32.gmra.mrb[0].mxu0 %v2420
        %v2592 = vpop.f32.mrb[0].mxu0
        %v2593 = vadd.f32 0.0, %v2592
        %v2594 = vpop.f32.mrb[0].mxu0
        %v2595 = vadd.f32 0.0, %v2594
        %2596 = vmatprep.mubr.f32.mxu0 0.0
        %2597 = vmatmul.mubr.f32.gmra.mrb[0].mxu0 %v2421
        %v2598 = vpop.f32.mrb[0].mxu0
        %v2599 = vadd.f32 0.0, %v2598
        %v2600 = vpop.f32.mrb[0].mxu0
        %v2601 = vadd.f32 0.0, %v2600
        %2602 = vmatprep.mubr.f32.mxu0 0.0
        %2603 = vmatmul.mubr.f32.gmra.mrb[0].mxu0 %v2422
        %v2604 = vpop.f32.mrb[0].mxu0
        %v2605 = vadd.f32 0.0, %v2604
        %v2606 = vpop.f32.mrb[0].mxu0
        %v2607 = vadd.f32 0.0, %v2606
        %2608 = vmatprep.mubr.f32.mxu0 0.0
        %2609 = vmatmul.mubr.f32.gmra.mrb[0].mxu0 %v2423
        %v2610 = vpop.f32.mrb[0].mxu0
        %v2611 = vadd.f32 0.0, %v2610
        %v2612 = vpop.f32.mrb[0].mxu0
        %v2613 = vadd.f32 0.0, %v2612
        %2614 = vmatprep.mubr.f32.mxu0 0.0
        %2615 = vmatmul.mubr.f32.gmra.mrb[0].mxu0 %v2424
        %v2616 = vpop.f32.mrb[0].mxu0
        %v2617 = vadd.f32 0.0, %v2616
        %v2618 = vpop.f32.mrb[0].mxu0
        %v2619 = vadd.f32 0.0, %v2618
        %2620 = vmatprep.mubr.f32.mxu0 0.0
        %2621 = vmatmul.mubr.f32.gmra.mrb[0].mxu0 %v2425
        %v2622 = vpop.f32.mrb[0].mxu0
        %v2623 = vadd.f32 0.0, %v2622
        %v2624 = vpop.f32.mrb[0].mxu0
        %v2625 = vadd.f32 0.0, %v2624
        %2626 = vmatprep.mubr.f32.mxu0 0.0
        %2627 = vmatmul.mubr.f32.gmra.mrb[0].mxu0 %v2426
        %v2628 = vpop.f32.mrb[0].mxu0
        %v2629 = vadd.f32 0.0, %v2628
        %v2630 = vpop.f32.mrb[0].mxu0
        %v2631 = vadd.f32 0.0, %v2630
        %2632 = vmatprep.mubr.f32.mxu0 0.0
        %2633 = vmatmul.mubr.f32.gmra.mrb[0].mxu0 %v2427
        %v2634 = vpop.f32.mrb[0].mxu0
        %v2635 = vadd.f32 0.0, %v2634
        %v2636 = vpop.f32.mrb[0].mxu0
        %v2637 = vadd.f32 0.0, %v2636
        %2638 = vmatprep.mubr.f32.mxu0 0.0
        %2639 = vmatmul.mubr.f32.gmra.mrb[0].mxu0 %v2428
        %v2640 = vpop.f32.mrb[0].mxu0
        %v2641 = vadd.f32 0.0, %v2640
        %v2642 = vpop.f32.mrb[0].mxu0
        %v2643 = vadd.f32 0.0, %v2642
        %2644 = vmatprep.mubr.f32.mxu0 0.0
        %2645 = vmatmul.mubr.f32.gmra.mrb[0].mxu0 %v2429
        %v2646 = vpop.f32.mrb[0].mxu0
        %v2647 = vadd.f32 0.0, %v2646
        %v2648 = vpop.f32.mrb[0].mxu0
        %v2649 = vadd.f32 0.0, %v2648
        %2650 = vmatprep.mubr.f32.mxu0 0.0
        %2651 = vmatmul.mubr.f32.gmra.mrb[0].mxu0 %v2430
        %v2652 = vpop.f32.mrb[0].mxu0
        %v2653 = vadd.f32 0.0, %v2652
        %v2654 = vpop.f32.mrb[0].mxu0
        %v2655 = vadd.f32 0.0, %v2654
        %2656 = vmatprep.mubr.f32.mxu0 0.0
        %2657 = vmatmul.mubr.f32.gmra.mrb[0].mxu0 %v2431
        %v2658 = vpop.f32.mrb[0].mxu0
        %v2659 = vadd.f32 0.0, %v2658
        %v2660 = vpop.f32.mrb[0].mxu0
        %v2661 = vadd.f32 0.0, %v2660
        %2662 = vmatprep.mubr.f32.mxu0 0.0
        %2663 = vmatmul.mubr.f32.gmra.mrb[0].mxu0 %v2432
        %v2664 = vpop.f32.mrb[0].mxu0
        %v2665 = vadd.f32 0.0, %v2664
        %v2666 = vpop.f32.mrb[0].mxu0
        %v2667 = vadd.f32 0.0, %v2666
        %2668 = vmatprep.mubr.f32.mxu0 0.0
        %2669 = vmatmul.mubr.f32.gmra.mrb[0].mxu0 %v2433
        %v2670 = vpop.f32.mrb[0].mxu0
        %v2671 = vadd.f32 0.0, %v2670
        %v2672 = vpop.f32.mrb[0].mxu0
        %v2673 = vadd.f32 0.0, %v2672
        %2674 = vmatprep.mubr.f32.mxu0 0.0
        %2675 = vmatmul.mubr.f32.gmra.mrb[0].mxu0 %v2434
        %v2676 = vpop.f32.mrb[0].mxu0
        %v2677 = vadd.f32 0.0, %v2676
        %v2678 = vpop.f32.mrb[0].mxu0
        %v2679 = vadd.f32 0.0, %v2678
        %2680 = vmatprep.mubr.f32.mxu0 0.0
        %2681 = vmatmul.mubr.f32.gmra.mrb[0].mxu0 %v2435
        %v2682 = vpop.f32.mrb[0].mxu0
        %v2683 = vadd.f32 0.0, %v2682
        %v2684 = vpop.f32.mrb[0].mxu0
        %v2685 = vadd.f32 0.0, %v2684
        %2686 = vmatprep.mubr.f32.mxu0 0.0
        %2687 = vmatmul.mubr.f32.gmra.mrb[0].mxu0 %v2436
        %v2688 = vpop.f32.mrb[0].mxu0
        %v2689 = vadd.f32 0.0, %v2688
        %v2690 = vpop.f32.mrb[0].mxu0
        %v2691 = vadd.f32 0.0, %v2690
        %2692 = vmatprep.mubr.f32.mxu0 0.0
        %2693 = vmatmul.mubr.f32.gmra.mrb[0].mxu0 %v2437
        %v2694 = vpop.f32.mrb[0].mxu0
        %v2695 = vadd.f32 0.0, %v2694
        %v2696 = vpop.f32.mrb[0].mxu0
        %v2697 = vadd.f32 0.0, %v2696
        %2698 = vmatprep.mubr.f32.mxu0 0.0
        %2699 = vmatmul.mubr.f32.gmra.mrb[0].mxu0 %v2438
        %v2700 = vpop.f32.mrb[0].mxu0
        %v2701 = vadd.f32 0.0, %v2700
        %v2702 = vpop.f32.mrb[0].mxu0
        %v2703 = vadd.f32 0.0, %v2702
        %2704 = vmatprep.mubr.f32.mxu0 0.0
        %2705 = vmatmul.mubr.f32.gmra.mrb[0].mxu0 %v2439
        %v2706 = vpop.f32.mrb[0].mxu0
        %v2707 = vadd.f32 0.0, %v2706
        %v2708 = vpop.f32.mrb[0].mxu0
        %v2709 = vadd.f32 0.0, %v2708
        %2710 = vmatprep.mubr.f32.mxu0 0.0
        %2711 = vmatmul.mubr.f32.gmra.mrb[0].mxu0 %v2440
        %v2712 = vpop.f32.mrb[0].mxu0
        %v2713 = vadd.f32 0.0, %v2712
        %v2714 = vpop.f32.mrb[0].mxu0
        %v2715 = vadd.f32 0.0, %v2714
        %2716 = vmatprep.mubr.f32.mxu0 0.0
        %2717 = vmatmul.mubr.f32.gmra.mrb[0].mxu0 %v2441
        %v2718 = vpop.f32.mrb[0].mxu0
        %v2719 = vadd.f32 0.0, %v2718
        %v2720 = vpop.f32.mrb[0].mxu0
        %v2721 = vadd.f32 0.0, %v2720
        %2722 = vmatprep.mubr.f32.mxu0 0.0
        %2723 = vmatmul.mubr.f32.gmra.mrb[0].mxu0 %v2442
        %v2724 = vpop.f32.mrb[0].mxu0
        %v2725 = vadd.f32 0.0, %v2724
        %v2726 = vpop.f32.mrb[0].mxu0
        %v2727 = vadd.f32 0.0, %v2726
        %2728 = vmatprep.mubr.f32.mxu0 0.0
        %2729 = vmatmul.mubr.f32.gmra.mrb[0].mxu0 %v2443
        %v2730 = vpop.f32.mrb[0].mxu0
        %v2731 = vadd.f32 0.0, %v2730
        %v2732 = vpop.f32.mrb[0].mxu0
        %v2733 = vadd.f32 0.0, %v2732
        %2734 = vmatprep.mubr.f32.mxu0 0.0
        %2735 = vmatmul.mubr.f32.gmra.mrb[0].mxu0 %v2444
        %v2736 = vpop.f32.mrb[0].mxu0
        %v2737 = vadd.f32 0.0, %v2736
        %v2738 = vpop.f32.mrb[0].mxu0
        %v2739 = vadd.f32 0.0, %v2738
        %2740 = vmatprep.mubr.f32.mxu0 0.0
        %2741 = vmatmul.mubr.f32.gmra.mrb[0].mxu0 %v2445
        %v2742 = vpop.f32.mrb[0].mxu0
        %v2743 = vadd.f32 0.0, %v2742
        %v2744 = vpop.f32.mrb[0].mxu0
        %v2745 = vadd.f32 0.0, %v2744
        %2746 = vmatprep.mubr.f32.mxu0 0.0
        %2747 = vmatmul.mubr.f32.gmra.mrb[0].mxu0 %v2446
        %v2748 = vpop.f32.mrb[0].mxu0
        %v2749 = vadd.f32 0.0, %v2748
        %v2750 = vpop.f32.mrb[0].mxu0
        %v2751 = vadd.f32 0.0, %v2750
        %2752 = vmatprep.mubr.f32.mxu0 0.0
        %2753 = vmatmul.mubr.f32.gmra.mrb[0].mxu0 %v2447
        %v2754 = vpop.f32.mrb[0].mxu0
        %v2755 = vadd.f32 0.0, %v2754
        %v2756 = vpop.f32.mrb[0].mxu0
        %v2757 = vadd.f32 0.0, %v2756
        %2758 = vmatprep.mubr.f32.mxu0 0.0
        %2759 = vmatmul.mubr.f32.gmra.mrb[0].mxu0 %v2448
        %v2760 = vpop.f32.mrb[0].mxu0
        %v2761 = vadd.f32 0.0, %v2760
        %v2762 = vpop.f32.mrb[0].mxu0
        %v2763 = vadd.f32 0.0, %v2762
        %2764 = vmatprep.mubr.f32.mxu0 0.0
        %2765 = vmatmul.mubr.f32.gmra.mrb[0].mxu0 %v2449
        %v2766 = vpop.f32.mrb[0].mxu0
        %v2767 = vadd.f32 0.0, %v2766
        %v2768 = vpop.f32.mrb[0].mxu0
        %v2769 = vadd.f32 0.0, %v2768
        %2770 = vdwg.mxu0
        %2771 = vmatprep.subr.mxu0 %v2453
        %2772 = vmatpush1.msra.mxu0 %v2452
        %2773 = vmatprep.subr.mxu0 %v2457
        %2774 = vmatpush1.msra.mxu0 %v2456
        %2775 = vmatprep.subr.mxu0 %v2461
        %2776 = vmatpush1.msra.mxu0 %v2460
        %2777 = vmatprep.subr.mxu0 %v2465
        %2778 = vmatpush1.msra.mxu0 %v2464
        %2779 = vmatprep.subr.mxu0 %v2469
        %2780 = vmatpush1.msra.mxu0 %v2468
        %2781 = vmatprep.subr.mxu0 %v2473
        %2782 = vmatpush1.msra.mxu0 %v2472
        %2783 = vmatprep.subr.mxu0 %v2477
        %2784 = vmatpush1.msra.mxu0 %v2476
        %2785 = vmatprep.subr.mxu0 %v2481
        %2786 = vmatpush1.msra.mxu0 %v2480
        %2787 = vmatprep.subr.mxu0 %v2485
        %2788 = vmatpush1.msra.mxu0 %v2484
        %2789 = vmatprep.subr.mxu0 %v2489
        %2790 = vmatpush1.msra.mxu0 %v2488
        %2791 = vmatprep.subr.mxu0 %v2493
        %2792 = vmatpush1.msra.mxu0 %v2492
        %2793 = vmatprep.subr.mxu0 %v2497
        %2794 = vmatpush1.msra.mxu0 %v2496
        %2795 = vmatprep.subr.mxu0 %v2501
        %2796 = vmatpush1.msra.mxu0 %v2500
        %2797 = vmatprep.subr.mxu0 %v2505
        %2798 = vmatpush1.msra.mxu0 %v2504
        %2799 = vmatprep.subr.mxu0 %v2509
        %2800 = vmatpush1.msra.mxu0 %v2508
        %2801 = vmatprep.subr.mxu0 %v2513
        %2802 = vmatpush1.msra.mxu0 %v2512
        %2803 = vmatprep.subr.mxu0 0.0
        %2804 = vmatpush1.msra.mxu0 0.0
        %2805 = vmatprep.subr.mxu0 0.0
        %2806 = vmatpush1.msra.mxu0 0.0
        %2807 = vmatprep.subr.mxu0 0.0
        %2808 = vmatpush1.msra.mxu0 0.0
        %2809 = vmatprep.subr.mxu0 0.0
        %2810 = vmatpush1.msra.mxu0 0.0
        %2811 = vmatprep.subr.mxu0 0.0
        %2812 = vmatpush1.msra.mxu0 0.0
        %2813 = vmatprep.subr.mxu0 0.0
        %2814 = vmatpush1.msra.mxu0 0.0
        %2815 = vmatprep.subr.mxu0 0.0
        %2816 = vmatpush1.msra.mxu0 0.0
        %2817 = vmatprep.subr.mxu0 0.0
        %2818 = vmatpush1.msra.mxu0 0.0
        %2819 = vmatprep.subr.mxu0 0.0
        %2820 = vmatpush1.msra.mxu0 0.0
        %2821 = vmatprep.subr.mxu0 0.0
        %2822 = vmatpush1.msra.mxu0 0.0
        %2823 = vmatprep.subr.mxu0 0.0
        %2824 = vmatpush1.msra.mxu0 0.0
        %2825 = vmatprep.subr.mxu0 0.0
        %2826 = vmatpush1.msra.mxu0 0.0
        %2827 = vmatprep.subr.mxu0 0.0
        %2828 = vmatpush1.msra.mxu0 0.0
        %2829 = vmatprep.subr.mxu0 0.0
        %2830 = vmatpush1.msra.mxu0 0.0
        %2831 = vmatprep.subr.mxu0 0.0
        %2832 = vmatpush1.msra.mxu0 0.0
        %2833 = vmatprep.subr.mxu0 0.0
        %2834 = vmatpush1.msra.mxu0 0.0
        %2835 = vmatprep.mubr.f32.mxu0 0.0
        %2836 = vmatmul.mubr.f32.gmra.mrb[0].mxu0 %v2418
        %v2837 = vpop.f32.mrb[0].mxu0
        %v2838 = vadd.f32 0.0, %v2837
        %v2839 = vpop.f32.mrb[0].mxu0
        %v2840 = vadd.f32 0.0, %v2839
        %2841 = vmatprep.mubr.f32.mxu0 0.0
        %2842 = vmatmul.mubr.f32.gmra.mrb[0].mxu0 %v2419
        %v2843 = vpop.f32.mrb[0].mxu0
        %v2844 = vadd.f32 0.0, %v2843
        %v2845 = vpop.f32.mrb[0].mxu0
        %v2846 = vadd.f32 0.0, %v2845
        %2847 = vmatprep.mubr.f32.mxu0 0.0
        %2848 = vmatmul.mubr.f32.gmra.mrb[0].mxu0 %v2420
        %v2849 = vpop.f32.mrb[0].mxu0
        %v2850 = vadd.f32 0.0, %v2849
        %v2851 = vpop.f32.mrb[0].mxu0
        %v2852 = vadd.f32 0.0, %v2851
        %2853 = vmatprep.mubr.f32.mxu0 0.0
        %2854 = vmatmul.mubr.f32.gmra.mrb[0].mxu0 %v2421
        %v2855 = vpop.f32.mrb[0].mxu0
        %v2856 = vadd.f32 0.0, %v2855
        %v2857 = vpop.f32.mrb[0].mxu0
        %v2858 = vadd.f32 0.0, %v2857
        %2859 = vmatprep.mubr.f32.mxu0 0.0
        %2860 = vmatmul.mubr.f32.gmra.mrb[0].mxu0 %v2422
        %v2861 = vpop.f32.mrb[0].mxu0
        %v2862 = vadd.f32 0.0, %v2861
        %v2863 = vpop.f32.mrb[0].mxu0
        %v2864 = vadd.f32 0.0, %v2863
        %2865 = vmatprep.mubr.f32.mxu0 0.0
        %2866 = vmatmul.mubr.f32.gmra.mrb[0].mxu0 %v2423
        %v2867 = vpop.f32.mrb[0].mxu0
        %v2868 = vadd.f32 0.0, %v2867
        %v2869 = vpop.f32.mrb[0].mxu0
        %v2870 = vadd.f32 0.0, %v2869
        %2871 = vmatprep.mubr.f32.mxu0 0.0
        %2872 = vmatmul.mubr.f32.gmra.mrb[0].mxu0 %v2424
        %v2873 = vpop.f32.mrb[0].mxu0
        %v2874 = vadd.f32 0.0, %v2873
        %v2875 = vpop.f32.mrb[0].mxu0
        %v2876 = vadd.f32 0.0, %v2875
        %2877 = vmatprep.mubr.f32.mxu0 0.0
        %2878 = vmatmul.mubr.f32.gmra.mrb[0].mxu0 %v2425
        %v2879 = vpop.f32.mrb[0].mxu0
        %v2880 = vadd.f32 0.0, %v2879
        %v2881 = vpop.f32.mrb[0].mxu0
        %v2882 = vadd.f32 0.0, %v2881
        %2883 = vmatprep.mubr.f32.mxu0 0.0
        %2884 = vmatmul.mubr.f32.gmra.mrb[0].mxu0 %v2426
        %v2885 = vpop.f32.mrb[0].mxu0
        %v2886 = vadd.f32 0.0, %v2885
        %v2887 = vpop.f32.mrb[0].mxu0
        %v2888 = vadd.f32 0.0, %v2887
        %2889 = vmatprep.mubr.f32.mxu0 0.0
        %2890 = vmatmul.mubr.f32.gmra.mrb[0].mxu0 %v2427
        %v2891 = vpop.f32.mrb[0].mxu0
        %v2892 = vadd.f32 0.0, %v2891
        %v2893 = vpop.f32.mrb[0].mxu0
        %v2894 = vadd.f32 0.0, %v2893
        %2895 = vmatprep.mubr.f32.mxu0 0.0
        %2896 = vmatmul.mubr.f32.gmra.mrb[0].mxu0 %v2428
        %v2897 = vpop.f32.mrb[0].mxu0
        %v2898 = vadd.f32 0.0, %v2897
        %v2899 = vpop.f32.mrb[0].mxu0
        %v2900 = vadd.f32 0.0, %v2899
        %2901 = vmatprep.mubr.f32.mxu0 0.0
        %2902 = vmatmul.mubr.f32.gmra.mrb[0].mxu0 %v2429
        %v2903 = vpop.f32.mrb[0].mxu0
        %v2904 = vadd.f32 0.0, %v2903
        %v2905 = vpop.f32.mrb[0].mxu0
        %v2906 = vadd.f32 0.0, %v2905
        %2907 = vmatprep.mubr.f32.mxu0 0.0
        %2908 = vmatmul.mubr.f32.gmra.mrb[0].mxu0 %v2430
        %v2909 = vpop.f32.mrb[0].mxu0
        %v2910 = vadd.f32 0.0, %v2909
        %v2911 = vpop.f32.mrb[0].mxu0
        %v2912 = vadd.f32 0.0, %v2911
        %2913 = vmatprep.mubr.f32.mxu0 0.0
        %2914 = vmatmul.mubr.f32.gmra.mrb[0].mxu0 %v2431
        %v2915 = vpop.f32.mrb[0].mxu0
        %v2916 = vadd.f32 0.0, %v2915
        %v2917 = vpop.f32.mrb[0].mxu0
        %v2918 = vadd.f32 0.0, %v2917
        %2919 = vmatprep.mubr.f32.mxu0 0.0
        %2920 = vmatmul.mubr.f32.gmra.mrb[0].mxu0 %v2432
        %v2921 = vpop.f32.mrb[0].mxu0
        %v2922 = vadd.f32 0.0, %v2921
        %v2923 = vpop.f32.mrb[0].mxu0
        %v2924 = vadd.f32 0.0, %v2923
        %2925 = vmatprep.mubr.f32.mxu0 0.0
        %2926 = vmatmul.mubr.f32.gmra.mrb[0].mxu0 %v2433
        %v2927 = vpop.f32.mrb[0].mxu0
        %v2928 = vadd.f32 0.0, %v2927
        %v2929 = vpop.f32.mrb[0].mxu0
        %v2930 = vadd.f32 0.0, %v2929
        %2931 = vmatprep.mubr.f32.mxu0 0.0
        %2932 = vmatmul.mubr.f32.gmra.mrb[0].mxu0 %v2434
        %v2933 = vpop.f32.mrb[0].mxu0
        %v2934 = vadd.f32 0.0, %v2933
        %v2935 = vpop.f32.mrb[0].mxu0
        %v2936 = vadd.f32 0.0, %v2935
        %2937 = vmatprep.mubr.f32.mxu0 0.0
        %2938 = vmatmul.mubr.f32.gmra.mrb[0].mxu0 %v2435
        %v2939 = vpop.f32.mrb[0].mxu0
        %v2940 = vadd.f32 0.0, %v2939
        %v2941 = vpop.f32.mrb[0].mxu0
        %v2942 = vadd.f32 0.0, %v2941
        %2943 = vmatprep.mubr.f32.mxu0 0.0
        %2944 = vmatmul.mubr.f32.gmra.mrb[0].mxu0 %v2436
        %v2945 = vpop.f32.mrb[0].mxu0
        %v2946 = vadd.f32 0.0, %v2945
        %v2947 = vpop.f32.mrb[0].mxu0
        %v2948 = vadd.f32 0.0, %v2947
        %2949 = vmatprep.mubr.f32.mxu0 0.0
        %2950 = vmatmul.mubr.f32.gmra.mrb[0].mxu0 %v2437
        %v2951 = vpop.f32.mrb[0].mxu0
        %v2952 = vadd.f32 0.0, %v2951
        %v2953 = vpop.f32.mrb[0].mxu0
        %v2954 = vadd.f32 0.0, %v2953
        %2955 = vmatprep.mubr.f32.mxu0 0.0
        %2956 = vmatmul.mubr.f32.gmra.mrb[0].mxu0 %v2438
        %v2957 = vpop.f32.mrb[0].mxu0
        %v2958 = vadd.f32 0.0, %v2957
        %v2959 = vpop.f32.mrb[0].mxu0
        %v2960 = vadd.f32 0.0, %v2959
        %2961 = vmatprep.mubr.f32.mxu0 0.0
        %2962 = vmatmul.mubr.f32.gmra.mrb[0].mxu0 %v2439
        %v2963 = vpop.f32.mrb[0].mxu0
        %v2964 = vadd.f32 0.0, %v2963
        %v2965 = vpop.f32.mrb[0].mxu0
        %v2966 = vadd.f32 0.0, %v2965
        %2967 = vmatprep.mubr.f32.mxu0 0.0
        %2968 = vmatmul.mubr.f32.gmra.mrb[0].mxu0 %v2440
        %v2969 = vpop.f32.mrb[0].mxu0
        %v2970 = vadd.f32 0.0, %v2969
        %v2971 = vpop.f32.mrb[0].mxu0
        %v2972 = vadd.f32 0.0, %v2971
        %2973 = vmatprep.mubr.f32.mxu0 0.0
        %2974 = vmatmul.mubr.f32.gmra.mrb[0].mxu0 %v2441
        %v2975 = vpop.f32.mrb[0].mxu0
        %v2976 = vadd.f32 0.0, %v2975
        %v2977 = vpop.f32.mrb[0].mxu0
        %v2978 = vadd.f32 0.0, %v2977
        %2979 = vmatprep.mubr.f32.mxu0 0.0
        %2980 = vmatmul.mubr.f32.gmra.mrb[0].mxu0 %v2442
        %v2981 = vpop.f32.mrb[0].mxu0
        %v2982 = vadd.f32 0.0, %v2981
        %v2983 = vpop.f32.mrb[0].mxu0
        %v2984 = vadd.f32 0.0, %v2983
        %2985 = vmatprep.mubr.f32.mxu0 0.0
        %2986 = vmatmul.mubr.f32.gmra.mrb[0].mxu0 %v2443
        %v2987 = vpop.f32.mrb[0].mxu0
        %v2988 = vadd.f32 0.0, %v2987
        %v2989 = vpop.f32.mrb[0].mxu0
        %v2990 = vadd.f32 0.0, %v2989
        %2991 = vmatprep.mubr.f32.mxu0 0.0
        %2992 = vmatmul.mubr.f32.gmra.mrb[0].mxu0 %v2444
        %v2993 = vpop.f32.mrb[0].mxu0
        %v2994 = vadd.f32 0.0, %v2993
        %v2995 = vpop.f32.mrb[0].mxu0
        %v2996 = vadd.f32 0.0, %v2995
        %2997 = vmatprep.mubr.f32.mxu0 0.0
        %2998 = vmatmul.mubr.f32.gmra.mrb[0].mxu0 %v2445
        %v2999 = vpop.f32.mrb[0].mxu0
        %v3000 = vadd.f32 0.0, %v2999
        %v3001 = vpop.f32.mrb[0].mxu0
        %v3002 = vadd.f32 0.0, %v3001
        %3003 = vmatprep.mubr.f32.mxu0 0.0
        %3004 = vmatmul.mubr.f32.gmra.mrb[0].mxu0 %v2446
        %v3005 = vpop.f32.mrb[0].mxu0
        %v3006 = vadd.f32 0.0, %v3005
        %v3007 = vpop.f32.mrb[0].mxu0
        %v3008 = vadd.f32 0.0, %v3007
        %3009 = vmatprep.mubr.f32.mxu0 0.0
        %3010 = vmatmul.mubr.f32.gmra.mrb[0].mxu0 %v2447
        %v3011 = vpop.f32.mrb[0].mxu0
        %v3012 = vadd.f32 0.0, %v3011
        %v3013 = vpop.f32.mrb[0].mxu0
        %v3014 = vadd.f32 0.0, %v3013
        %3015 = vmatprep.mubr.f32.mxu0 0.0
        %3016 = vmatmul.mubr.f32.gmra.mrb[0].mxu0 %v2448
        %v3017 = vpop.f32.mrb[0].mxu0
        %v3018 = vadd.f32 0.0, %v3017
        %v3019 = vpop.f32.mrb[0].mxu0
        %v3020 = vadd.f32 0.0, %v3019
        %3021 = vmatprep.mubr.f32.mxu0 0.0
        %3022 = vmatmul.mubr.f32.gmra.mrb[0].mxu0 %v2449
        %v3023 = vpop.f32.mrb[0].mxu0
        %v3024 = vadd.f32 0.0, %v3023
        %v3025 = vpop.f32.mrb[0].mxu0
        %v3026 = vadd.f32 0.0, %v3025
        %3027 = vdwg.mxu0
        %v3028 = vmax.f32 %v2581, 0.0
        %v3029 = vmax.f32 %v2583, 0.0
        %v3030 = vmax.f32 %v2838, 0.0
        %v3031 = vmax.f32 %v2840, 0.0
        %v3032 = vmax.f32 %v2587, 0.0
        %v3033 = vmax.f32 %v2589, 0.0
        %v3034 = vmax.f32 %v2844, 0.0
        %v3035 = vmax.f32 %v2846, 0.0
        %v3036 = vmax.f32 %v2593, 0.0
        %v3037 = vmax.f32 %v2595, 0.0
        %v3038 = vmax.f32 %v2850, 0.0
        %v3039 = vmax.f32 %v2852, 0.0
        %v3040 = vmax.f32 %v2599, 0.0
        %v3041 = vmax.f32 %v2601, 0.0
        %v3042 = vmax.f32 %v2856, 0.0
        %v3043 = vmax.f32 %v2858, 0.0
        %v3044 = vmax.f32 %v2605, 0.0
        %v3045 = vmax.f32 %v2607, 0.0
        %v3046 = vmax.f32 %v2862, 0.0
        %v3047 = vmax.f32 %v2864, 0.0
        %v3048 = vmax.f32 %v2611, 0.0
        %v3049 = vmax.f32 %v2613, 0.0
        %v3050 = vmax.f32 %v2868, 0.0
        %v3051 = vmax.f32 %v2870, 0.0
        %v3052 = vmax.f32 %v2617, 0.0
        %v3053 = vmax.f32 %v2619, 0.0
        %v3054 = vmax.f32 %v2874, 0.0
        %v3055 = vmax.f32 %v2876, 0.0
        %v3056 = vmax.f32 %v2623, 0.0
        %v3057 = vmax.f32 %v2625, 0.0
        %v3058 = vmax.f32 %v2880, 0.0
        %v3059 = vmax.f32 %v2882, 0.0
        %v3060 = vmax.f32 %v2629, 0.0
        %v3061 = vmax.f32 %v2631, 0.0
        %v3062 = vmax.f32 %v2886, 0.0
        %v3063 = vmax.f32 %v2888, 0.0
        %v3064 = vmax.f32 %v2635, 0.0
        %v3065 = vmax.f32 %v2637, 0.0
        %v3066 = vmax.f32 %v2892, 0.0
        %v3067 = vmax.f32 %v2894, 0.0
        %v3068 = vmax.f32 %v2641, 0.0
        %v3069 = vmax.f32 %v2643, 0.0
        %v3070 = vmax.f32 %v2898, 0.0
        %v3071 = vmax.f32 %v2900, 0.0
        %v3072 = vmax.f32 %v2647, 0.0
        %v3073 = vmax.f32 %v2649, 0.0
        %v3074 = vmax.f32 %v2904, 0.0
        %v3075 = vmax.f32 %v2906, 0.0
        %v3076 = vmax.f32 %v2653, 0.0
        %v3077 = vmax.f32 %v2655, 0.0
        %v3078 = vmax.f32 %v2910, 0.0
        %v3079 = vmax.f32 %v2912, 0.0
        %v3080 = vmax.f32 %v2659, 0.0
        %v3081 = vmax.f32 %v2661, 0.0
        %v3082 = vmax.f32 %v2916, 0.0
        %v3083 = vmax.f32 %v2918, 0.0
        %v3084 = vmax.f32 %v2665, 0.0
        %v3085 = vmax.f32 %v2667, 0.0
        %v3086 = vmax.f32 %v2922, 0.0
        %v3087 = vmax.f32 %v2924, 0.0
        %v3088 = vmax.f32 %v2671, 0.0
        %v3089 = vmax.f32 %v2673, 0.0
        %v3090 = vmax.f32 %v2928, 0.0
        %v3091 = vmax.f32 %v2930, 0.0
        %v3092 = vmax.f32 %v2677, 0.0
        %v3093 = vmax.f32 %v2679, 0.0
        %v3094 = vmax.f32 %v2934, 0.0
        %v3095 = vmax.f32 %v2936, 0.0
        %v3096 = vmax.f32 %v2683, 0.0
        %v3097 = vmax.f32 %v2685, 0.0
        %v3098 = vmax.f32 %v2940, 0.0
        %v3099 = vmax.f32 %v2942, 0.0
        %v3100 = vmax.f32 %v2689, 0.0
        %v3101 = vmax.f32 %v2691, 0.0
        %v3102 = vmax.f32 %v2946, 0.0
        %v3103 = vmax.f32 %v2948, 0.0
        %v3104 = vmax.f32 %v2695, 0.0
        %v3105 = vmax.f32 %v2697, 0.0
        %v3106 = vmax.f32 %v2952, 0.0
        %v3107 = vmax.f32 %v2954, 0.0
        %v3108 = vmax.f32 %v2701, 0.0
        %v3109 = vmax.f32 %v2703, 0.0
        %v3110 = vmax.f32 %v2958, 0.0
        %v3111 = vmax.f32 %v2960, 0.0
        %v3112 = vmax.f32 %v2707, 0.0
        %v3113 = vmax.f32 %v2709, 0.0
        %v3114 = vmax.f32 %v2964, 0.0
        %v3115 = vmax.f32 %v2966, 0.0
        %v3116 = vmax.f32 %v2713, 0.0
        %v3117 = vmax.f32 %v2715, 0.0
        %v3118 = vmax.f32 %v2970, 0.0
        %v3119 = vmax.f32 %v2972, 0.0
        %v3120 = vmax.f32 %v2719, 0.0
        %v3121 = vmax.f32 %v2721, 0.0
        %v3122 = vmax.f32 %v2976, 0.0
        %v3123 = vmax.f32 %v2978, 0.0
        %v3124 = vmax.f32 %v2725, 0.0
        %v3125 = vmax.f32 %v2727, 0.0
        %v3126 = vmax.f32 %v2982, 0.0
        %v3127 = vmax.f32 %v2984, 0.0
        %v3128 = vmax.f32 %v2731, 0.0
        %v3129 = vmax.f32 %v2733, 0.0
        %v3130 = vmax.f32 %v2988, 0.0
        %v3131 = vmax.f32 %v2990, 0.0
        %v3132 = vmax.f32 %v2737, 0.0
        %v3133 = vmax.f32 %v2739, 0.0
        %v3134 = vmax.f32 %v2994, 0.0
        %v3135 = vmax.f32 %v2996, 0.0
        %v3136 = vmax.f32 %v2743, 0.0
        %v3137 = vmax.f32 %v2745, 0.0
        %v3138 = vmax.f32 %v3000, 0.0
        %v3139 = vmax.f32 %v3002, 0.0
        %v3140 = vmax.f32 %v2749, 0.0
        %v3141 = vmax.f32 %v2751, 0.0
        %v3142 = vmax.f32 %v3006, 0.0
        %v3143 = vmax.f32 %v3008, 0.0
        %v3144 = vmax.f32 %v2755, 0.0
        %v3145 = vmax.f32 %v2757, 0.0
        %v3146 = vmax.f32 %v3012, 0.0
        %v3147 = vmax.f32 %v3014, 0.0
        %v3148 = vmax.f32 %v2761, 0.0
        %v3149 = vmax.f32 %v2763, 0.0
        %v3150 = vmax.f32 %v3018, 0.0
        %v3151 = vmax.f32 %v3020, 0.0
        %v3152 = vmax.f32 %v2767, 0.0
        %v3153 = vmax.f32 %v2769, 0.0
        %v3154 = vmax.f32 %v3024, 0.0
        %v3155 = vmax.f32 %v3026, 0.0
        %v3156 = vld [vmem:[#allocation11] sm:$0xff]
        %v3157 = vld [vmem:[#allocation11 + $0x8] sm:$0xff]
        %v3158 = vld [vmem:[#allocation11 + $0x10] sm:$0xff]
        %v3159 = vld [vmem:[#allocation11 + $0x18] sm:$0xff]
        %v3160 = vld [vmem:[#allocation11 + $0x20] sm:$0xff]
        %v3161 = vld [vmem:[#allocation11 + $0x28] sm:$0xff]
        %v3162 = vld [vmem:[#allocation11 + $0x30] sm:$0xff]
        %v3163 = vld [vmem:[#allocation11 + $0x38] sm:$0xff]
        %v3164 = vld [vmem:[#allocation11 + $0x40] sm:$0xff]
        %v3165 = vld [vmem:[#allocation11 + $0x48] sm:$0xff]
        %v3166 = vld [vmem:[#allocation11 + $0x50] sm:$0xff]
        %v3167 = vld [vmem:[#allocation11 + $0x58] sm:$0xff]
        %v3168 = vld [vmem:[#allocation11 + $0x60] sm:$0xff]
        %v3169 = vld [vmem:[#allocation11 + $0x68] sm:$0xff]
        %v3170 = vld [vmem:[#allocation11 + $0x70] sm:$0xff]
        %v3171 = vld [vmem:[#allocation11 + $0x78] sm:$0xff]
        %v3172 = vld [vmem:[#allocation11 + $0x80] sm:$0xff]
        %v3173 = vld [vmem:[#allocation11 + $0x88] sm:$0xff]
        %v3174 = vld [vmem:[#allocation11 + $0x90] sm:$0xff]
        %v3175 = vld [vmem:[#allocation11 + $0x98] sm:$0xff]
        %v3176 = vld [vmem:[#allocation11 + $0xa0] sm:$0xff]
        %v3177 = vld [vmem:[#allocation11 + $0xa8] sm:$0xff]
        %v3178 = vld [vmem:[#allocation11 + $0xb0] sm:$0xff]
        %v3179 = vld [vmem:[#allocation11 + $0xb8] sm:$0xff]
        %v3180 = vld [vmem:[#allocation11 + $0xc0] sm:$0xff]
        %v3181 = vld [vmem:[#allocation11 + $0xc8] sm:$0xff]
        %v3182 = vld [vmem:[#allocation11 + $0xd0] sm:$0xff]
        %v3183 = vld [vmem:[#allocation11 + $0xd8] sm:$0xff]
        %v3184 = vld [vmem:[#allocation11 + $0xe0] sm:$0xff]
        %v3185 = vld [vmem:[#allocation11 + $0xe8] sm:$0xff]
        %v3186 = vld [vmem:[#allocation11 + $0xf0] sm:$0xff]
        %v3187 = vld [vmem:[#allocation11 + $0xf8] sm:$0xff]
        %v3188 = vld [vmem:[#allocation11 + $0x100] sm:$0xff]
        %v3189 = vld [vmem:[#allocation11 + $0x108] sm:$0xff]
        %v3190 = vld [vmem:[#allocation11 + $0x110] sm:$0xff]
        %v3191 = vld [vmem:[#allocation11 + $0x118] sm:$0xff]
        %v3192 = vld [vmem:[#allocation11 + $0x120] sm:$0xff]
        %v3193 = vld [vmem:[#allocation11 + $0x128] sm:$0xff]
        %v3194 = vld [vmem:[#allocation11 + $0x130] sm:$0xff]
        %v3195 = vld [vmem:[#allocation11 + $0x138] sm:$0xff]
        %v3196 = vld [vmem:[#allocation11 + $0x140] sm:$0xff]
        %v3197 = vld [vmem:[#allocation11 + $0x148] sm:$0xff]
        %v3198 = vld [vmem:[#allocation11 + $0x150] sm:$0xff]
        %v3199 = vld [vmem:[#allocation11 + $0x158] sm:$0xff]
        %v3200 = vld [vmem:[#allocation11 + $0x160] sm:$0xff]
        %v3201 = vld [vmem:[#allocation11 + $0x168] sm:$0xff]
        %v3202 = vld [vmem:[#allocation11 + $0x170] sm:$0xff]
        %v3203 = vld [vmem:[#allocation11 + $0x178] sm:$0xff]
        %v3204 = vld [vmem:[#allocation11 + $0x180] sm:$0xff]
        %v3205 = vld [vmem:[#allocation11 + $0x188] sm:$0xff]
        %v3206 = vld [vmem:[#allocation11 + $0x190] sm:$0xff]
        %v3207 = vld [vmem:[#allocation11 + $0x198] sm:$0xff]
        %v3208 = vld [vmem:[#allocation11 + $0x1a0] sm:$0xff]
        %v3209 = vld [vmem:[#allocation11 + $0x1a8] sm:$0xff]
        %v3210 = vld [vmem:[#allocation11 + $0x1b0] sm:$0xff]
        %v3211 = vld [vmem:[#allocation11 + $0x1b8] sm:$0xff]
        %v3212 = vld [vmem:[#allocation11 + $0x1c0] sm:$0xff]
        %v3213 = vld [vmem:[#allocation11 + $0x1c8] sm:$0xff]
        %v3214 = vld [vmem:[#allocation11 + $0x1d0] sm:$0xff]
        %v3215 = vld [vmem:[#allocation11 + $0x1d8] sm:$0xff]
        %v3216 = vld [vmem:[#allocation11 + $0x1e0] sm:$0xff]
        %v3217 = vld [vmem:[#allocation11 + $0x1e8] sm:$0xff]
        %v3218 = vld [vmem:[#allocation11 + $0x1f0] sm:$0xff]
        %v3219 = vld [vmem:[#allocation11 + $0x1f8] sm:$0xff]
        %3220 = vmatprep.subr.mxu0 0.0
        %3221 = vmatpush1.msra.mxu0 %v3156
        %3222 = vmatprep.subr.mxu0 0.0
        %3223 = vmatpush1.msra.mxu0 %v3157
        %3224 = vmatprep.subr.mxu0 0.0
        %3225 = vmatpush1.msra.mxu0 %v3158
        %3226 = vmatprep.subr.mxu0 0.0
        %3227 = vmatpush1.msra.mxu0 %v3159
        %3228 = vmatprep.subr.mxu0 0.0
        %3229 = vmatpush1.msra.mxu0 %v3160
        %3230 = vmatprep.subr.mxu0 0.0
        %3231 = vmatpush1.msra.mxu0 %v3161
        %3232 = vmatprep.subr.mxu0 0.0
        %3233 = vmatpush1.msra.mxu0 %v3162
        %3234 = vmatprep.subr.mxu0 0.0
        %3235 = vmatpush1.msra.mxu0 %v3163
        %3236 = vmatprep.subr.mxu0 0.0
        %3237 = vmatpush1.msra.mxu0 %v3164
        %3238 = vmatprep.subr.mxu0 0.0
        %3239 = vmatpush1.msra.mxu0 %v3165
        %3240 = vmatprep.subr.mxu0 0.0
        %3241 = vmatpush1.msra.mxu0 %v3166
        %3242 = vmatprep.subr.mxu0 0.0
        %3243 = vmatpush1.msra.mxu0 %v3167
        %3244 = vmatprep.subr.mxu0 0.0
        %3245 = vmatpush1.msra.mxu0 %v3168
        %3246 = vmatprep.subr.mxu0 0.0
        %3247 = vmatpush1.msra.mxu0 %v3169
        %3248 = vmatprep.subr.mxu0 0.0
        %3249 = vmatpush1.msra.mxu0 %v3170
        %3250 = vmatprep.subr.mxu0 0.0
        %3251 = vmatpush1.msra.mxu0 %v3171
        %3252 = vmatprep.subr.mxu0 0.0
        %3253 = vmatpush1.msra.mxu0 %v3172
        %3254 = vmatprep.subr.mxu0 0.0
        %3255 = vmatpush1.msra.mxu0 %v3173
        %3256 = vmatprep.subr.mxu0 0.0
        %3257 = vmatpush1.msra.mxu0 %v3174
        %3258 = vmatprep.subr.mxu0 0.0
        %3259 = vmatpush1.msra.mxu0 %v3175
        %3260 = vmatprep.subr.mxu0 0.0
        %3261 = vmatpush1.msra.mxu0 %v3176
        %3262 = vmatprep.subr.mxu0 0.0
        %3263 = vmatpush1.msra.mxu0 %v3177
        %3264 = vmatprep.subr.mxu0 0.0
        %3265 = vmatpush1.msra.mxu0 %v3178
        %3266 = vmatprep.subr.mxu0 0.0
        %3267 = vmatpush1.msra.mxu0 %v3179
        %3268 = vmatprep.subr.mxu0 0.0
        %3269 = vmatpush1.msra.mxu0 %v3180
        %3270 = vmatprep.subr.mxu0 0.0
        %3271 = vmatpush1.msra.mxu0 %v3181
        %3272 = vmatprep.subr.mxu0 0.0
        %3273 = vmatpush1.msra.mxu0 %v3182
        %3274 = vmatprep.subr.mxu0 0.0
        %3275 = vmatpush1.msra.mxu0 %v3183
        %3276 = vmatprep.subr.mxu0 0.0
        %3277 = vmatpush1.msra.mxu0 %v3184
        %3278 = vmatprep.subr.mxu0 0.0
        %3279 = vmatpush1.msra.mxu0 %v3185
        %3280 = vmatprep.subr.mxu0 0.0
        %3281 = vmatpush1.msra.mxu0 %v3186
        %3282 = vmatprep.subr.mxu0 0.0
        %3283 = vmatpush1.msra.mxu0 %v3187
        %3284 = vmatprep.mubr.f32.mxu0 %v3029
        %3285 = vmatmul.mubr.f32.gmra.mrb[0].mxu0 %v3028
        %v3286 = vpop.f32.mrb[0].mxu0
        %v3287 = vadd.f32 0.0, %v3286
        %v3288 = vpop.f32.mrb[0].mxu0
        %3289 = vmatprep.mubr.f32.mxu0 %v3033
        %3290 = vmatmul.mubr.f32.gmra.mrb[0].mxu0 %v3032
        %v3291 = vpop.f32.mrb[0].mxu0
        %v3292 = vadd.f32 0.0, %v3291
        %v3293 = vpop.f32.mrb[0].mxu0
        %3294 = vmatprep.mubr.f32.mxu0 %v3037
        %3295 = vmatmul.mubr.f32.gmra.mrb[0].mxu0 %v3036
        %v3296 = vpop.f32.mrb[0].mxu0
        %v3297 = vadd.f32 0.0, %v3296
        %v3298 = vpop.f32.mrb[0].mxu0
        %3299 = vmatprep.mubr.f32.mxu0 %v3041
        %3300 = vmatmul.mubr.f32.gmra.mrb[0].mxu0 %v3040
        %v3301 = vpop.f32.mrb[0].mxu0
        %v3302 = vadd.f32 0.0, %v3301
        %v3303 = vpop.f32.mrb[0].mxu0
        %3304 = vmatprep.mubr.f32.mxu0 %v3045
        %3305 = vmatmul.mubr.f32.gmra.mrb[0].mxu0 %v3044
        %v3306 = vpop.f32.mrb[0].mxu0
        %v3307 = vadd.f32 0.0, %v3306
        %v3308 = vpop.f32.mrb[0].mxu0
        %3309 = vmatprep.mubr.f32.mxu0 %v3049
        %3310 = vmatmul.mubr.f32.gmra.mrb[0].mxu0 %v3048
        %v3311 = vpop.f32.mrb[0].mxu0
        %v3312 = vadd.f32 0.0, %v3311
        %v3313 = vpop.f32.mrb[0].mxu0
        %3314 = vmatprep.mubr.f32.mxu0 %v3053
        %3315 = vmatmul.mubr.f32.gmra.mrb[0].mxu0 %v3052
        %v3316 = vpop.f32.mrb[0].mxu0
        %v3317 = vadd.f32 0.0, %v3316
        %v3318 = vpop.f32.mrb[0].mxu0
        %3319 = vmatprep.mubr.f32.mxu0 %v3057
        %3320 = vmatmul.mubr.f32.gmra.mrb[0].mxu0 %v3056
        %v3321 = vpop.f32.mrb[0].mxu0
        %v3322 = vadd.f32 0.0, %v3321
        %v3323 = vpop.f32.mrb[0].mxu0
        %3324 = vmatprep.mubr.f32.mxu0 %v3061
        %3325 = vmatmul.mubr.f32.gmra.mrb[0].mxu0 %v3060
        %v3326 = vpop.f32.mrb[0].mxu0
        %v3327 = vadd.f32 0.0, %v3326
        %v3328 = vpop.f32.mrb[0].mxu0
        %3329 = vmatprep.mubr.f32.mxu0 %v3065
        %3330 = vmatmul.mubr.f32.gmra.mrb[0].mxu0 %v3064
        %v3331 = vpop.f32.mrb[0].mxu0
        %v3332 = vadd.f32 0.0, %v3331
        %v3333 = vpop.f32.mrb[0].mxu0
        %3334 = vmatprep.mubr.f32.mxu0 %v3069
        %3335 = vmatmul.mubr.f32.gmra.mrb[0].mxu0 %v3068
        %v3336 = vpop.f32.mrb[0].mxu0
        %v3337 = vadd.f32 0.0, %v3336
        %v3338 = vpop.f32.mrb[0].mxu0
        %3339 = vmatprep.mubr.f32.mxu0 %v3073
        %3340 = vmatmul.mubr.f32.gmra.mrb[0].mxu0 %v3072
        %v3341 = vpop.f32.mrb[0].mxu0
        %v3342 = vadd.f32 0.0, %v3341
        %v3343 = vpop.f32.mrb[0].mxu0
        %3344 = vmatprep.mubr.f32.mxu0 %v3077
        %3345 = vmatmul.mubr.f32.gmra.mrb[0].mxu0 %v3076
        %v3346 = vpop.f32.mrb[0].mxu0
        %v3347 = vadd.f32 0.0, %v3346
        %v3348 = vpop.f32.mrb[0].mxu0
        %3349 = vmatprep.mubr.f32.mxu0 %v3081
        %3350 = vmatmul.mubr.f32.gmra.mrb[0].mxu0 %v3080
        %v3351 = vpop.f32.mrb[0].mxu0
        %v3352 = vadd.f32 0.0, %v3351
        %v3353 = vpop.f32.mrb[0].mxu0
        %3354 = vmatprep.mubr.f32.mxu0 %v3085
        %3355 = vmatmul.mubr.f32.gmra.mrb[0].mxu0 %v3084
        %v3356 = vpop.f32.mrb[0].mxu0
        %v3357 = vadd.f32 0.0, %v3356
        %v3358 = vpop.f32.mrb[0].mxu0
        %3359 = vmatprep.mubr.f32.mxu0 %v3089
        %3360 = vmatmul.mubr.f32.gmra.mrb[0].mxu0 %v3088
        %v3361 = vpop.f32.mrb[0].mxu0
        %v3362 = vadd.f32 0.0, %v3361
        %v3363 = vpop.f32.mrb[0].mxu0
        %3364 = vmatprep.mubr.f32.mxu0 %v3093
        %3365 = vmatmul.mubr.f32.gmra.mrb[0].mxu0 %v3092
        %v3366 = vpop.f32.mrb[0].mxu0
        %v3367 = vadd.f32 0.0, %v3366
        %v3368 = vpop.f32.mrb[0].mxu0
        %3369 = vmatprep.mubr.f32.mxu0 %v3097
        %3370 = vmatmul.mubr.f32.gmra.mrb[0].mxu0 %v3096
        %v3371 = vpop.f32.mrb[0].mxu0
        %v3372 = vadd.f32 0.0, %v3371
        %v3373 = vpop.f32.mrb[0].mxu0
        %3374 = vmatprep.mubr.f32.mxu0 %v3101
        %3375 = vmatmul.mubr.f32.gmra.mrb[0].mxu0 %v3100
        %v3376 = vpop.f32.mrb[0].mxu0
        %v3377 = vadd.f32 0.0, %v3376
        %v3378 = vpop.f32.mrb[0].mxu0
        %3379 = vmatprep.mubr.f32.mxu0 %v3105
        %3380 = vmatmul.mubr.f32.gmra.mrb[0].mxu0 %v3104
        %v3381 = vpop.f32.mrb[0].mxu0
        %v3382 = vadd.f32 0.0, %v3381
        %v3383 = vpop.f32.mrb[0].mxu0
        %3384 = vmatprep.mubr.f32.mxu0 %v3109
        %3385 = vmatmul.mubr.f32.gmra.mrb[0].mxu0 %v3108
        %v3386 = vpop.f32.mrb[0].mxu0
        %v3387 = vadd.f32 0.0, %v3386
        %v3388 = vpop.f32.mrb[0].mxu0
        %3389 = vmatprep.mubr.f32.mxu0 %v3113
        %3390 = vmatmul.mubr.f32.gmra.mrb[0].mxu0 %v3112
        %v3391 = vpop.f32.mrb[0].mxu0
        %v3392 = vadd.f32 0.0, %v3391
        %v3393 = vpop.f32.mrb[0].mxu0
        %3394 = vmatprep.mubr.f32.mxu0 %v3117
        %3395 = vmatmul.mubr.f32.gmra.mrb[0].mxu0 %v3116
        %v3396 = vpop.f32.mrb[0].mxu0
        %v3397 = vadd.f32 0.0, %v3396
        %v3398 = vpop.f32.mrb[0].mxu0
        %3399 = vmatprep.mubr.f32.mxu0 %v3121
        %3400 = vmatmul.mubr.f32.gmra.mrb[0].mxu0 %v3120
        %v3401 = vpop.f32.mrb[0].mxu0
        %v3402 = vadd.f32 0.0, %v3401
        %v3403 = vpop.f32.mrb[0].mxu0
        %3404 = vmatprep.mubr.f32.mxu0 %v3125
        %3405 = vmatmul.mubr.f32.gmra.mrb[0].mxu0 %v3124
        %v3406 = vpop.f32.mrb[0].mxu0
        %v3407 = vadd.f32 0.0, %v3406
        %v3408 = vpop.f32.mrb[0].mxu0
        %3409 = vmatprep.mubr.f32.mxu0 %v3129
        %3410 = vmatmul.mubr.f32.gmra.mrb[0].mxu0 %v3128
        %v3411 = vpop.f32.mrb[0].mxu0
        %v3412 = vadd.f32 0.0, %v3411
        %v3413 = vpop.f32.mrb[0].mxu0
        %3414 = vmatprep.mubr.f32.mxu0 %v3133
        %3415 = vmatmul.mubr.f32.gmra.mrb[0].mxu0 %v3132
        %v3416 = vpop.f32.mrb[0].mxu0
        %v3417 = vadd.f32 0.0, %v3416
        %v3418 = vpop.f32.mrb[0].mxu0
        %3419 = vmatprep.mubr.f32.mxu0 %v3137
        %3420 = vmatmul.mubr.f32.gmra.mrb[0].mxu0 %v3136
        %v3421 = vpop.f32.mrb[0].mxu0
        %v3422 = vadd.f32 0.0, %v3421
        %v3423 = vpop.f32.mrb[0].mxu0
        %3424 = vmatprep.mubr.f32.mxu0 %v3141
        %3425 = vmatmul.mubr.f32.gmra.mrb[0].mxu0 %v3140
        %v3426 = vpop.f32.mrb[0].mxu0
        %v3427 = vadd.f32 0.0, %v3426
        %v3428 = vpop.f32.mrb[0].mxu0
        %3429 = vmatprep.mubr.f32.mxu0 %v3145
        %3430 = vmatmul.mubr.f32.gmra.mrb[0].mxu0 %v3144
        %v3431 = vpop.f32.mrb[0].mxu0
        %v3432 = vadd.f32 0.0, %v3431
        %v3433 = vpop.f32.mrb[0].mxu0
        %3434 = vmatprep.mubr.f32.mxu0 %v3149
        %3435 = vmatmul.mubr.f32.gmra.mrb[0].mxu0 %v3148
        %v3436 = vpop.f32.mrb[0].mxu0
        %v3437 = vadd.f32 0.0, %v3436
        %v3438 = vpop.f32.mrb[0].mxu0
        %3439 = vmatprep.mubr.f32.mxu0 %v3153
        %3440 = vmatmul.mubr.f32.gmra.mrb[0].mxu0 %v3152
        %v3441 = vpop.f32.mrb[0].mxu0
        %v3442 = vadd.f32 0.0, %v3441
        %v3443 = vpop.f32.mrb[0].mxu0
        %3444 = vdwg.mxu0
        %3445 = vmatprep.subr.mxu0 0.0
        %3446 = vmatpush1.msra.mxu0 %v3188
        %3447 = vmatprep.subr.mxu0 0.0
        %3448 = vmatpush1.msra.mxu0 %v3189
        %3449 = vmatprep.subr.mxu0 0.0
        %3450 = vmatpush1.msra.mxu0 %v3190
        %3451 = vmatprep.subr.mxu0 0.0
        %3452 = vmatpush1.msra.mxu0 %v3191
        %3453 = vmatprep.subr.mxu0 0.0
        %3454 = vmatpush1.msra.mxu0 %v3192
        %3455 = vmatprep.subr.mxu0 0.0
        %3456 = vmatpush1.msra.mxu0 %v3193
        %3457 = vmatprep.subr.mxu0 0.0
        %3458 = vmatpush1.msra.mxu0 %v3194
        %3459 = vmatprep.subr.mxu0 0.0
        %3460 = vmatpush1.msra.mxu0 %v3195
        %3461 = vmatprep.subr.mxu0 0.0
        %3462 = vmatpush1.msra.mxu0 %v3196
        %3463 = vmatprep.subr.mxu0 0.0
        %3464 = vmatpush1.msra.mxu0 %v3197
        %3465 = vmatprep.subr.mxu0 0.0
        %3466 = vmatpush1.msra.mxu0 %v3198
        %3467 = vmatprep.subr.mxu0 0.0
        %3468 = vmatpush1.msra.mxu0 %v3199
        %3469 = vmatprep.subr.mxu0 0.0
        %3470 = vmatpush1.msra.mxu0 %v3200
        %3471 = vmatprep.subr.mxu0 0.0
        %3472 = vmatpush1.msra.mxu0 %v3201
        %3473 = vmatprep.subr.mxu0 0.0
        %3474 = vmatpush1.msra.mxu0 %v3202
        %3475 = vmatprep.subr.mxu0 0.0
        %3476 = vmatpush1.msra.mxu0 %v3203
        %3477 = vmatprep.subr.mxu0 0.0
        %3478 = vmatpush1.msra.mxu0 %v3204
        %3479 = vmatprep.subr.mxu0 0.0
        %3480 = vmatpush1.msra.mxu0 %v3205
        %3481 = vmatprep.subr.mxu0 0.0
        %3482 = vmatpush1.msra.mxu0 %v3206
        %3483 = vmatprep.subr.mxu0 0.0
        %3484 = vmatpush1.msra.mxu0 %v3207
        %3485 = vmatprep.subr.mxu0 0.0
        %3486 = vmatpush1.msra.mxu0 %v3208
        %3487 = vmatprep.subr.mxu0 0.0
        %3488 = vmatpush1.msra.mxu0 %v3209
        %3489 = vmatprep.subr.mxu0 0.0
        %3490 = vmatpush1.msra.mxu0 %v3210
        %3491 = vmatprep.subr.mxu0 0.0
        %3492 = vmatpush1.msra.mxu0 %v3211
        %3493 = vmatprep.subr.mxu0 0.0
        %3494 = vmatpush1.msra.mxu0 %v3212
        %3495 = vmatprep.subr.mxu0 0.0
        %3496 = vmatpush1.msra.mxu0 %v3213
        %3497 = vmatprep.subr.mxu0 0.0
        %3498 = vmatpush1.msra.mxu0 %v3214
        %3499 = vmatprep.subr.mxu0 0.0
        %3500 = vmatpush1.msra.mxu0 %v3215
        %3501 = vmatprep.subr.mxu0 0.0
        %3502 = vmatpush1.msra.mxu0 %v3216
        %3503 = vmatprep.subr.mxu0 0.0
        %3504 = vmatpush1.msra.mxu0 %v3217
        %3505 = vmatprep.subr.mxu0 0.0
        %3506 = vmatpush1.msra.mxu0 %v3218
        %3507 = vmatprep.subr.mxu0 0.0
        %3508 = vmatpush1.msra.mxu0 %v3219
        %3509 = vmatprep.mubr.f32.mxu0 %v3031
        %3510 = vmatmul.mubr.f32.gmra.mrb[0].mxu0 %v3030
        %v3511 = vpop.f32.mrb[0].mxu0
        %v3512 = vadd.f32 %v3287, %v3511
        %v3513 = vpop.f32.mrb[0].mxu0
        %3514 = vmatprep.mubr.f32.mxu0 %v3035
        %3515 = vmatmul.mubr.f32.gmra.mrb[0].mxu0 %v3034
        %v3516 = vpop.f32.mrb[0].mxu0
        %v3517 = vadd.f32 %v3292, %v3516
        %v3518 = vpop.f32.mrb[0].mxu0
        %3519 = vmatprep.mubr.f32.mxu0 %v3039
        %3520 = vmatmul.mubr.f32.gmra.mrb[0].mxu0 %v3038
        %v3521 = vpop.f32.mrb[0].mxu0
        %v3522 = vadd.f32 %v3297, %v3521
        %v3523 = vpop.f32.mrb[0].mxu0
        %3524 = vmatprep.mubr.f32.mxu0 %v3043
        %3525 = vmatmul.mubr.f32.gmra.mrb[0].mxu0 %v3042
        %v3526 = vpop.f32.mrb[0].mxu0
        %v3527 = vadd.f32 %v3302, %v3526
        %v3528 = vpop.f32.mrb[0].mxu0
        %3529 = vmatprep.mubr.f32.mxu0 %v3047
        %3530 = vmatmul.mubr.f32.gmra.mrb[0].mxu0 %v3046
        %v3531 = vpop.f32.mrb[0].mxu0
        %v3532 = vadd.f32 %v3307, %v3531
        %v3533 = vpop.f32.mrb[0].mxu0
        %3534 = vmatprep.mubr.f32.mxu0 %v3051
        %3535 = vmatmul.mubr.f32.gmra.mrb[0].mxu0 %v3050
        %v3536 = vpop.f32.mrb[0].mxu0
        %v3537 = vadd.f32 %v3312, %v3536
        %v3538 = vpop.f32.mrb[0].mxu0
        %3539 = vmatprep.mubr.f32.mxu0 %v3055
        %3540 = vmatmul.mubr.f32.gmra.mrb[0].mxu0 %v3054
        %v3541 = vpop.f32.mrb[0].mxu0
        %v3542 = vadd.f32 %v3317, %v3541
        %v3543 = vpop.f32.mrb[0].mxu0
        %3544 = vmatprep.mubr.f32.mxu0 %v3059
        %3545 = vmatmul.mubr.f32.gmra.mrb[0].mxu0 %v3058
        %v3546 = vpop.f32.mrb[0].mxu0
        %v3547 = vadd.f32 %v3322, %v3546
        %v3548 = vpop.f32.mrb[0].mxu0
        %3549 = vmatprep.mubr.f32.mxu0 %v3063
        %3550 = vmatmul.mubr.f32.gmra.mrb[0].mxu0 %v3062
        %v3551 = vpop.f32.mrb[0].mxu0
        %v3552 = vadd.f32 %v3327, %v3551
        %v3553 = vpop.f32.mrb[0].mxu0
        %3554 = vmatprep.mubr.f32.mxu0 %v3067
        %3555 = vmatmul.mubr.f32.gmra.mrb[0].mxu0 %v3066
        %v3556 = vpop.f32.mrb[0].mxu0
        %v3557 = vadd.f32 %v3332, %v3556
        %v3558 = vpop.f32.mrb[0].mxu0
        %3559 = vmatprep.mubr.f32.mxu0 %v3071
        %3560 = vmatmul.mubr.f32.gmra.mrb[0].mxu0 %v3070
        %v3561 = vpop.f32.mrb[0].mxu0
        %v3562 = vadd.f32 %v3337, %v3561
        %v3563 = vpop.f32.mrb[0].mxu0
        %3564 = vmatprep.mubr.f32.mxu0 %v3075
        %3565 = vmatmul.mubr.f32.gmra.mrb[0].mxu0 %v3074
        %v3566 = vpop.f32.mrb[0].mxu0
        %v3567 = vadd.f32 %v3342, %v3566
        %v3568 = vpop.f32.mrb[0].mxu0
        %3569 = vmatprep.mubr.f32.mxu0 %v3079
        %3570 = vmatmul.mubr.f32.gmra.mrb[0].mxu0 %v3078
        %v3571 = vpop.f32.mrb[0].mxu0
        %v3572 = vadd.f32 %v3347, %v3571
        %v3573 = vpop.f32.mrb[0].mxu0
        %3574 = vmatprep.mubr.f32.mxu0 %v3083
        %3575 = vmatmul.mubr.f32.gmra.mrb[0].mxu0 %v3082
        %v3576 = vpop.f32.mrb[0].mxu0
        %v3577 = vadd.f32 %v3352, %v3576
        %v3578 = vpop.f32.mrb[0].mxu0
        %3579 = vmatprep.mubr.f32.mxu0 %v3087
        %3580 = vmatmul.mubr.f32.gmra.mrb[0].mxu0 %v3086
        %v3581 = vpop.f32.mrb[0].mxu0
        %v3582 = vadd.f32 %v3357, %v3581
        %v3583 = vpop.f32.mrb[0].mxu0
        %3584 = vmatprep.mubr.f32.mxu0 %v3091
        %3585 = vmatmul.mubr.f32.gmra.mrb[0].mxu0 %v3090
        %v3586 = vpop.f32.mrb[0].mxu0
        %v3587 = vadd.f32 %v3362, %v3586
        %v3588 = vpop.f32.mrb[0].mxu0
        %3589 = vmatprep.mubr.f32.mxu0 %v3095
        %3590 = vmatmul.mubr.f32.gmra.mrb[0].mxu0 %v3094
        %v3591 = vpop.f32.mrb[0].mxu0
        %v3592 = vadd.f32 %v3367, %v3591
        %v3593 = vpop.f32.mrb[0].mxu0
        %3594 = vmatprep.mubr.f32.mxu0 %v3099
        %3595 = vmatmul.mubr.f32.gmra.mrb[0].mxu0 %v3098
        %v3596 = vpop.f32.mrb[0].mxu0
        %v3597 = vadd.f32 %v3372, %v3596
        %v3598 = vpop.f32.mrb[0].mxu0
        %3599 = vmatprep.mubr.f32.mxu0 %v3103
        %3600 = vmatmul.mubr.f32.gmra.mrb[0].mxu0 %v3102
        %v3601 = vpop.f32.mrb[0].mxu0
        %v3602 = vadd.f32 %v3377, %v3601
        %v3603 = vpop.f32.mrb[0].mxu0
        %3604 = vmatprep.mubr.f32.mxu0 %v3107
        %3605 = vmatmul.mubr.f32.gmra.mrb[0].mxu0 %v3106
        %v3606 = vpop.f32.mrb[0].mxu0
        %v3607 = vadd.f32 %v3382, %v3606
        %v3608 = vpop.f32.mrb[0].mxu0
        %3609 = vmatprep.mubr.f32.mxu0 %v3111
        %3610 = vmatmul.mubr.f32.gmra.mrb[0].mxu0 %v3110
        %v3611 = vpop.f32.mrb[0].mxu0
        %v3612 = vadd.f32 %v3387, %v3611
        %v3613 = vpop.f32.mrb[0].mxu0
        %3614 = vmatprep.mubr.f32.mxu0 %v3115
        %3615 = vmatmul.mubr.f32.gmra.mrb[0].mxu0 %v3114
        %v3616 = vpop.f32.mrb[0].mxu0
        %v3617 = vadd.f32 %v3392, %v3616
        %v3618 = vpop.f32.mrb[0].mxu0
        %3619 = vmatprep.mubr.f32.mxu0 %v3119
        %3620 = vmatmul.mubr.f32.gmra.mrb[0].mxu0 %v3118
        %v3621 = vpop.f32.mrb[0].mxu0
        %v3622 = vadd.f32 %v3397, %v3621
        %v3623 = vpop.f32.mrb[0].mxu0
        %3624 = vmatprep.mubr.f32.mxu0 %v3123
        %3625 = vmatmul.mubr.f32.gmra.mrb[0].mxu0 %v3122
        %v3626 = vpop.f32.mrb[0].mxu0
        %v3627 = vadd.f32 %v3402, %v3626
        %v3628 = vpop.f32.mrb[0].mxu0
        %3629 = vmatprep.mubr.f32.mxu0 %v3127
        %3630 = vmatmul.mubr.f32.gmra.mrb[0].mxu0 %v3126
        %v3631 = vpop.f32.mrb[0].mxu0
        %v3632 = vadd.f32 %v3407, %v3631
        %v3633 = vpop.f32.mrb[0].mxu0
        %3634 = vmatprep.mubr.f32.mxu0 %v3131
        %3635 = vmatmul.mubr.f32.gmra.mrb[0].mxu0 %v3130
        %v3636 = vpop.f32.mrb[0].mxu0
        %v3637 = vadd.f32 %v3412, %v3636
        %v3638 = vpop.f32.mrb[0].mxu0
        %3639 = vmatprep.mubr.f32.mxu0 %v3135
        %3640 = vmatmul.mubr.f32.gmra.mrb[0].mxu0 %v3134
        %v3641 = vpop.f32.mrb[0].mxu0
        %v3642 = vadd.f32 %v3417, %v3641
        %v3643 = vpop.f32.mrb[0].mxu0
        %3644 = vmatprep.mubr.f32.mxu0 %v3139
        %3645 = vmatmul.mubr.f32.gmra.mrb[0].mxu0 %v3138
        %v3646 = vpop.f32.mrb[0].mxu0
        %v3647 = vadd.f32 %v3422, %v3646
        %v3648 = vpop.f32.mrb[0].mxu0
        %3649 = vmatprep.mubr.f32.mxu0 %v3143
        %3650 = vmatmul.mubr.f32.gmra.mrb[0].mxu0 %v3142
        %v3651 = vpop.f32.mrb[0].mxu0
        %v3652 = vadd.f32 %v3427, %v3651
        %v3653 = vpop.f32.mrb[0].mxu0
        %3654 = vmatprep.mubr.f32.mxu0 %v3147
        %3655 = vmatmul.mubr.f32.gmra.mrb[0].mxu0 %v3146
        %v3656 = vpop.f32.mrb[0].mxu0
        %v3657 = vadd.f32 %v3432, %v3656
        %v3658 = vpop.f32.mrb[0].mxu0
        %3659 = vmatprep.mubr.f32.mxu0 %v3151
        %3660 = vmatmul.mubr.f32.gmra.mrb[0].mxu0 %v3150
        %v3661 = vpop.f32.mrb[0].mxu0
        %v3662 = vadd.f32 %v3437, %v3661
        %v3663 = vpop.f32.mrb[0].mxu0
        %3664 = vmatprep.mubr.f32.mxu0 %v3155
        %3665 = vmatmul.mubr.f32.gmra.mrb[0].mxu0 %v3154
        %v3666 = vpop.f32.mrb[0].mxu0
        %v3667 = vadd.f32 %v3442, %v3666
        %v3668 = vpop.f32.mrb[0].mxu0
        %3669 = vdwg.mxu0
        %v3670 = vadd.f32 %v2418, %v3512
        %v3671 = vadd.f32 %v2419, %v3517
        %v3672 = vadd.f32 %v2420, %v3522
        %v3673 = vadd.f32 %v2421, %v3527
        %v3674 = vadd.f32 %v2422, %v3532
        %v3675 = vadd.f32 %v2423, %v3537
        %v3676 = vadd.f32 %v2424, %v3542
        %v3677 = vadd.f32 %v2425, %v3547
        %v3678 = vadd.f32 %v2426, %v3552
        %v3679 = vadd.f32 %v2427, %v3557
        %v3680 = vadd.f32 %v2428, %v3562
        %v3681 = vadd.f32 %v2429, %v3567
        %v3682 = vadd.f32 %v2430, %v3572
        %v3683 = vadd.f32 %v2431, %v3577
        %v3684 = vadd.f32 %v2432, %v3582
        %v3685 = vadd.f32 %v2433, %v3587
        %v3686 = vadd.f32 %v2434, %v3592
        %v3687 = vadd.f32 %v2435, %v3597
        %v3688 = vadd.f32 %v2436, %v3602
        %v3689 = vadd.f32 %v2437, %v3607
        %v3690 = vadd.f32 %v2438, %v3612
        %v3691 = vadd.f32 %v2439, %v3617
        %v3692 = vadd.f32 %v2440, %v3622
        %v3693 = vadd.f32 %v2441, %v3627
        %v3694 = vadd.f32 %v2442, %v3632
        %v3695 = vadd.f32 %v2443, %v3637
        %v3696 = vadd.f32 %v2444, %v3642
        %v3697 = vadd.f32 %v2445, %v3647
        %v3698 = vadd.f32 %v2446, %v3652
        %v3699 = vadd.f32 %v2447, %v3657
        %v3700 = vadd.f32 %v2448, %v3662
        %v3701 = vadd.f32 %v2449, %v3667
        %3702 = vst [vmem:[%s476] sm:$0xff] %v3670
        %3703 = vst [vmem:[%s476 + $0x8] sm:$0xff] %v3671
        %3704 = vst [vmem:[%s476 + $0x10] sm:$0xff] %v3672
        %3705 = vst [vmem:[%s476 + $0x18] sm:$0xff] %v3673
        %3706 = vst [vmem:[%s476 + $0x20] sm:$0xff] %v3674
        %3707 = vst [vmem:[%s476 + $0x28] sm:$0xff] %v3675
        %3708 = vst [vmem:[%s476 + $0x30] sm:$0xff] %v3676
        %3709 = vst [vmem:[%s476 + $0x38] sm:$0xff] %v3677
        %3710 = vst [vmem:[%s476 + $0x40] sm:$0xff] %v3678
        %3711 = vst [vmem:[%s476 + $0x48] sm:$0xff] %v3679
        %3712 = vst [vmem:[%s476 + $0x50] sm:$0xff] %v3680
        %3713 = vst [vmem:[%s476 + $0x58] sm:$0xff] %v3681
        %3714 = vst [vmem:[%s476 + $0x60] sm:$0xff] %v3682
        %3715 = vst [vmem:[%s476 + $0x68] sm:$0xff] %v3683
        %3716 = vst [vmem:[%s476 + $0x70] sm:$0xff] %v3684
        %3717 = vst [vmem:[%s476 + $0x78] sm:$0xff] %v3685
        %3718 = vst [vmem:[%s476 + $0x80] sm:$0xff] %v3686
        %3719 = vst [vmem:[%s476 + $0x88] sm:$0xff] %v3687
        %3720 = vst [vmem:[%s476 + $0x90] sm:$0xff] %v3688
        %3721 = vst [vmem:[%s476 + $0x98] sm:$0xff] %v3689
        %3722 = vst [vmem:[%s476 + $0xa0] sm:$0xff] %v3690
        %3723 = vst [vmem:[%s476 + $0xa8] sm:$0xff] %v3691
        %3724 = vst [vmem:[%s476 + $0xb0] sm:$0xff] %v3692
        %3725 = vst [vmem:[%s476 + $0xb8] sm:$0xff] %v3693
        %3726 = vst [vmem:[%s476 + $0xc0] sm:$0xff] %v3694
        %3727 = vst [vmem:[%s476 + $0xc8] sm:$0xff] %v3695
        %3728 = vst [vmem:[%s476 + $0xd0] sm:$0xff] %v3696
        %3729 = vst [vmem:[%s476 + $0xd8] sm:$0xff] %v3697
        %3730 = vst [vmem:[%s476 + $0xe0] sm:$0xff] %v3698
        %3731 = vst [vmem:[%s476 + $0xe8] sm:$0xff] %v3699
        %3732 = vst [vmem:[%s476 + $0xf0] sm:$0xff] %v3700
        %3733 = vst [vmem:[%s476 + $0xf8] sm:$0xff] %v3701
        %s3734 = sand.u32 %s260, 1
        %s3735 = scalar_lea.sflag [#allocation4], %s3734
        %s3736 = sand.u32 %s260, 1
        %s3737 = smul.addr %s3736, 256
        %s3738 = scalar_lea.vmem [#allocation13], %s3737
        // Predicated region
        $region85: #{tpu_custom_call.1} parent=59 // pred_check
          %p3739 = pneg %p270
        $region86: #{tpu_custom_call.1} parent=59 // pred_check_branch
          %3741 = sbr.rel (%p3739) target = $region88
        $region87: #{tpu_custom_call.1} parent=59 // pred_region
          %s3742 = smul.u32 32, %s32
          %s3744 = ssub.s32 4096, 4096
          %3745 = vsyncadd %s3735, %s3744
          %s3746 = smul.addr %s3742, 128
          %s3747 = scalar_lea.hbm %s10, %s3746
          %s3748 = sshll.u32 %s3738, 4
          %s3749 = int_to_ptr.vmem [resolvable:$true] %s3748
          %3754 = dma.vmem_to_hbm [thread:$0]  %s3749, 4096, %s3747, %s3735, 128, 128, 8
        $region88: #{tpu_custom_call.1} parent=59 // pred_fallthru
          _
      $region60: #{tpu_custom_call.1} parent=5 // pred_fallthru
        _
      %p3755 = scmp.le.s32.totalorder 2, %s27
      // Predicated region
      $region89: #{tpu_custom_call.1} parent=5 // pred_check
        %p3756 = pneg %p3755
      $region90: #{tpu_custom_call.1} parent=5 // pred_check_branch
        %3758 = sbr.rel (%p3756) target = $region92
      $region91: #{tpu_custom_call.1} parent=5 // pred_region
        %s3759 = ssub.s32 %s27, 2
        // Predicated region
        $region93: #{tpu_custom_call.1} parent=91 // pred_check
          %p3760 = pneg %p276
        $region94: #{tpu_custom_call.1} parent=91 // pred_check_branch
          %3762 = sbr.rel (%p3760) target = $region96
        $region95: #{tpu_custom_call.1} parent=91 // pred_region
          %s3763 = sand.u32 %s261, 1
          %s3764 = scalar_lea.sflag [#allocation4], %s3763
          %s3765 = sand.u32 %s261, 1
          %s3766 = smul.addr %s3765, 256
          %s3767 = scalar_lea.vmem [#allocation13], %s3766
          %3768 = dma.done %s3764, 4096
        $region96: #{tpu_custom_call.1} parent=91 // pred_fallthru
          _
      $region92: #{tpu_custom_call.1} parent=5 // pred_fallthru
        _
    $region6: #{tpu_custom_call.1} parent=1 // loop_footer
      %s31 = sadd.s32 1, %s27
    $region7: #{tpu_custom_call.1} parent=1 // loop_footer_branch
      %26 = sbr.rel target = $region3
    $region8: #{tpu_custom_call.1} parent=1 // loop_exit
      _
    %3769 = vsyncpa [#allocation3], 1
    %s3770 = scalar_lea.sflag [#allocation3], 1
    %3771 = vsyncpa %s3770, 1
    %3772 = vsyncpa [#allocation6], 1
    %s3773 = scalar_lea.sflag [#allocation6], 1
    %3774 = vsyncpa %s3773, 1
    %3775 = vsyncpa [#allocation9], 1
    %3776 = vsyncpa [#allocation12], 1
    %3777 = vsyncpa [#allocation4], 1
    %s3778 = scalar_lea.sflag [#allocation4], 1
    %3779 = vsyncpa %s3778, 1

</llo_original>
